<compile_context>
chip_gen: v7x
topology: tpu7x:2x2x1
jax: 0.10.0
libtpu: 0.0.40
codegen_flags: <defaults>
</compile_context>

<pallas_src>
import functools
import math

import jax
import jax.numpy as jnp
from jax.experimental import pallas as pl
from jax.experimental.pallas import tpu as pltpu


# -----------------------------------------------------------------------------
# Kernel: one (row-tile m, C_out-tile j, C_in-chunk k) grid step.
#   x_ref  : (tile_oh + KH - 1, Wp, tk_cin)  padded input window (compute dtype)
#   w_ref  : (KH*KW, tk_cin, tn)             BN-scale-folded weights
#   b_ref  : (1, tn)                         folded bias (f32)
#   o_ref  : (tile_oh, OW, tn)               output (f32)
#   acc_ref: (tile_oh*OW, tn) f32 scratch accumulator (lives across C_in chunks)
# -----------------------------------------------------------------------------
def _conv_bn_kernel(x_ref, w_ref, b_ref, o_ref, acc_ref, *,
                    KH, KW, OW, tile_oh, use_activation):
    k = pl.program_id(2)

    @pl.when(k == 0)
    def _init():
        acc_ref[...] = jnp.zeros_like(acc_ref)

    tile_m = tile_oh * OW
    xwin = x_ref[...]                                    # (R, Wp, tk_cin)
    acc = acc_ref[...]
    for kh in range(KH):                                 # im2col fused in VMEM
        for kw in range(KW):
            patch = xwin[kh:kh + tile_oh, kw:kw + OW, :]
            patch2d = patch.reshape(tile_m, -1)
            acc = acc + jnp.dot(patch2d, w_ref[kh * KW + kw],
                                preferred_element_type=jnp.float32)
    acc_ref[...] = acc

    @pl.when(k == pl.num_programs(2) - 1)
    def _finalize():
        y = acc_ref[...] + b_ref[...]
        if use_activation:
            y = jnp.maximum(y, 0.0)
        o_ref[...] = y.reshape(tile_oh, OW, -1).astype(o_ref.dtype)


def _round_up(x, m):
    return ((x + m - 1) // m) * m


def conv2d_bn_nhwc(x, weight, conv_bias, gamma, beta, running_mean,
                   running_var, *, stride=1, padding=0, eps=1e-5,
                   use_activation=True, compute_dtype=jnp.float32,
                   cin_block=None, cout_block=None,
                   vmem_budget_bytes=24 * 1024 * 1024):
    """Fused Conv2d + BatchNorm2d (eval mode, folded) + optional ReLU, NHWC.

    x      : (N, H, W, C_in)
    weight : (C_out, C_in, KH, KW)  (PyTorch OIHW layout)
    returns: (N, OH, OW, C_out) float32
    """
    if stride != 1:
        # All Conv2dBN layers in DC_Unet use stride=1.
        raise NotImplementedError("only stride=1 Conv2dBN is implemented")
    N, H, W, C_in = x.shape
    C_out, _, KH, KW = weight.shape
    OH = H + 2 * padding - KH + 1
    OW = W + 2 * padding - KW + 1
    Wp = W + 2 * padding
    in_bytes = jnp.dtype(compute_dtype).itemsize

    # --- C_in chunking (bounds VMEM for deep layers; chunks must be %128) ----
    if cin_block is None:
        cin_block = C_in if C_in <= 512 else 256
    if cin_block >= C_in:
        tk_cin, C_in_p = C_in, C_in
    else:
        assert cin_block % 128 == 0, "C_in chunk must be a multiple of 128"
        tk_cin = cin_block
        C_in_p = _round_up(C_in, tk_cin)
    n_cin = C_in_p // tk_cin

    # --- C_out tiling (MXU-friendly <=256 wide) ------------------------------
    if cout_block is None:
        cout_block = C_out if C_out <= 256 else 256
    if cout_block >= C_out:
        tn, C_out_p = C_out, C_out
    else:
        assert cout_block % 128 == 0, "C_out tile must be a multiple of 128"
        tn = cout_block
        C_out_p = _round_up(C_out, tn)
    n_cout = C_out_p // tn

    # --- output-row tile: target ~512 output pixels/step, shrink to fit VMEM -
    tile_oh = max(1, min(OH, -(-512 // OW)))

    def _usage(t_oh):
        win = (t_oh + KH - 1) * Wp * tk_cin * in_bytes
        wgt = KH * KW * tk_cin * tn * in_bytes
        out = t_oh * OW * tn * 4
        return 2 * (win + wgt + tn * 4 + out) + t_oh * OW * tn * 4

    while tile_oh > 1 and _usage(tile_oh) > vmem_budget_bytes:
        tile_oh = max(1, tile_oh // 2)
    nrt = -(-OH // tile_oh)
    OH_p = nrt * tile_oh
    tile_m = tile_oh * OW
    R = tile_oh + KH - 1

    # --- fold BN (eval mode) into the conv weight / bias ---------------------
    inv_std = jax.lax.rsqrt(running_var.astype(jnp.float32) + eps)
    scale = gamma.astype(jnp.float32) * inv_std                       # (C_out,)
    bias = beta.astype(jnp.float32) + (conv_bias.astype(jnp.float32)
                                       - running_mean.astype(jnp.float32)) * scale

    w = jnp.transpose(weight.astype(jnp.float32), (2, 3, 1, 0))  # KH,KW,Cin,Cout
    w = w * scale[None, None, None, :]                           # fold BN scale
    w = w.reshape(KH * KW, C_in, C_out)
    w = jnp.pad(w, ((0, 0), (0, C_in_p - C_in), (0, C_out_p - C_out)))
    w = w.astype(compute_dtype)
    bias = jnp.pad(bias, (0, C_out_p - C_out)).reshape(1, C_out_p)

    # --- pad input and build halo'd row windows ------------------------------
    # Only the (KH-1)-row halo is duplicated in HBM (vs 9x for full im2col).
    extra_h = OH_p + KH - 1 - (H + 2 * padding)
    xp = jnp.pad(x.astype(compute_dtype),
                 ((0, 0), (padding, padding + extra_h), (padding, padding),
                  (0, C_in_p - C_in)))
    if nrt == 1:
        xwin = xp.reshape(N, 1, R, Wp, C_in_p)
    else:
        xwin = jnp.stack(
            [xp[:, i * tile_oh:i * tile_oh + R] for i in range(nrt)], axis=1)
    xwin = xwin.reshape(N * nrt, R, Wp, C_in_p)

    kernel = functools.partial(_conv_bn_kernel, KH=KH, KW=KW, OW=OW,
                               tile_oh=tile_oh, use_activation=use_activation)

    flops = 2 * N * OH * OW * KH * KW * C_in * C_out
    bytes_accessed = (xwin.size * in_bytes + w.size * in_bytes
                      + N * nrt * tile_oh * OW * C_out_p * 4 + bias.size * 4)

    out = pl.pallas_call(
        kernel,
        out_shape=jax.ShapeDtypeStruct((N * nrt, tile_oh, OW, C_out_p),
                                       jnp.float32),
        grid_spec=pltpu.PrefetchScalarGridSpec(
            num_scalar_prefetch=0,
            grid=(N * nrt, n_cout, n_cin),
            in_specs=[
                pl.BlockSpec((None, R, Wp, tk_cin),
                             lambda m, j, k: (m, 0, 0, k)),
                pl.BlockSpec((KH * KW, tk_cin, tn),
                             lambda m, j, k: (0, k, j)),
                pl.BlockSpec((1, tn), lambda m, j, k: (0, j)),
            ],
            out_specs=pl.BlockSpec((None, tile_oh, OW, tn),
                                   lambda m, j, k: (m, 0, 0, j)),
            scratch_shapes=[pltpu.VMEM((tile_m, tn), jnp.float32)],
        ),
        compiler_params=pltpu.CompilerParams(
            dimension_semantics=("parallel", "parallel", "arbitrary"),
            vmem_limit_bytes=48 * 1024 * 1024),
        cost_estimate=pl.CostEstimate(flops=flops, transcendentals=0,
                                      bytes_accessed=bytes_accessed),
    )(xwin, w, bias)

    out = out.reshape(N, OH_p, OW, C_out_p)
    if OH_p != OH or C_out_p != C_out:
        out = out[:, :OH, :, :C_out]
    return out


def conv2d_bn(x_nchw, weight, conv_bias, gamma, beta, running_mean,
              running_var, *, stride=1, padding=0, eps=1e-5,
              use_activation=True, compute_dtype=jnp.float32):
    """NCHW boundary wrapper (PyTorch layout parity). Internally NHWC."""
    x = jnp.transpose(x_nchw, (0, 2, 3, 1))
    y = conv2d_bn_nhwc(x, weight, conv_bias, gamma, beta, running_mean,
                       running_var, stride=stride, padding=padding, eps=eps,
                       use_activation=use_activation,
                       compute_dtype=compute_dtype)
    return jnp.transpose(y, (0, 3, 1, 2))


def dc_mini_block_nhwc(x, p1, p2, p3, *, compute_dtype=jnp.float32):
    """DC_MiniBlock: three chained Conv2dBN(3x3, pad=1) + ReLU, channel concat.

    Stays in NHWC throughout — no per-layer transpose.
    TODO(synk): the PyTorch spec's torch.concatenate uses the default dim=0,
    which errors for mismatched channel widths; the channel concat intended by
    the DC-UNet architecture is used instead.
    """
    h1 = conv2d_bn_nhwc(x, **p1, stride=1, padding=1, compute_dtype=compute_dtype)
    h2 = conv2d_bn_nhwc(h1, **p2, stride=1, padding=1, compute_dtype=compute_dtype)
    h3 = conv2d_bn_nhwc(h2, **p3, stride=1, padding=1, compute_dtype=compute_dtype)
    return jnp.concatenate([h1, h2, h3], axis=-1)


# ----------------------------- references / tests ----------------------------
def _reference_nhwc(x, weight, conv_bias, gamma, beta, running_mean,
                    running_var, *, stride=1, padding=0, eps=1e-5,
                    use_activation=True):
    w_hwio = jnp.transpose(weight, (2, 3, 1, 0))
    y = jax.lax.conv_general_dilated(
        x, w_hwio, window_strides=(stride, stride),
        padding=[(padding, padding), (padding, padding)],
        dimension_numbers=("NHWC", "HWIO", "NHWC"))
    y = y + conv_bias
    inv_std = jax.lax.rsqrt(running_var + eps)
    y = (y - running_mean) * (gamma * inv_std) + beta
    if use_activation:
        y = jnp.maximum(y, 0.0)
    return y


def make_conv_bn_params(key, c_in, c_out, k):
    ks = jax.random.split(key, 6)
    return dict(
        weight=jax.random.normal(ks[0], (c_out, c_in, k, k), jnp.float32)
        * (1.0 / math.sqrt(c_in * k * k)),
        conv_bias=0.1 * jax.random.normal(ks[1], (c_out,), jnp.float32),
        gamma=1.0 + 0.1 * jax.random.normal(ks[2], (c_out,), jnp.float32),
        beta=0.1 * jax.random.normal(ks[3], (c_out,), jnp.float32),
        running_mean=0.1 * jax.random.normal(ks[4], (c_out,), jnp.float32),
        running_var=jnp.abs(
            1.0 + 0.1 * jax.random.normal(ks[5], (c_out,), jnp.float32)),
    )


if __name__ == "__main__":
    key = jax.random.PRNGKey(0)
    kx, kp = jax.random.split(key)

    # ---- Test 1: single Conv2dBN (3x3, pad=1), NCHW boundary, f32 ----------
    N, C_in, H, W = 2, 4, 16, 16
    C_out = 8
    x_nchw = jax.random.normal(kx, (N, C_in, H, W), jnp.float32)
    p = make_conv_bn_params(jax.random.fold_in(kp, 0), C_in, C_out, 3)

    out = conv2d_bn(x_nchw, **p, stride=1, padding=1)
    out = jax.block_until_ready(out)
    ref = jnp.transpose(
        _reference_nhwc(jnp.transpose(x_nchw, (0, 2, 3, 1)), **p,
                        stride=1, padding=1), (0, 3, 1, 2))
    assert out.shape == (N, C_out, H, W)
    assert jnp.allclose(out, ref, atol=2e-4, rtol=2e-4), "f32 3x3 conv mismatch"

    # ---- Test 2: same conv with bf16 operands (f32 accumulation) -----------
    out_bf16 = conv2d_bn(x_nchw, **p, stride=1, padding=1,
                         compute_dtype=jnp.bfloat16)
    out_bf16 = jax.block_until_ready(out_bf16)
    assert jnp.allclose(out_bf16, ref, atol=5e-2, rtol=5e-2), "bf16 conv mismatch"

    # ---- Test 3: deeper-layer shape: C_in chunking + C_out tiling ----------
    N3, H3, W3, C_in3, C_out3 = 1, 8, 8, 256, 384
    x3 = jax.random.normal(jax.random.fold_in(kx, 3), (N3, H3, W3, C_in3),
                           jnp.float32)
    p3 = make_conv_bn_params(jax.random.fold_in(kp, 3), C_in3, C_out3, 3)
    out3 = conv2d_bn_nhwc(x3, **p3, stride=1, padding=1,
                          cin_block=128, cout_block=256)
    out3 = jax.block_until_ready(out3)
    ref3 = _reference_nhwc(x3, **p3, stride=1, padding=1)
    assert out3.shape == (N3, H3, W3, C_out3)
    assert jnp.allclose(out3, ref3, atol=2e-2, rtol=2e-2), "tiled conv mismatch"

    # ---- Test 4: DC_MiniBlock (first encoder block widths), NHWC, f32 ------
    w_alpha = 32 * 1.67
    c1, c2, c3 = int(w_alpha / 6), int(w_alpha / 3), int(w_alpha / 2)  # 8,17,26
    x4 = jnp.transpose(x_nchw, (0, 2, 3, 1))        # NHWC once at the boundary
    pm1 = make_conv_bn_params(jax.random.fold_in(kp, 11), C_in, c1, 3)
    pm2 = make_conv_bn_params(jax.random.fold_in(kp, 12), c1, c2, 3)
    pm3 = make_conv_bn_params(jax.random.fold_in(kp, 13), c2, c3, 3)
    out4 = dc_mini_block_nhwc(x4, pm1, pm2, pm3)
    out4 = jax.block_until_ready(out4)
    r1 = _reference_nhwc(x4, **pm1, stride=1, padding=1)
    r2 = _reference_nhwc(r1, **pm2, stride=1, padding=1)
    r3 = _reference_nhwc(r2, **pm3, stride=1, padding=1)
    ref4 = jnp.concatenate([r1, r2, r3], axis=-1)
    assert out4.shape == (N, H, W, c1 + c2 + c3)
    assert jnp.allclose(out4, ref4, atol=1e-3, rtol=1e-3), "mini-block mismatch"

    print("KERNEL_OK")
</pallas_src>

<mosaic_0001>
module attributes {stable_mosaic.version = 11 : i64} {
  func.func @_conv_bn_kernel(%arg0: i32, %arg1: i32, %arg2: i32, %arg3: memref<1x18x18x4xf32, #tpu.memory_space<vmem>>, %arg4: memref<9x4x8xf32, #tpu.memory_space<vmem>>, %arg5: memref<1x8xf32, #tpu.memory_space<vmem>>, %arg6: memref<1x16x16x8xf32, #tpu.memory_space<vmem>>, %arg7: memref<256x8xf32, #tpu.memory_space<vmem>>) attributes {dimension_semantics = [#tpu.dimension_semantics<parallel>, #tpu.dimension_semantics<parallel>, #tpu.dimension_semantics<arbitrary>], iteration_bounds = array<i64: 2, 1, 1>, scalar_prefetch = 0 : i64, scratch_operands = 1 : i64, tpu.core_type = #tpu.core_type<tc>, window_params = [{transform_indices = @transform_0, window_bounds = array<i64: 1, 18, 18, 4>}, {transform_indices = @transform_1, window_bounds = array<i64: 9, 4, 8>}, {transform_indices = @transform_2, window_bounds = array<i64: 1, 8>}, {transform_indices = @transform_3, window_bounds = array<i64: 1, 16, 16, 8>}]} {
    %c0_i32 = arith.constant 0 : i32
    %0 = arith.cmpi eq, %arg2, %c0_i32 : i32
    %1 = arith.extui %0 : i1 to i32
    %c0_i32_0 = arith.constant 0 : i32
    %2 = arith.cmpi ne, %1, %c0_i32_0 : i32
    scf.if %2 {
      %cst_37 = arith.constant 0.000000e+00 : f32
      %64 = vector.broadcast %cst_37 : f32 to vector<256x8xf32>
      %c0_38 = arith.constant 0 : index
      %c0_39 = arith.constant 0 : index
      %65 = vector.load %arg7[%c0_38, %c0_39] : memref<256x8xf32, #tpu.memory_space<vmem>>, vector<256x8xf32>
      tpu.vector_store %arg7[%c0_38, %c0_39], %64 {strides = array<i32>} : memref<256x8xf32, #tpu.memory_space<vmem>>, vector<256x8xf32>,
    } else {
    }
    %c0 = arith.constant 0 : index
    %c0_1 = arith.constant 0 : index
    %c0_2 = arith.constant 0 : index
    %c0_3 = arith.constant 0 : index
    %3 = vector.load %arg3[%c0, %c0_1, %c0_2, %c0_3] : memref<1x18x18x4xf32, #tpu.memory_space<vmem>>, vector<1x18x18x4xf32>
    %4 = vector.shape_cast %3 : vector<1x18x18x4xf32> to vector<18x18x4xf32>
    %c0_4 = arith.constant 0 : index
    %c0_5 = arith.constant 0 : index
    %5 = vector.load %arg7[%c0_4, %c0_5] : memref<256x8xf32, #tpu.memory_space<vmem>>, vector<256x8xf32>
    %6 = vector.extract_strided_slice %4 {offsets = [0, 0, 0], sizes = [16, 16, 4], strides = [1, 1, 1]} : vector<18x18x4xf32> to vector<16x16x4xf32>
    %7 = vector.shape_cast %6 : vector<16x16x4xf32> to vector<256x4xf32>
    %c0_6 = arith.constant 0 : index
    %c0_7 = arith.constant 0 : index
    %c0_8 = arith.constant 0 : index
    %8 = vector.load %arg4[%c0_6, %c0_7, %c0_8] : memref<9x4x8xf32, #tpu.memory_space<vmem>>, vector<1x4x8xf32>
    %9 = vector.shape_cast %8 : vector<1x4x8xf32> to vector<4x8xf32>
    %cst = arith.constant dense<0.000000e+00> : vector<256x8xf32>
    %10 = tpu.matmul %7, %9, %cst {dimension_numbers = #tpu.dot_dimension_numbers<[1], [0], [0], [1], [0, 0, 1, 1], [], []>} : vector<256x4xf32>, vector<4x8xf32>, vector<256x8xf32> -> vector<256x8xf32>
    %11 = arith.addf %5, %10 : vector<256x8xf32>
    %12 = vector.extract_strided_slice %4 {offsets = [0, 1, 0], sizes = [16, 16, 4], strides = [1, 1, 1]} : vector<18x18x4xf32> to vector<16x16x4xf32>
    %13 = vector.shape_cast %12 : vector<16x16x4xf32> to vector<256x4xf32>
    %c1 = arith.constant 1 : index
    %c0_9 = arith.constant 0 : index
    %c0_10 = arith.constant 0 : index
    %14 = vector.load %arg4[%c1, %c0_9, %c0_10] : memref<9x4x8xf32, #tpu.memory_space<vmem>>, vector<1x4x8xf32>
    %15 = vector.shape_cast %14 : vector<1x4x8xf32> to vector<4x8xf32>
    %cst_11 = arith.constant dense<0.000000e+00> : vector<256x8xf32>
    %16 = tpu.matmul %13, %15, %cst_11 {dimension_numbers = #tpu.dot_dimension_numbers<[1], [0], [0], [1], [0, 0, 1, 1], [], []>} : vector<256x4xf32>, vector<4x8xf32>, vector<256x8xf32> -> vector<256x8xf32>
    %17 = arith.addf %11, %16 : vector<256x8xf32>
    %18 = vector.extract_strided_slice %4 {offsets = [0, 2, 0], sizes = [16, 16, 4], strides = [1, 1, 1]} : vector<18x18x4xf32> to vector<16x16x4xf32>
    %19 = vector.shape_cast %18 : vector<16x16x4xf32> to vector<256x4xf32>
    %c2 = arith.constant 2 : index
    %c0_12 = arith.constant 0 : index
    %c0_13 = arith.constant 0 : index
    %20 = vector.load %arg4[%c2, %c0_12, %c0_13] : memref<9x4x8xf32, #tpu.memory_space<vmem>>, vector<1x4x8xf32>
    %21 = vector.shape_cast %20 : vector<1x4x8xf32> to vector<4x8xf32>
    %cst_14 = arith.constant dense<0.000000e+00> : vector<256x8xf32>
    %22 = tpu.matmul %19, %21, %cst_14 {dimension_numbers = #tpu.dot_dimension_numbers<[1], [0], [0], [1], [0, 0, 1, 1], [], []>} : vector<256x4xf32>, vector<4x8xf32>, vector<256x8xf32> -> vector<256x8xf32>
    %23 = arith.addf %17, %22 : vector<256x8xf32>
    %24 = vector.extract_strided_slice %4 {offsets = [1, 0, 0], sizes = [16, 16, 4], strides = [1, 1, 1]} : vector<18x18x4xf32> to vector<16x16x4xf32>
    %25 = vector.shape_cast %24 : vector<16x16x4xf32> to vector<256x4xf32>
    %c3 = arith.constant 3 : index
    %c0_15 = arith.constant 0 : index
    %c0_16 = arith.constant 0 : index
    %26 = vector.load %arg4[%c3, %c0_15, %c0_16] : memref<9x4x8xf32, #tpu.memory_space<vmem>>, vector<1x4x8xf32>
    %27 = vector.shape_cast %26 : vector<1x4x8xf32> to vector<4x8xf32>
    %cst_17 = arith.constant dense<0.000000e+00> : vector<256x8xf32>
    %28 = tpu.matmul %25, %27, %cst_17 {dimension_numbers = #tpu.dot_dimension_numbers<[1], [0], [0], [1], [0, 0, 1, 1], [], []>} : vector<256x4xf32>, vector<4x8xf32>, vector<256x8xf32> -> vector<256x8xf32>
    %29 = arith.addf %23, %28 : vector<256x8xf32>
    %30 = vector.extract_strided_slice %4 {offsets = [1, 1, 0], sizes = [16, 16, 4], strides = [1, 1, 1]} : vector<18x18x4xf32> to vector<16x16x4xf32>
    %31 = vector.shape_cast %30 : vector<16x16x4xf32> to vector<256x4xf32>
    %c4 = arith.constant 4 : index
    %c0_18 = arith.constant 0 : index
    %c0_19 = arith.constant 0 : index
    %32 = vector.load %arg4[%c4, %c0_18, %c0_19] : memref<9x4x8xf32, #tpu.memory_space<vmem>>, vector<1x4x8xf32>
    %33 = vector.shape_cast %32 : vector<1x4x8xf32> to vector<4x8xf32>
    %cst_20 = arith.constant dense<0.000000e+00> : vector<256x8xf32>
    %34 = tpu.matmul %31, %33, %cst_20 {dimension_numbers = #tpu.dot_dimension_numbers<[1], [0], [0], [1], [0, 0, 1, 1], [], []>} : vector<256x4xf32>, vector<4x8xf32>, vector<256x8xf32> -> vector<256x8xf32>
    %35 = arith.addf %29, %34 : vector<256x8xf32>
    %36 = vector.extract_strided_slice %4 {offsets = [1, 2, 0], sizes = [16, 16, 4], strides = [1, 1, 1]} : vector<18x18x4xf32> to vector<16x16x4xf32>
    %37 = vector.shape_cast %36 : vector<16x16x4xf32> to vector<256x4xf32>
    %c5 = arith.constant 5 : index
    %c0_21 = arith.constant 0 : index
    %c0_22 = arith.constant 0 : index
    %38 = vector.load %arg4[%c5, %c0_21, %c0_22] : memref<9x4x8xf32, #tpu.memory_space<vmem>>, vector<1x4x8xf32>
    %39 = vector.shape_cast %38 : vector<1x4x8xf32> to vector<4x8xf32>
    %cst_23 = arith.constant dense<0.000000e+00> : vector<256x8xf32>
    %40 = tpu.matmul %37, %39, %cst_23 {dimension_numbers = #tpu.dot_dimension_numbers<[1], [0], [0], [1], [0, 0, 1, 1], [], []>} : vector<256x4xf32>, vector<4x8xf32>, vector<256x8xf32> -> vector<256x8xf32>
    %41 = arith.addf %35, %40 : vector<256x8xf32>
    %42 = vector.extract_strided_slice %4 {offsets = [2, 0, 0], sizes = [16, 16, 4], strides = [1, 1, 1]} : vector<18x18x4xf32> to vector<16x16x4xf32>
    %43 = vector.shape_cast %42 : vector<16x16x4xf32> to vector<256x4xf32>
    %c6 = arith.constant 6 : index
    %c0_24 = arith.constant 0 : index
    %c0_25 = arith.constant 0 : index
    %44 = vector.load %arg4[%c6, %c0_24, %c0_25] : memref<9x4x8xf32, #tpu.memory_space<vmem>>, vector<1x4x8xf32>
    %45 = vector.shape_cast %44 : vector<1x4x8xf32> to vector<4x8xf32>
    %cst_26 = arith.constant dense<0.000000e+00> : vector<256x8xf32>
    %46 = tpu.matmul %43, %45, %cst_26 {dimension_numbers = #tpu.dot_dimension_numbers<[1], [0], [0], [1], [0, 0, 1, 1], [], []>} : vector<256x4xf32>, vector<4x8xf32>, vector<256x8xf32> -> vector<256x8xf32>
    %47 = arith.addf %41, %46 : vector<256x8xf32>
    %48 = vector.extract_strided_slice %4 {offsets = [2, 1, 0], sizes = [16, 16, 4], strides = [1, 1, 1]} : vector<18x18x4xf32> to vector<16x16x4xf32>
    %49 = vector.shape_cast %48 : vector<16x16x4xf32> to vector<256x4xf32>
    %c7 = arith.constant 7 : index
    %c0_27 = arith.constant 0 : index
    %c0_28 = arith.constant 0 : index
    %50 = vector.load %arg4[%c7, %c0_27, %c0_28] : memref<9x4x8xf32, #tpu.memory_space<vmem>>, vector<1x4x8xf32>
    %51 = vector.shape_cast %50 : vector<1x4x8xf32> to vector<4x8xf32>
    %cst_29 = arith.constant dense<0.000000e+00> : vector<256x8xf32>
    %52 = tpu.matmul %49, %51, %cst_29 {dimension_numbers = #tpu.dot_dimension_numbers<[1], [0], [0], [1], [0, 0, 1, 1], [], []>} : vector<256x4xf32>, vector<4x8xf32>, vector<256x8xf32> -> vector<256x8xf32>
    %53 = arith.addf %47, %52 : vector<256x8xf32>
    %54 = vector.extract_strided_slice %4 {offsets = [2, 2, 0], sizes = [16, 16, 4], strides = [1, 1, 1]} : vector<18x18x4xf32> to vector<16x16x4xf32>
    %55 = vector.shape_cast %54 : vector<16x16x4xf32> to vector<256x4xf32>
    %c8 = arith.constant 8 : index
    %c0_30 = arith.constant 0 : index
    %c0_31 = arith.constant 0 : index
    %56 = vector.load %arg4[%c8, %c0_30, %c0_31] : memref<9x4x8xf32, #tpu.memory_space<vmem>>, vector<1x4x8xf32>
    %57 = vector.shape_cast %56 : vector<1x4x8xf32> to vector<4x8xf32>
    %cst_32 = arith.constant dense<0.000000e+00> : vector<256x8xf32>
    %58 = tpu.matmul %55, %57, %cst_32 {dimension_numbers = #tpu.dot_dimension_numbers<[1], [0], [0], [1], [0, 0, 1, 1], [], []>} : vector<256x4xf32>, vector<4x8xf32>, vector<256x8xf32> -> vector<256x8xf32>
    %59 = arith.addf %53, %58 : vector<256x8xf32>
    %c0_33 = arith.constant 0 : index
    %c0_34 = arith.constant 0 : index
    %60 = vector.load %arg7[%c0_33, %c0_34] : memref<256x8xf32, #tpu.memory_space<vmem>>, vector<256x8xf32>
    tpu.vector_store %arg7[%c0_33, %c0_34], %59 {strides = array<i32>} : memref<256x8xf32, #tpu.memory_space<vmem>>, vector<256x8xf32>,
    %c0_i32_35 = arith.constant 0 : i32
    %61 = arith.cmpi eq, %arg2, %c0_i32_35 : i32
    %62 = arith.extui %61 : i1 to i32
    %c0_i32_36 = arith.constant 0 : i32
    %63 = arith.cmpi ne, %62, %c0_i32_36 : i32
    scf.if %63 {
      %c0_37 = arith.constant 0 : index
      %c0_38 = arith.constant 0 : index
      %64 = vector.load %arg7[%c0_37, %c0_38] : memref<256x8xf32, #tpu.memory_space<vmem>>, vector<256x8xf32>
      %c0_39 = arith.constant 0 : index
      %c0_40 = arith.constant 0 : index
      %65 = vector.load %arg5[%c0_39, %c0_40] : memref<1x8xf32, #tpu.memory_space<vmem>>, vector<1x8xf32>
      %66 = vector.broadcast %65 : vector<1x8xf32> to vector<256x8xf32>
      %67 = arith.addf %64, %66 : vector<256x8xf32>
      %cst_41 = arith.constant 0.000000e+00 : f32
      %68 = vector.broadcast %cst_41 : f32 to vector<256x8xf32>
      %69 = arith.maximumf %67, %68 : vector<256x8xf32>
      %70 = vector.shape_cast %69 : vector<256x8xf32> to vector<16x16x8xf32>
      %c0_42 = arith.constant 0 : index
      %c0_43 = arith.constant 0 : index
      %c0_44 = arith.constant 0 : index
      %c0_45 = arith.constant 0 : index
      %71 = vector.load %arg6[%c0_42, %c0_43, %c0_44, %c0_45] : memref<1x16x16x8xf32, #tpu.memory_space<vmem>>, vector<1x16x16x8xf32>
      %72 = vector.shape_cast %71 : vector<1x16x16x8xf32> to vector<16x16x8xf32>
      %73 = vector.shape_cast %70 : vector<16x16x8xf32> to vector<1x16x16x8xf32>
      tpu.vector_store %arg6[%c0_42, %c0_43, %c0_44, %c0_45], %73 {strides = array<i32>} : memref<1x16x16x8xf32, #tpu.memory_space<vmem>>, vector<1x16x16x8xf32>,
    } else {
    }
    return
  }
  func.func @transform_0(%arg0: i32, %arg1: i32, %arg2: i32) -> (i32, i32, i32, i32) {
    %c0_i32 = arith.constant 0 : i32
    %c0_i32_0 = arith.constant 0 : i32
    %c0_i32_1 = arith.constant 0 : i32
    return %arg0, %c0_i32, %c0_i32_0, %arg2 : i32, i32, i32, i32
  }
  func.func @transform_1(%arg0: i32, %arg1: i32, %arg2: i32) -> (i32, i32, i32) {
    %c0_i32 = arith.constant 0 : i32
    %c0_i32_0 = arith.constant 0 : i32
    return %c0_i32, %arg2, %arg1 : i32, i32, i32
  }
  func.func @transform_2(%arg0: i32, %arg1: i32, %arg2: i32) -> (i32, i32) {
    %c0_i32 = arith.constant 0 : i32
    %c0_i32_0 = arith.constant 0 : i32
    return %c0_i32, %arg1 : i32, i32
  }
  func.func @transform_3(%arg0: i32, %arg1: i32, %arg2: i32) -> (i32, i32, i32, i32) {
    %c0_i32 = arith.constant 0 : i32
    %c0_i32_0 = arith.constant 0 : i32
    %c0_i32_1 = arith.constant 0 : i32
    return %arg0, %c0_i32, %c0_i32_0, %arg1 : i32, i32, i32, i32
  }
}

</mosaic_0001>

<llo_original>
// kernel: tpu_custom_call.1
$region0: #{tpu_custom_call.1}
  #allocation0 [shape = 'u32[]', space=smem, size = 0x4, offset = 0x4, fixed_abs, tag = 'smem constant byte address 0x4 - core index']
  #allocation1 [shape = 'u32[144,128]{1,0:T(1,128)}', space=vmem, size = 0x12000, scoped, tag = 'internal scratch']
  #allocation2 [shape = 'f32[256,8]{1,0:T(8,128)}', space=vmem, size = 0x20000, scoped, tag = 'scratch operand']
  %s0 = inlined_call_operand.vmem [shape: f32[2,18,18,4], index: 0, kind: input, shape index: {}]
  %s1 = inlined_call_operand.vmem [shape: f32[9,4,8], index: 1, kind: input, shape index: {}]
  %s2 = inlined_call_operand.vmem [shape: f32[1,8], index: 2, kind: input, shape index: {}]
  %s3 = inlined_call_operand.vmem [shape: f32[2,16,16,8], index: 3, kind: output, shape index: {}]
  %s4 = sld [smem:[#allocation0]]
  $region53: #{tpu_custom_call.1} parent=0
    _
  %s6 = ssub.s32 1, %s4
  %s7 = scalar_select 0, %s6, %s4
  loop: start=0, step=1, limit=4
  $region2: #{tpu_custom_call.1} parent=0 // loop_pre_header
    _
  $region3: #{tpu_custom_call.1} parent=0 // loop_header
    %s9 = sphi 0, %s13
    %p10 = scmp.ge.s32.totalorder %s9, 4
    %s16 = sphi 0, %s35
    %s17 = sphi 0, %s31
    %s18 = sphi 0, %s27
    %s19 = sphi 0, %s16
    %s20 = sphi 0, %s17
    %s21 = sphi 0, %s18
    %s22 = sphi 0, %s19
    %s23 = sphi 0, %s20
    %s24 = sphi 0, %s21
    %s40 = sphi 0, %s42
    %s43 = sphi 0, %s40
    %s44 = sphi 0, %s43
    %s60 = sphi 0, %s44
    %s68 = sphi 0, %s70
    %s71 = sphi 0, %s68
    %s72 = sphi 0, %s71
    %s88 = sphi 0, %s72
    %s94 = sphi 0, %s96
    %s97 = sphi 0, %s94
    %s98 = sphi 0, %s97
    %s114 = sphi 0, %s98
    %s122 = sphi 0, %s124
    %s125 = sphi 0, %s122
    %s126 = sphi 0, %s125
    %s142 = sphi 0, %s126
  $region4: #{tpu_custom_call.1} parent=0 // loop_header_branch
    %12 = sbr.rel (%p10) target = $region8
  $region5: #{tpu_custom_call.1} parent=0 // loop_body
    %s14 = ssub.s32 %s9, 1
    %s15 = ssub.s32 %s9, 2
    %s25 = sadd.s32 1, %s18
    %p26 = scmp.ge.s32.totalorder %s25, 1
    %s27 = scalar_select %p26, 0, %s25
    %s28 = sadd.s32 1, %s17
    %s29 = scalar_select %p26, %s28, %s17
    %p30 = scmp.ge.s32.totalorder %s29, 1
    %s31 = scalar_select %p30, 0, %s29
    %s32 = sadd.s32 1, %s16
    %s33 = scalar_select %p30, %s32, %s16
    %p34 = scmp.ge.s32.totalorder %s33, 2
    %s35 = scalar_select %p34, 0, %s33
    %s36 = ssub.s32 %s16, %s35
    %s37 = ssub.s32 %s18, %s27
    %s38 = sor.u32 %s36, %s37
    %p39 = scmp.eq.s32.totalorder %s38, 0
    %s41 = sadd.s32 %s40, 1
    %s42 = scalar_select %p39, %s40, %s41
    %p45 = pneg %p39
    %p46 = scmp.eq.s32.totalorder %s9, 1
    %p47 = por %p45, %p46
    %p48 = scmp.ne.s32.totalorder %s40, %s43
    %p49 = scmp.eq.s32.totalorder %s9, 0
    %p50 = por %p48, %p49
    %p51 = scmp.ne.s32.totalorder %s40, %s43
    %p52 = scmp.eq.s32.totalorder %s14, 1
    %p53 = por %p51, %p52
    %p54 = scmp.ne.s32.totalorder %s43, %s44
    %p55 = scmp.eq.s32.totalorder %s14, 0
    %p56 = por %p54, %p55
    %p57 = scmp.ne.s32.totalorder %s43, %s44
    %p58 = scmp.eq.s32.totalorder %s15, 1
    %p59 = por %p57, %p58
    %p61 = scmp.ne.s32.totalorder %s44, %s60
    %p62 = scmp.eq.s32.totalorder %s15, 0
    %p63 = por %p61, %p62
    %s64 = ssub.s32 %s18, %s27
    %s65 = ssub.s32 %s17, %s31
    %s66 = sor.u32 %s64, %s65
    %p67 = scmp.eq.s32.totalorder %s66, 0
    %s69 = sadd.s32 %s68, 1
    %s70 = scalar_select %p67, %s68, %s69
    %p73 = pneg %p67
    %p74 = scmp.eq.s32.totalorder %s9, 1
    %p75 = por %p73, %p74
    %p76 = scmp.ne.s32.totalorder %s68, %s71
    %p77 = scmp.eq.s32.totalorder %s9, 0
    %p78 = por %p76, %p77
    %p79 = scmp.ne.s32.totalorder %s68, %s71
    %p80 = scmp.eq.s32.totalorder %s14, 1
    %p81 = por %p79, %p80
    %p82 = scmp.ne.s32.totalorder %s71, %s72
    %p83 = scmp.eq.s32.totalorder %s14, 0
    %p84 = por %p82, %p83
    %p85 = scmp.ne.s32.totalorder %s71, %s72
    %p86 = scmp.eq.s32.totalorder %s15, 1
    %p87 = por %p85, %p86
    %p89 = scmp.ne.s32.totalorder %s72, %s88
    %p90 = scmp.eq.s32.totalorder %s15, 0
    %p91 = por %p89, %p90
    %s92 = ssub.s32 %s17, %s31
    %p93 = scmp.eq.s32.totalorder %s92, 0
    %s95 = sadd.s32 %s94, 1
    %s96 = scalar_select %p93, %s94, %s95
    %p99 = pneg %p93
    %p100 = scmp.eq.s32.totalorder %s9, 1
    %p101 = por %p99, %p100
    %p102 = scmp.ne.s32.totalorder %s94, %s97
    %p103 = scmp.eq.s32.totalorder %s9, 0
    %p104 = por %p102, %p103
    %p105 = scmp.ne.s32.totalorder %s94, %s97
    %p106 = scmp.eq.s32.totalorder %s14, 1
    %p107 = por %p105, %p106
    %p108 = scmp.ne.s32.totalorder %s97, %s98
    %p109 = scmp.eq.s32.totalorder %s14, 0
    %p110 = por %p108, %p109
    %p111 = scmp.ne.s32.totalorder %s97, %s98
    %p112 = scmp.eq.s32.totalorder %s15, 1
    %p113 = por %p111, %p112
    %p115 = scmp.ne.s32.totalorder %s98, %s114
    %p116 = scmp.eq.s32.totalorder %s15, 0
    %p117 = por %p115, %p116
    %s118 = ssub.s32 %s16, %s35
    %s119 = ssub.s32 %s17, %s31
    %s120 = sor.u32 %s118, %s119
    %p121 = scmp.eq.s32.totalorder %s120, 0
    %s123 = sadd.s32 %s122, 1
    %s124 = scalar_select %p121, %s122, %s123
    %p127 = pneg %p121
    %p128 = scmp.eq.s32.totalorder %s9, 1
    %p129 = por %p127, %p128
    %p130 = scmp.ne.s32.totalorder %s122, %s125
    %p131 = scmp.eq.s32.totalorder %s9, 0
    %p132 = por %p130, %p131
    %p133 = scmp.ne.s32.totalorder %s122, %s125
    %p134 = scmp.eq.s32.totalorder %s14, 1
    %p135 = por %p133, %p134
    %p136 = scmp.ne.s32.totalorder %s125, %s126
    %p137 = scmp.eq.s32.totalorder %s14, 0
    %p138 = por %p136, %p137
    %p139 = scmp.ne.s32.totalorder %s125, %s126
    %p140 = scmp.eq.s32.totalorder %s15, 1
    %p141 = por %p139, %p140
    %p143 = scmp.ne.s32.totalorder %s126, %s142
    %p144 = scmp.eq.s32.totalorder %s15, 0
    %p145 = por %p143, %p144
    %p146 = scmp.le.s32.totalorder 1, %s9
    %p147 = scmp.lt.s32.totalorder %s9, 3
    %p148 = pnand %p146, %p147
    %p149 = pneg %p148
    // Predicated region
    $region9: #{tpu_custom_call.1} parent=5 // pred_check
      _
    $region10: #{tpu_custom_call.1} parent=5 // pred_check_branch
      %151 = sbr.rel (%p148) target = $region12
    $region11: #{tpu_custom_call.1} parent=5 // pred_region
      %s152 = ssub.s32 %s9, 1
      // Predicated region
      $region13: #{tpu_custom_call.1} parent=11 // pred_check
        %p153 = pneg %p84
      $region14: #{tpu_custom_call.1} parent=11 // pred_check_branch
        %155 = sbr.rel (%p153) target = $region16
      $region15: #{tpu_custom_call.1} parent=11 // pred_region
        %p156 = scmp.lt.s32.totalorder %s21, 0
        %s157 = scalar_select %p156, %s21, 0
        %p158 = scmp.lt.s32.totalorder %s20, 0
        %s159 = scalar_select %p158, %s20, 0
        %s160 = sadd.s32 %s159, %s157
        %s161 = smul.addr %s160, 4
        %s162 = scalar_lea.vmem %s1, %s161
      $region16: #{tpu_custom_call.1} parent=11 // pred_fallthru
        _
      // Predicated region
      $region17: #{tpu_custom_call.1} parent=11 // pred_check
        %p163 = pneg %p110
      $region18: #{tpu_custom_call.1} parent=11 // pred_check_branch
        %165 = sbr.rel (%p163) target = $region20
      $region19: #{tpu_custom_call.1} parent=11 // pred_region
        %p166 = scmp.lt.s32.totalorder %s20, 0
        %s167 = scalar_select %p166, %s20, 0
        %s168 = scalar_lea.vmem %s2, %s167
      $region20: #{tpu_custom_call.1} parent=11 // pred_fallthru
        _
    $region12: #{tpu_custom_call.1} parent=5 // pred_fallthru
      _
    %p169 = scmp.lt.s32.totalorder %s9, 2
    // Predicated region
    $region21: #{tpu_custom_call.1} parent=5 // pred_check
      %p170 = pneg %p169
    $region22: #{tpu_custom_call.1} parent=5 // pred_check_branch
      %172 = sbr.rel (%p170) target = $region24
    $region23: #{tpu_custom_call.1} parent=5 // pred_region
      // Predicated region
      $region25: #{tpu_custom_call.1} parent=23 // pred_check
        %p173 = pneg %p50
      $region26: #{tpu_custom_call.1} parent=23 // pred_check_branch
        %175 = sbr.rel (%p173) target = $region28
      $region27: #{tpu_custom_call.1} parent=23 // pred_region
        %p176 = scmp.lt.s32.totalorder %s16, 1
        %s177 = scalar_select %p176, %s16, 1
        %p178 = scmp.lt.s32.totalorder %s18, 0
        %s179 = scalar_select %p178, %s18, 0
        %s180 = smul.addr %s177, 54
        %s181 = sadd.s32 %s179, %s180
        %s182 = smul.addr %s181, 8
        %s183 = scalar_lea.vmem %s0, %s182
      $region28: #{tpu_custom_call.1} parent=23 // pred_fallthru
        _
    $region24: #{tpu_custom_call.1} parent=5 // pred_fallthru
      _
    %p184 = scmp.le.s32.totalorder 1, %s9
    %p185 = scmp.lt.s32.totalorder %s9, 3
    %p186 = pnand %p184, %p185
    %p187 = pneg %p186
    // Predicated region
    $region29: #{tpu_custom_call.1} parent=5 // pred_check
      _
    $region30: #{tpu_custom_call.1} parent=5 // pred_check_branch
      %189 = sbr.rel (%p186) target = $region32
    $region31: #{tpu_custom_call.1} parent=5 // pred_region
      %s190 = ssub.s32 %s9, 1
      %p191 = scmp.lt.s32.totalorder %s19, 1
      %s192 = scalar_select %p191, %s19, 1
      %p193 = scmp.lt.s32.totalorder %s21, 0
      %s194 = scalar_select %p193, %s21, 0
      %s195 = smul.addr %s192, 54
      %s196 = sadd.s32 %s194, %s195
      %s197 = smul.addr %s196, 8
      %s198 = scalar_lea.vmem %s0, %s197
      %p199 = pneg %p56
      %p200 = pneg %p53
      %p201 = scmp.lt.s32.totalorder %s21, 0
      %s202 = scalar_select %p201, %s21, 0
      %p203 = scmp.lt.s32.totalorder %s20, 0
      %s204 = scalar_select %p203, %s20, 0
      %s205 = sadd.s32 %s204, %s202
      %s206 = smul.addr %s205, 4
      %s207 = scalar_lea.vmem %s1, %s206
      %p208 = pneg %p84
      %p209 = pneg %p81
      %p210 = scmp.lt.s32.totalorder %s20, 0
      %s211 = scalar_select %p210, %s20, 0
      %s212 = scalar_lea.vmem %s2, %s211
      %p213 = pneg %p110
      %p214 = pneg %p107
      %p215 = pneg %p138
      %p216 = pneg %p135
      %p217 = scmp.lt.s32.totalorder %s19, 1
      %s218 = scalar_select %p217, %s19, 1
      %p219 = scmp.lt.s32.totalorder %s20, 0
      %s220 = scalar_select %p219, %s20, 0
      %s221 = smul.addr %s218, 32
      %s222 = sadd.s32 %s220, %s221
      %s223 = smul.addr %s222, 8
      %s224 = scalar_lea.vmem %s3, %s223
      %p225 = scmp.lt.s32.totalorder %s19, 1
      %s226 = scalar_select %p225, %s19, 1
      %p227 = scmp.lt.s32.totalorder %s21, 0
      %s228 = scalar_select %p227, %s21, 0
      %s229 = smul.addr %s226, 54
      %s230 = sadd.s32 %s228, %s229
      %s231 = smul.addr %s230, 8
      %s232 = scalar_lea.vmem %s0, %s231
      %p233 = scmp.lt.s32.totalorder %s21, 0
      %s234 = scalar_select %p233, %s21, 0
      %p235 = scmp.lt.s32.totalorder %s20, 0
      %s236 = scalar_select %p235, %s20, 0
      %s237 = sadd.s32 %s236, %s234
      %s238 = smul.addr %s237, 4
      %s239 = scalar_lea.vmem %s1, %s238
      %p240 = scmp.lt.s32.totalorder %s20, 0
      %s241 = scalar_select %p240, %s20, 0
      %s242 = scalar_lea.vmem %s2, %s241
      %p243 = scmp.lt.s32.totalorder %s19, 1
      %s244 = scalar_select %p243, %s19, 1
      %p245 = scmp.lt.s32.totalorder %s20, 0
      %s246 = scalar_select %p245, %s20, 0
      %s247 = smul.addr %s244, 32
      %s248 = sadd.s32 %s246, %s247
      %s249 = smul.addr %s248, 8
      %s250 = scalar_lea.vmem %s3, %s249
      %p251 = scmp.eq.s32.totalorder %s21, 0
      // Predicated region
      $region33: #{tpu_custom_call.1} parent=31 // pred_check
        %p252 = pneg %p251
      $region34: #{tpu_custom_call.1} parent=31 // pred_check_branch
        %254 = sbr.rel (%p252) target = $region36
      $region35: #{tpu_custom_call.1} parent=31 // pred_region
        %vm255 = vcmask 64512
        %256 = vst.msk [vmem:[#allocation2] sm:$0xff] %vm255, 0.0
        %257 = vst.msk [vmem:[#allocation2 + $0x8] sm:$0xff] %vm255, 0.0
        %258 = vst.msk [vmem:[#allocation2 + $0x10] sm:$0xff] %vm255, 0.0
        %259 = vst.msk [vmem:[#allocation2 + $0x18] sm:$0xff] %vm255, 0.0
        %260 = vst.msk [vmem:[#allocation2 + $0x20] sm:$0xff] %vm255, 0.0
        %261 = vst.msk [vmem:[#allocation2 + $0x28] sm:$0xff] %vm255, 0.0
        %262 = vst.msk [vmem:[#allocation2 + $0x30] sm:$0xff] %vm255, 0.0
        %263 = vst.msk [vmem:[#allocation2 + $0x38] sm:$0xff] %vm255, 0.0
        %264 = vst.msk [vmem:[#allocation2 + $0x40] sm:$0xff] %vm255, 0.0
        %265 = vst.msk [vmem:[#allocation2 + $0x48] sm:$0xff] %vm255, 0.0
        %266 = vst.msk [vmem:[#allocation2 + $0x50] sm:$0xff] %vm255, 0.0
        %267 = vst.msk [vmem:[#allocation2 + $0x58] sm:$0xff] %vm255, 0.0
        %268 = vst.msk [vmem:[#allocation2 + $0x60] sm:$0xff] %vm255, 0.0
        %269 = vst.msk [vmem:[#allocation2 + $0x68] sm:$0xff] %vm255, 0.0
        %270 = vst.msk [vmem:[#allocation2 + $0x70] sm:$0xff] %vm255, 0.0
        %271 = vst.msk [vmem:[#allocation2 + $0x78] sm:$0xff] %vm255, 0.0
        %272 = vst.msk [vmem:[#allocation2 + $0x80] sm:$0xff] %vm255, 0.0
        %273 = vst.msk [vmem:[#allocation2 + $0x88] sm:$0xff] %vm255, 0.0
        %274 = vst.msk [vmem:[#allocation2 + $0x90] sm:$0xff] %vm255, 0.0
        %275 = vst.msk [vmem:[#allocation2 + $0x98] sm:$0xff] %vm255, 0.0
        %276 = vst.msk [vmem:[#allocation2 + $0xa0] sm:$0xff] %vm255, 0.0
        %277 = vst.msk [vmem:[#allocation2 + $0xa8] sm:$0xff] %vm255, 0.0
        %278 = vst.msk [vmem:[#allocation2 + $0xb0] sm:$0xff] %vm255, 0.0
        %279 = vst.msk [vmem:[#allocation2 + $0xb8] sm:$0xff] %vm255, 0.0
        %280 = vst.msk [vmem:[#allocation2 + $0xc0] sm:$0xff] %vm255, 0.0
        %281 = vst.msk [vmem:[#allocation2 + $0xc8] sm:$0xff] %vm255, 0.0
        %282 = vst.msk [vmem:[#allocation2 + $0xd0] sm:$0xff] %vm255, 0.0
        %283 = vst.msk [vmem:[#allocation2 + $0xd8] sm:$0xff] %vm255, 0.0
        %284 = vst.msk [vmem:[#allocation2 + $0xe0] sm:$0xff] %vm255, 0.0
        %285 = vst.msk [vmem:[#allocation2 + $0xe8] sm:$0xff] %vm255, 0.0
        %286 = vst.msk [vmem:[#allocation2 + $0xf0] sm:$0xff] %vm255, 0.0
        %287 = vst.msk [vmem:[#allocation2 + $0xf8] sm:$0xff] %vm255, 0.0
      $region36: #{tpu_custom_call.1} parent=31 // pred_fallthru
        _
      %v288 = vld [vmem:[%s232] sm:$0xff]
      %v289 = vld [vmem:[%s232 + $0x8] sm:$0xff]
      %v290 = vld [vmem:[%s232 + $0x10] sm:$0x3]
      %v291 = vld [vmem:[%s232 + $0x18] sm:$0xff]
      %v292 = vld [vmem:[%s232 + $0x20] sm:$0xff]
      %v293 = vld [vmem:[%s232 + $0x28] sm:$0x3]
      %v294 = vld [vmem:[%s232 + $0x30] sm:$0xff]
      %v295 = vld [vmem:[%s232 + $0x38] sm:$0xff]
      %v296 = vld [vmem:[%s232 + $0x40] sm:$0x3]
      %v297 = vld [vmem:[%s232 + $0x48] sm:$0xff]
      %v298 = vld [vmem:[%s232 + $0x50] sm:$0xff]
      %v299 = vld [vmem:[%s232 + $0x58] sm:$0x3]
      %v300 = vld [vmem:[%s232 + $0x60] sm:$0xff]
      %v301 = vld [vmem:[%s232 + $0x68] sm:$0xff]
      %v302 = vld [vmem:[%s232 + $0x70] sm:$0x3]
      %v303 = vld [vmem:[%s232 + $0x78] sm:$0xff]
      %v304 = vld [vmem:[%s232 + $0x80] sm:$0xff]
      %v305 = vld [vmem:[%s232 + $0x88] sm:$0x3]
      %v306 = vld [vmem:[%s232 + $0x90] sm:$0xff]
      %v307 = vld [vmem:[%s232 + $0x98] sm:$0xff]
      %v308 = vld [vmem:[%s232 + $0xa0] sm:$0x3]
      %v309 = vld [vmem:[%s232 + $0xa8] sm:$0xff]
      %v310 = vld [vmem:[%s232 + $0xb0] sm:$0xff]
      %v311 = vld [vmem:[%s232 + $0xb8] sm:$0x3]
      %v312 = vld [vmem:[%s232 + $0xc0] sm:$0xff]
      %v313 = vld [vmem:[%s232 + $0xc8] sm:$0xff]
      %v314 = vld [vmem:[%s232 + $0xd0] sm:$0x3]
      %v315 = vld [vmem:[%s232 + $0xd8] sm:$0xff]
      %v316 = vld [vmem:[%s232 + $0xe0] sm:$0xff]
      %v317 = vld [vmem:[%s232 + $0xe8] sm:$0x3]
      %v318 = vld [vmem:[%s232 + $0xf0] sm:$0xff]
      %v319 = vld [vmem:[%s232 + $0xf8] sm:$0xff]
      %v320 = vld [vmem:[%s232 + $0x100] sm:$0x3]
      %v321 = vld [vmem:[%s232 + $0x108] sm:$0xff]
      %v322 = vld [vmem:[%s232 + $0x110] sm:$0xff]
      %v323 = vld [vmem:[%s232 + $0x118] sm:$0x3]
      %v324 = vld [vmem:[%s232 + $0x120] sm:$0xff]
      %v325 = vld [vmem:[%s232 + $0x128] sm:$0xff]
      %v326 = vld [vmem:[%s232 + $0x130] sm:$0x3]
      %v327 = vld [vmem:[%s232 + $0x138] sm:$0xff]
      %v328 = vld [vmem:[%s232 + $0x140] sm:$0xff]
      %v329 = vld [vmem:[%s232 + $0x148] sm:$0x3]
      %v330 = vld [vmem:[%s232 + $0x150] sm:$0xff]
      %v331 = vld [vmem:[%s232 + $0x158] sm:$0xff]
      %v332 = vld [vmem:[%s232 + $0x160] sm:$0x3]
      %v333 = vld [vmem:[%s232 + $0x168] sm:$0xff]
      %v334 = vld [vmem:[%s232 + $0x170] sm:$0xff]
      %v335 = vld [vmem:[%s232 + $0x178] sm:$0x3]
      %v336 = vld [vmem:[%s232 + $0x180] sm:$0xff]
      %v337 = vld [vmem:[%s232 + $0x188] sm:$0xff]
      %v338 = vld [vmem:[%s232 + $0x190] sm:$0x3]
      %v339 = vld [vmem:[%s232 + $0x198] sm:$0xff]
      %v340 = vld [vmem:[%s232 + $0x1a0] sm:$0xff]
      %v341 = vld [vmem:[%s232 + $0x1a8] sm:$0x3]
      %v342 = vld [vmem:[#allocation2] sm:$0xff]
      %v343 = vld [vmem:[#allocation2 + $0x8] sm:$0xff]
      %v344 = vld [vmem:[#allocation2 + $0x10] sm:$0xff]
      %v345 = vld [vmem:[#allocation2 + $0x18] sm:$0xff]
      %v346 = vld [vmem:[#allocation2 + $0x20] sm:$0xff]
      %v347 = vld [vmem:[#allocation2 + $0x28] sm:$0xff]
      %v348 = vld [vmem:[#allocation2 + $0x30] sm:$0xff]
      %v349 = vld [vmem:[#allocation2 + $0x38] sm:$0xff]
      %v350 = vld [vmem:[#allocation2 + $0x40] sm:$0xff]
      %v351 = vld [vmem:[#allocation2 + $0x48] sm:$0xff]
      %v352 = vld [vmem:[#allocation2 + $0x50] sm:$0xff]
      %v353 = vld [vmem:[#allocation2 + $0x58] sm:$0xff]
      %v354 = vld [vmem:[#allocation2 + $0x60] sm:$0xff]
      %v355 = vld [vmem:[#allocation2 + $0x68] sm:$0xff]
      %v356 = vld [vmem:[#allocation2 + $0x70] sm:$0xff]
      %v357 = vld [vmem:[#allocation2 + $0x78] sm:$0xff]
      %v358 = vld [vmem:[#allocation2 + $0x80] sm:$0xff]
      %v359 = vld [vmem:[#allocation2 + $0x88] sm:$0xff]
      %v360 = vld [vmem:[#allocation2 + $0x90] sm:$0xff]
      %v361 = vld [vmem:[#allocation2 + $0x98] sm:$0xff]
      %v362 = vld [vmem:[#allocation2 + $0xa0] sm:$0xff]
      %v363 = vld [vmem:[#allocation2 + $0xa8] sm:$0xff]
      %v364 = vld [vmem:[#allocation2 + $0xb0] sm:$0xff]
      %v365 = vld [vmem:[#allocation2 + $0xb8] sm:$0xff]
      %v366 = vld [vmem:[#allocation2 + $0xc0] sm:$0xff]
      %v367 = vld [vmem:[#allocation2 + $0xc8] sm:$0xff]
      %v368 = vld [vmem:[#allocation2 + $0xd0] sm:$0xff]
      %v369 = vld [vmem:[#allocation2 + $0xd8] sm:$0xff]
      %v370 = vld [vmem:[#allocation2 + $0xe0] sm:$0xff]
      %v371 = vld [vmem:[#allocation2 + $0xe8] sm:$0xff]
      %v372 = vld [vmem:[#allocation2 + $0xf0] sm:$0xff]
      %v373 = vld [vmem:[#allocation2 + $0xf8] sm:$0xff]
      %v374 = vld [vmem:[%s239] sm:$0xf]
      %vm375 = vcmask 31744
      %v377 = vsel %vm375, %v288, 0
      %v380 = vsel %vm375, %v289, 0
      %v383 = vsel %vm375, %v291, 0
      %v386 = vsel %vm375, %v292, 0
      %v389 = vsel %vm375, %v294, 0
      %v392 = vsel %vm375, %v295, 0
      %v395 = vsel %vm375, %v297, 0
      %v398 = vsel %vm375, %v298, 0
      %v401 = vsel %vm375, %v300, 0
      %v404 = vsel %vm375, %v301, 0
      %v407 = vsel %vm375, %v303, 0
      %v410 = vsel %vm375, %v304, 0
      %v413 = vsel %vm375, %v306, 0
      %v416 = vsel %vm375, %v307, 0
      %v419 = vsel %vm375, %v309, 0
      %v422 = vsel %vm375, %v310, 0
      %v425 = vsel %vm375, %v312, 0
      %v428 = vsel %vm375, %v313, 0
      %v431 = vsel %vm375, %v315, 0
      %v434 = vsel %vm375, %v316, 0
      %v437 = vsel %vm375, %v318, 0
      %v440 = vsel %vm375, %v319, 0
      %v443 = vsel %vm375, %v321, 0
      %v446 = vsel %vm375, %v322, 0
      %v449 = vsel %vm375, %v324, 0
      %v452 = vsel %vm375, %v325, 0
      %v455 = vsel %vm375, %v327, 0
      %v458 = vsel %vm375, %v328, 0
      %v461 = vsel %vm375, %v330, 0
      %v464 = vsel %vm375, %v331, 0
      %v467 = vsel %vm375, %v333, 0
      %v470 = vsel %vm375, %v334, 0
      %vm472 = vcmask 1043456
      %v474 = vsel %vm472, %v374, 0
      %476 = vmatprep.subr.mxu0 0.0
      %477 = vmatpush1.msra.mxu0 %v474
      %478 = vmatprep.subr.mxu0 0.0
      %479 = vmatpush1.msra.mxu0 0.0
      %480 = vmatprep.subr.mxu0 0.0
      %481 = vmatpush1.msra.mxu0 0.0
      %482 = vmatprep.subr.mxu0 0.0
      %483 = vmatpush1.msra.mxu0 0.0
      %484 = vmatprep.subr.mxu0 0.0
      %485 = vmatpush1.msra.mxu0 0.0
      %486 = vmatprep.subr.mxu0 0.0
      %487 = vmatpush1.msra.mxu0 0.0
      %488 = vmatprep.subr.mxu0 0.0
      %489 = vmatpush1.msra.mxu0 0.0
      %490 = vmatprep.subr.mxu0 0.0
      %491 = vmatpush1.msra.mxu0 0.0
      %492 = vmatprep.subr.mxu0 0.0
      %493 = vmatpush1.msra.mxu0 0.0
      %494 = vmatprep.subr.mxu0 0.0
      %495 = vmatpush1.msra.mxu0 0.0
      %496 = vmatprep.subr.mxu0 0.0
      %497 = vmatpush1.msra.mxu0 0.0
      %498 = vmatprep.subr.mxu0 0.0
      %499 = vmatpush1.msra.mxu0 0.0
      %500 = vmatprep.subr.mxu0 0.0
      %501 = vmatpush1.msra.mxu0 0.0
      %502 = vmatprep.subr.mxu0 0.0
      %503 = vmatpush1.msra.mxu0 0.0
      %504 = vmatprep.subr.mxu0 0.0
      %505 = vmatpush1.msra.mxu0 0.0
      %506 = vmatprep.subr.mxu0 0.0
      %507 = vmatpush1.msra.mxu0 0.0
      %508 = vmatprep.subr.mxu0 0.0
      %509 = vmatpush1.msra.mxu0 0.0
      %510 = vmatprep.subr.mxu0 0.0
      %511 = vmatpush1.msra.mxu0 0.0
      %512 = vmatprep.subr.mxu0 0.0
      %513 = vmatpush1.msra.mxu0 0.0
      %514 = vmatprep.subr.mxu0 0.0
      %515 = vmatpush1.msra.mxu0 0.0
      %516 = vmatprep.subr.mxu0 0.0
      %517 = vmatpush1.msra.mxu0 0.0
      %518 = vmatprep.subr.mxu0 0.0
      %519 = vmatpush1.msra.mxu0 0.0
      %520 = vmatprep.subr.mxu0 0.0
      %521 = vmatpush1.msra.mxu0 0.0
      %522 = vmatprep.subr.mxu0 0.0
      %523 = vmatpush1.msra.mxu0 0.0
      %524 = vmatprep.subr.mxu0 0.0
      %525 = vmatpush1.msra.mxu0 0.0
      %526 = vmatprep.subr.mxu0 0.0
      %527 = vmatpush1.msra.mxu0 0.0
      %528 = vmatprep.subr.mxu0 0.0
      %529 = vmatpush1.msra.mxu0 0.0
      %530 = vmatprep.subr.mxu0 0.0
      %531 = vmatpush1.msra.mxu0 0.0
      %532 = vmatprep.subr.mxu0 0.0
      %533 = vmatpush1.msra.mxu0 0.0
      %534 = vmatprep.subr.mxu0 0.0
      %535 = vmatpush1.msra.mxu0 0.0
      %536 = vmatprep.subr.mxu0 0.0
      %537 = vmatpush1.msra.mxu0 0.0
      %538 = vmatprep.subr.mxu0 0.0
      %539 = vmatpush1.msra.mxu0 0.0
      %540 = vmatprep.mubr.f32.mxu0 0.0
      %541 = vmatmul.mubr.f32.gmra.mrb[0].mxu0 %v377
      %v542 = vpop.f32.mrb[0].mxu0
      %v543 = vadd.f32 0.0, %v542
      %v544 = vpop.f32.mrb[0].mxu0
      %545 = vmatprep.mubr.f32.mxu0 0.0
      %546 = vmatmul.mubr.f32.gmra.mrb[0].mxu0 %v380
      %v547 = vpop.f32.mrb[0].mxu0
      %v548 = vadd.f32 0.0, %v547
      %v549 = vpop.f32.mrb[0].mxu0
      %550 = vmatprep.mubr.f32.mxu0 0.0
      %551 = vmatmul.mubr.f32.gmra.mrb[0].mxu0 %v383
      %v552 = vpop.f32.mrb[0].mxu0
      %v553 = vadd.f32 0.0, %v552
      %v554 = vpop.f32.mrb[0].mxu0
      %555 = vmatprep.mubr.f32.mxu0 0.0
      %556 = vmatmul.mubr.f32.gmra.mrb[0].mxu0 %v386
      %v557 = vpop.f32.mrb[0].mxu0
      %v558 = vadd.f32 0.0, %v557
      %v559 = vpop.f32.mrb[0].mxu0
      %560 = vmatprep.mubr.f32.mxu0 0.0
      %561 = vmatmul.mubr.f32.gmra.mrb[0].mxu0 %v389
      %v562 = vpop.f32.mrb[0].mxu0
      %v563 = vadd.f32 0.0, %v562
      %v564 = vpop.f32.mrb[0].mxu0
      %565 = vmatprep.mubr.f32.mxu0 0.0
      %566 = vmatmul.mubr.f32.gmra.mrb[0].mxu0 %v392
      %v567 = vpop.f32.mrb[0].mxu0
      %v568 = vadd.f32 0.0, %v567
      %v569 = vpop.f32.mrb[0].mxu0
      %570 = vmatprep.mubr.f32.mxu0 0.0
      %571 = vmatmul.mubr.f32.gmra.mrb[0].mxu0 %v395
      %v572 = vpop.f32.mrb[0].mxu0
      %v573 = vadd.f32 0.0, %v572
      %v574 = vpop.f32.mrb[0].mxu0
      %575 = vmatprep.mubr.f32.mxu0 0.0
      %576 = vmatmul.mubr.f32.gmra.mrb[0].mxu0 %v398
      %v577 = vpop.f32.mrb[0].mxu0
      %v578 = vadd.f32 0.0, %v577
      %v579 = vpop.f32.mrb[0].mxu0
      %580 = vmatprep.mubr.f32.mxu0 0.0
      %581 = vmatmul.mubr.f32.gmra.mrb[0].mxu0 %v401
      %v582 = vpop.f32.mrb[0].mxu0
      %v583 = vadd.f32 0.0, %v582
      %v584 = vpop.f32.mrb[0].mxu0
      %585 = vmatprep.mubr.f32.mxu0 0.0
      %586 = vmatmul.mubr.f32.gmra.mrb[0].mxu0 %v404
      %v587 = vpop.f32.mrb[0].mxu0
      %v588 = vadd.f32 0.0, %v587
      %v589 = vpop.f32.mrb[0].mxu0
      %590 = vmatprep.mubr.f32.mxu0 0.0
      %591 = vmatmul.mubr.f32.gmra.mrb[0].mxu0 %v407
      %v592 = vpop.f32.mrb[0].mxu0
      %v593 = vadd.f32 0.0, %v592
      %v594 = vpop.f32.mrb[0].mxu0
      %595 = vmatprep.mubr.f32.mxu0 0.0
      %596 = vmatmul.mubr.f32.gmra.mrb[0].mxu0 %v410
      %v597 = vpop.f32.mrb[0].mxu0
      %v598 = vadd.f32 0.0, %v597
      %v599 = vpop.f32.mrb[0].mxu0
      %600 = vmatprep.mubr.f32.mxu0 0.0
      %601 = vmatmul.mubr.f32.gmra.mrb[0].mxu0 %v413
      %v602 = vpop.f32.mrb[0].mxu0
      %v603 = vadd.f32 0.0, %v602
      %v604 = vpop.f32.mrb[0].mxu0
      %605 = vmatprep.mubr.f32.mxu0 0.0
      %606 = vmatmul.mubr.f32.gmra.mrb[0].mxu0 %v416
      %v607 = vpop.f32.mrb[0].mxu0
      %v608 = vadd.f32 0.0, %v607
      %v609 = vpop.f32.mrb[0].mxu0
      %610 = vmatprep.mubr.f32.mxu0 0.0
      %611 = vmatmul.mubr.f32.gmra.mrb[0].mxu0 %v419
      %v612 = vpop.f32.mrb[0].mxu0
      %v613 = vadd.f32 0.0, %v612
      %v614 = vpop.f32.mrb[0].mxu0
      %615 = vmatprep.mubr.f32.mxu0 0.0
      %616 = vmatmul.mubr.f32.gmra.mrb[0].mxu0 %v422
      %v617 = vpop.f32.mrb[0].mxu0
      %v618 = vadd.f32 0.0, %v617
      %v619 = vpop.f32.mrb[0].mxu0
      %620 = vmatprep.mubr.f32.mxu0 0.0
      %621 = vmatmul.mubr.f32.gmra.mrb[0].mxu0 %v425
      %v622 = vpop.f32.mrb[0].mxu0
      %v623 = vadd.f32 0.0, %v622
      %v624 = vpop.f32.mrb[0].mxu0
      %625 = vmatprep.mubr.f32.mxu0 0.0
      %626 = vmatmul.mubr.f32.gmra.mrb[0].mxu0 %v428
      %v627 = vpop.f32.mrb[0].mxu0
      %v628 = vadd.f32 0.0, %v627
      %v629 = vpop.f32.mrb[0].mxu0
      %630 = vmatprep.mubr.f32.mxu0 0.0
      %631 = vmatmul.mubr.f32.gmra.mrb[0].mxu0 %v431
      %v632 = vpop.f32.mrb[0].mxu0
      %v633 = vadd.f32 0.0, %v632
      %v634 = vpop.f32.mrb[0].mxu0
      %635 = vmatprep.mubr.f32.mxu0 0.0
      %636 = vmatmul.mubr.f32.gmra.mrb[0].mxu0 %v434
      %v637 = vpop.f32.mrb[0].mxu0
      %v638 = vadd.f32 0.0, %v637
      %v639 = vpop.f32.mrb[0].mxu0
      %640 = vmatprep.mubr.f32.mxu0 0.0
      %641 = vmatmul.mubr.f32.gmra.mrb[0].mxu0 %v437
      %v642 = vpop.f32.mrb[0].mxu0
      %v643 = vadd.f32 0.0, %v642
      %v644 = vpop.f32.mrb[0].mxu0
      %645 = vmatprep.mubr.f32.mxu0 0.0
      %646 = vmatmul.mubr.f32.gmra.mrb[0].mxu0 %v440
      %v647 = vpop.f32.mrb[0].mxu0
      %v648 = vadd.f32 0.0, %v647
      %v649 = vpop.f32.mrb[0].mxu0
      %650 = vmatprep.mubr.f32.mxu0 0.0
      %651 = vmatmul.mubr.f32.gmra.mrb[0].mxu0 %v443
      %v652 = vpop.f32.mrb[0].mxu0
      %v653 = vadd.f32 0.0, %v652
      %v654 = vpop.f32.mrb[0].mxu0
      %655 = vmatprep.mubr.f32.mxu0 0.0
      %656 = vmatmul.mubr.f32.gmra.mrb[0].mxu0 %v446
      %v657 = vpop.f32.mrb[0].mxu0
      %v658 = vadd.f32 0.0, %v657
      %v659 = vpop.f32.mrb[0].mxu0
      %660 = vmatprep.mubr.f32.mxu0 0.0
      %661 = vmatmul.mubr.f32.gmra.mrb[0].mxu0 %v449
      %v662 = vpop.f32.mrb[0].mxu0
      %v663 = vadd.f32 0.0, %v662
      %v664 = vpop.f32.mrb[0].mxu0
      %665 = vmatprep.mubr.f32.mxu0 0.0
      %666 = vmatmul.mubr.f32.gmra.mrb[0].mxu0 %v452
      %v667 = vpop.f32.mrb[0].mxu0
      %v668 = vadd.f32 0.0, %v667
      %v669 = vpop.f32.mrb[0].mxu0
      %670 = vmatprep.mubr.f32.mxu0 0.0
      %671 = vmatmul.mubr.f32.gmra.mrb[0].mxu0 %v455
      %v672 = vpop.f32.mrb[0].mxu0
      %v673 = vadd.f32 0.0, %v672
      %v674 = vpop.f32.mrb[0].mxu0
      %675 = vmatprep.mubr.f32.mxu0 0.0
      %676 = vmatmul.mubr.f32.gmra.mrb[0].mxu0 %v458
      %v677 = vpop.f32.mrb[0].mxu0
      %v678 = vadd.f32 0.0, %v677
      %v679 = vpop.f32.mrb[0].mxu0
      %680 = vmatprep.mubr.f32.mxu0 0.0
      %681 = vmatmul.mubr.f32.gmra.mrb[0].mxu0 %v461
      %v682 = vpop.f32.mrb[0].mxu0
      %v683 = vadd.f32 0.0, %v682
      %v684 = vpop.f32.mrb[0].mxu0
      %685 = vmatprep.mubr.f32.mxu0 0.0
      %686 = vmatmul.mubr.f32.gmra.mrb[0].mxu0 %v464
      %v687 = vpop.f32.mrb[0].mxu0
      %v688 = vadd.f32 0.0, %v687
      %v689 = vpop.f32.mrb[0].mxu0
      %690 = vmatprep.mubr.f32.mxu0 0.0
      %691 = vmatmul.mubr.f32.gmra.mrb[0].mxu0 %v467
      %v692 = vpop.f32.mrb[0].mxu0
      %v693 = vadd.f32 0.0, %v692
      %v694 = vpop.f32.mrb[0].mxu0
      %695 = vmatprep.mubr.f32.mxu0 0.0
      %696 = vmatmul.mubr.f32.gmra.mrb[0].mxu0 %v470
      %v697 = vpop.f32.mrb[0].mxu0
      %v698 = vadd.f32 0.0, %v697
      %v699 = vpop.f32.mrb[0].mxu0
      %700 = vdwg.mxu0
      %v701 = vadd.f32 %v342, %v543
      %v702 = vadd.f32 %v343, %v548
      %v703 = vadd.f32 %v344, %v553
      %v704 = vadd.f32 %v345, %v558
      %v705 = vadd.f32 %v346, %v563
      %v706 = vadd.f32 %v347, %v568
      %v707 = vadd.f32 %v348, %v573
      %v708 = vadd.f32 %v349, %v578
      %v709 = vadd.f32 %v350, %v583
      %v710 = vadd.f32 %v351, %v588
      %v711 = vadd.f32 %v352, %v593
      %v712 = vadd.f32 %v353, %v598
      %v713 = vadd.f32 %v354, %v603
      %v714 = vadd.f32 %v355, %v608
      %v715 = vadd.f32 %v356, %v613
      %v716 = vadd.f32 %v357, %v618
      %v717 = vadd.f32 %v358, %v623
      %v718 = vadd.f32 %v359, %v628
      %v719 = vadd.f32 %v360, %v633
      %v720 = vadd.f32 %v361, %v638
      %v721 = vadd.f32 %v362, %v643
      %v722 = vadd.f32 %v363, %v648
      %v723 = vadd.f32 %v364, %v653
      %v724 = vadd.f32 %v365, %v658
      %v725 = vadd.f32 %v366, %v663
      %v726 = vadd.f32 %v367, %v668
      %v727 = vadd.f32 %v368, %v673
      %v728 = vadd.f32 %v369, %v678
      %v729 = vadd.f32 %v370, %v683
      %v730 = vadd.f32 %v371, %v688
      %v731 = vadd.f32 %v372, %v693
      %v732 = vadd.f32 %v373, %v698
      %vm749 = vcmask 1046528
      %v750 = vrot.slane %v288, 1
      %v751 = vrot.slane %v289, 1
      %v752 = vsel %vm749, %v750, %v751
      %v753 = vrot.slane %v290, 1
      %v754 = vsel %vm749, %v751, %v753
      %v755 = vrot.slane %v291, 1
      %v756 = vrot.slane %v292, 1
      %v757 = vsel %vm749, %v755, %v756
      %v758 = vrot.slane %v293, 1
      %v759 = vsel %vm749, %v756, %v758
      %v760 = vrot.slane %v294, 1
      %v761 = vrot.slane %v295, 1
      %v762 = vsel %vm749, %v760, %v761
      %v763 = vrot.slane %v296, 1
      %v764 = vsel %vm749, %v761, %v763
      %v765 = vrot.slane %v297, 1
      %v766 = vrot.slane %v298, 1
      %v767 = vsel %vm749, %v765, %v766
      %v768 = vrot.slane %v299, 1
      %v769 = vsel %vm749, %v766, %v768
      %v770 = vrot.slane %v300, 1
      %v771 = vrot.slane %v301, 1
      %v772 = vsel %vm749, %v770, %v771
      %v773 = vrot.slane %v302, 1
      %v774 = vsel %vm749, %v771, %v773
      %v775 = vrot.slane %v303, 1
      %v776 = vrot.slane %v304, 1
      %v777 = vsel %vm749, %v775, %v776
      %v778 = vrot.slane %v305, 1
      %v779 = vsel %vm749, %v776, %v778
      %v780 = vrot.slane %v306, 1
      %v781 = vrot.slane %v307, 1
      %v782 = vsel %vm749, %v780, %v781
      %v783 = vrot.slane %v308, 1
      %v784 = vsel %vm749, %v781, %v783
      %v785 = vrot.slane %v309, 1
      %v786 = vrot.slane %v310, 1
      %v787 = vsel %vm749, %v785, %v786
      %v788 = vrot.slane %v311, 1
      %v789 = vsel %vm749, %v786, %v788
      %v790 = vrot.slane %v312, 1
      %v791 = vrot.slane %v313, 1
      %v792 = vsel %vm749, %v790, %v791
      %v793 = vrot.slane %v314, 1
      %v794 = vsel %vm749, %v791, %v793
      %v795 = vrot.slane %v315, 1
      %v796 = vrot.slane %v316, 1
      %v797 = vsel %vm749, %v795, %v796
      %v798 = vrot.slane %v317, 1
      %v799 = vsel %vm749, %v796, %v798
      %v800 = vrot.slane %v318, 1
      %v801 = vrot.slane %v319, 1
      %v802 = vsel %vm749, %v800, %v801
      %v803 = vrot.slane %v320, 1
      %v804 = vsel %vm749, %v801, %v803
      %v805 = vrot.slane %v321, 1
      %v806 = vrot.slane %v322, 1
      %v807 = vsel %vm749, %v805, %v806
      %v808 = vrot.slane %v323, 1
      %v809 = vsel %vm749, %v806, %v808
      %v810 = vrot.slane %v324, 1
      %v811 = vrot.slane %v325, 1
      %v812 = vsel %vm749, %v810, %v811
      %v813 = vrot.slane %v326, 1
      %v814 = vsel %vm749, %v811, %v813
      %v815 = vrot.slane %v327, 1
      %v816 = vrot.slane %v328, 1
      %v817 = vsel %vm749, %v815, %v816
      %v818 = vrot.slane %v329, 1
      %v819 = vsel %vm749, %v816, %v818
      %v820 = vrot.slane %v330, 1
      %v821 = vrot.slane %v331, 1
      %v822 = vsel %vm749, %v820, %v821
      %v823 = vrot.slane %v332, 1
      %v824 = vsel %vm749, %v821, %v823
      %v825 = vrot.slane %v333, 1
      %v826 = vrot.slane %v334, 1
      %v827 = vsel %vm749, %v825, %v826
      %v828 = vrot.slane %v335, 1
      %v829 = vsel %vm749, %v826, %v828
      %s830 = scalar_lea.vmem %s239, 4
      %v831 = vld [vmem:[%s830] sm:$0xf]
      %v832 = vsel %vm375, %v752, 0
      %v834 = vsel %vm375, %v754, 0
      %v836 = vsel %vm375, %v757, 0
      %v838 = vsel %vm375, %v759, 0
      %v840 = vsel %vm375, %v762, 0
      %v842 = vsel %vm375, %v764, 0
      %v844 = vsel %vm375, %v767, 0
      %v846 = vsel %vm375, %v769, 0
      %v848 = vsel %vm375, %v772, 0
      %v850 = vsel %vm375, %v774, 0
      %v852 = vsel %vm375, %v777, 0
      %v854 = vsel %vm375, %v779, 0
      %v856 = vsel %vm375, %v782, 0
      %v858 = vsel %vm375, %v784, 0
      %v860 = vsel %vm375, %v787, 0
      %v862 = vsel %vm375, %v789, 0
      %v864 = vsel %vm375, %v792, 0
      %v866 = vsel %vm375, %v794, 0
      %v868 = vsel %vm375, %v797, 0
      %v870 = vsel %vm375, %v799, 0
      %v872 = vsel %vm375, %v802, 0
      %v874 = vsel %vm375, %v804, 0
      %v876 = vsel %vm375, %v807, 0
      %v878 = vsel %vm375, %v809, 0
      %v880 = vsel %vm375, %v812, 0
      %v882 = vsel %vm375, %v814, 0
      %v884 = vsel %vm375, %v817, 0
      %v886 = vsel %vm375, %v819, 0
      %v888 = vsel %vm375, %v822, 0
      %v890 = vsel %vm375, %v824, 0
      %v892 = vsel %vm375, %v827, 0
      %v894 = vsel %vm375, %v829, 0
      %v897 = vsel %vm472, %v831, 0
      %899 = vmatprep.subr.mxu0 0.0
      %900 = vmatpush1.msra.mxu0 %v897
      %901 = vmatprep.subr.mxu0 0.0
      %902 = vmatpush1.msra.mxu0 0.0
      %903 = vmatprep.subr.mxu0 0.0
      %904 = vmatpush1.msra.mxu0 0.0
      %905 = vmatprep.subr.mxu0 0.0
      %906 = vmatpush1.msra.mxu0 0.0
      %907 = vmatprep.subr.mxu0 0.0
      %908 = vmatpush1.msra.mxu0 0.0
      %909 = vmatprep.subr.mxu0 0.0
      %910 = vmatpush1.msra.mxu0 0.0
      %911 = vmatprep.subr.mxu0 0.0
      %912 = vmatpush1.msra.mxu0 0.0
      %913 = vmatprep.subr.mxu0 0.0
      %914 = vmatpush1.msra.mxu0 0.0
      %915 = vmatprep.subr.mxu0 0.0
      %916 = vmatpush1.msra.mxu0 0.0
      %917 = vmatprep.subr.mxu0 0.0
      %918 = vmatpush1.msra.mxu0 0.0
      %919 = vmatprep.subr.mxu0 0.0
      %920 = vmatpush1.msra.mxu0 0.0
      %921 = vmatprep.subr.mxu0 0.0
      %922 = vmatpush1.msra.mxu0 0.0
      %923 = vmatprep.subr.mxu0 0.0
      %924 = vmatpush1.msra.mxu0 0.0
      %925 = vmatprep.subr.mxu0 0.0
      %926 = vmatpush1.msra.mxu0 0.0
      %927 = vmatprep.subr.mxu0 0.0
      %928 = vmatpush1.msra.mxu0 0.0
      %929 = vmatprep.subr.mxu0 0.0
      %930 = vmatpush1.msra.mxu0 0.0
      %931 = vmatprep.subr.mxu0 0.0
      %932 = vmatpush1.msra.mxu0 0.0
      %933 = vmatprep.subr.mxu0 0.0
      %934 = vmatpush1.msra.mxu0 0.0
      %935 = vmatprep.subr.mxu0 0.0
      %936 = vmatpush1.msra.mxu0 0.0
      %937 = vmatprep.subr.mxu0 0.0
      %938 = vmatpush1.msra.mxu0 0.0
      %939 = vmatprep.subr.mxu0 0.0
      %940 = vmatpush1.msra.mxu0 0.0
      %941 = vmatprep.subr.mxu0 0.0
      %942 = vmatpush1.msra.mxu0 0.0
      %943 = vmatprep.subr.mxu0 0.0
      %944 = vmatpush1.msra.mxu0 0.0
      %945 = vmatprep.subr.mxu0 0.0
      %946 = vmatpush1.msra.mxu0 0.0
      %947 = vmatprep.subr.mxu0 0.0
      %948 = vmatpush1.msra.mxu0 0.0
      %949 = vmatprep.subr.mxu0 0.0
      %950 = vmatpush1.msra.mxu0 0.0
      %951 = vmatprep.subr.mxu0 0.0
      %952 = vmatpush1.msra.mxu0 0.0
      %953 = vmatprep.subr.mxu0 0.0
      %954 = vmatpush1.msra.mxu0 0.0
      %955 = vmatprep.subr.mxu0 0.0
      %956 = vmatpush1.msra.mxu0 0.0
      %957 = vmatprep.subr.mxu0 0.0
      %958 = vmatpush1.msra.mxu0 0.0
      %959 = vmatprep.subr.mxu0 0.0
      %960 = vmatpush1.msra.mxu0 0.0
      %961 = vmatprep.subr.mxu0 0.0
      %962 = vmatpush1.msra.mxu0 0.0
      %963 = vmatprep.mubr.f32.mxu0 0.0
      %964 = vmatmul.mubr.f32.gmra.mrb[0].mxu0 %v832
      %v965 = vpop.f32.mrb[0].mxu0
      %v966 = vadd.f32 0.0, %v965
      %v967 = vpop.f32.mrb[0].mxu0
      %968 = vmatprep.mubr.f32.mxu0 0.0
      %969 = vmatmul.mubr.f32.gmra.mrb[0].mxu0 %v834
      %v970 = vpop.f32.mrb[0].mxu0
      %v971 = vadd.f32 0.0, %v970
      %v972 = vpop.f32.mrb[0].mxu0
      %973 = vmatprep.mubr.f32.mxu0 0.0
      %974 = vmatmul.mubr.f32.gmra.mrb[0].mxu0 %v836
      %v975 = vpop.f32.mrb[0].mxu0
      %v976 = vadd.f32 0.0, %v975
      %v977 = vpop.f32.mrb[0].mxu0
      %978 = vmatprep.mubr.f32.mxu0 0.0
      %979 = vmatmul.mubr.f32.gmra.mrb[0].mxu0 %v838
      %v980 = vpop.f32.mrb[0].mxu0
      %v981 = vadd.f32 0.0, %v980
      %v982 = vpop.f32.mrb[0].mxu0
      %983 = vmatprep.mubr.f32.mxu0 0.0
      %984 = vmatmul.mubr.f32.gmra.mrb[0].mxu0 %v840
      %v985 = vpop.f32.mrb[0].mxu0
      %v986 = vadd.f32 0.0, %v985
      %v987 = vpop.f32.mrb[0].mxu0
      %988 = vmatprep.mubr.f32.mxu0 0.0
      %989 = vmatmul.mubr.f32.gmra.mrb[0].mxu0 %v842
      %v990 = vpop.f32.mrb[0].mxu0
      %v991 = vadd.f32 0.0, %v990
      %v992 = vpop.f32.mrb[0].mxu0
      %993 = vmatprep.mubr.f32.mxu0 0.0
      %994 = vmatmul.mubr.f32.gmra.mrb[0].mxu0 %v844
      %v995 = vpop.f32.mrb[0].mxu0
      %v996 = vadd.f32 0.0, %v995
      %v997 = vpop.f32.mrb[0].mxu0
      %998 = vmatprep.mubr.f32.mxu0 0.0
      %999 = vmatmul.mubr.f32.gmra.mrb[0].mxu0 %v846
      %v1000 = vpop.f32.mrb[0].mxu0
      %v1001 = vadd.f32 0.0, %v1000
      %v1002 = vpop.f32.mrb[0].mxu0
      %1003 = vmatprep.mubr.f32.mxu0 0.0
      %1004 = vmatmul.mubr.f32.gmra.mrb[0].mxu0 %v848
      %v1005 = vpop.f32.mrb[0].mxu0
      %v1006 = vadd.f32 0.0, %v1005
      %v1007 = vpop.f32.mrb[0].mxu0
      %1008 = vmatprep.mubr.f32.mxu0 0.0
      %1009 = vmatmul.mubr.f32.gmra.mrb[0].mxu0 %v850
      %v1010 = vpop.f32.mrb[0].mxu0
      %v1011 = vadd.f32 0.0, %v1010
      %v1012 = vpop.f32.mrb[0].mxu0
      %1013 = vmatprep.mubr.f32.mxu0 0.0
      %1014 = vmatmul.mubr.f32.gmra.mrb[0].mxu0 %v852
      %v1015 = vpop.f32.mrb[0].mxu0
      %v1016 = vadd.f32 0.0, %v1015
      %v1017 = vpop.f32.mrb[0].mxu0
      %1018 = vmatprep.mubr.f32.mxu0 0.0
      %1019 = vmatmul.mubr.f32.gmra.mrb[0].mxu0 %v854
      %v1020 = vpop.f32.mrb[0].mxu0
      %v1021 = vadd.f32 0.0, %v1020
      %v1022 = vpop.f32.mrb[0].mxu0
      %1023 = vmatprep.mubr.f32.mxu0 0.0
      %1024 = vmatmul.mubr.f32.gmra.mrb[0].mxu0 %v856
      %v1025 = vpop.f32.mrb[0].mxu0
      %v1026 = vadd.f32 0.0, %v1025
      %v1027 = vpop.f32.mrb[0].mxu0
      %1028 = vmatprep.mubr.f32.mxu0 0.0
      %1029 = vmatmul.mubr.f32.gmra.mrb[0].mxu0 %v858
      %v1030 = vpop.f32.mrb[0].mxu0
      %v1031 = vadd.f32 0.0, %v1030
      %v1032 = vpop.f32.mrb[0].mxu0
      %1033 = vmatprep.mubr.f32.mxu0 0.0
      %1034 = vmatmul.mubr.f32.gmra.mrb[0].mxu0 %v860
      %v1035 = vpop.f32.mrb[0].mxu0
      %v1036 = vadd.f32 0.0, %v1035
      %v1037 = vpop.f32.mrb[0].mxu0
      %1038 = vmatprep.mubr.f32.mxu0 0.0
      %1039 = vmatmul.mubr.f32.gmra.mrb[0].mxu0 %v862
      %v1040 = vpop.f32.mrb[0].mxu0
      %v1041 = vadd.f32 0.0, %v1040
      %v1042 = vpop.f32.mrb[0].mxu0
      %1043 = vmatprep.mubr.f32.mxu0 0.0
      %1044 = vmatmul.mubr.f32.gmra.mrb[0].mxu0 %v864
      %v1045 = vpop.f32.mrb[0].mxu0
      %v1046 = vadd.f32 0.0, %v1045
      %v1047 = vpop.f32.mrb[0].mxu0
      %1048 = vmatprep.mubr.f32.mxu0 0.0
      %1049 = vmatmul.mubr.f32.gmra.mrb[0].mxu0 %v866
      %v1050 = vpop.f32.mrb[0].mxu0
      %v1051 = vadd.f32 0.0, %v1050
      %v1052 = vpop.f32.mrb[0].mxu0
      %1053 = vmatprep.mubr.f32.mxu0 0.0
      %1054 = vmatmul.mubr.f32.gmra.mrb[0].mxu0 %v868
      %v1055 = vpop.f32.mrb[0].mxu0
      %v1056 = vadd.f32 0.0, %v1055
      %v1057 = vpop.f32.mrb[0].mxu0
      %1058 = vmatprep.mubr.f32.mxu0 0.0
      %1059 = vmatmul.mubr.f32.gmra.mrb[0].mxu0 %v870
      %v1060 = vpop.f32.mrb[0].mxu0
      %v1061 = vadd.f32 0.0, %v1060
      %v1062 = vpop.f32.mrb[0].mxu0
      %1063 = vmatprep.mubr.f32.mxu0 0.0
      %1064 = vmatmul.mubr.f32.gmra.mrb[0].mxu0 %v872
      %v1065 = vpop.f32.mrb[0].mxu0
      %v1066 = vadd.f32 0.0, %v1065
      %v1067 = vpop.f32.mrb[0].mxu0
      %1068 = vmatprep.mubr.f32.mxu0 0.0
      %1069 = vmatmul.mubr.f32.gmra.mrb[0].mxu0 %v874
      %v1070 = vpop.f32.mrb[0].mxu0
      %v1071 = vadd.f32 0.0, %v1070
      %v1072 = vpop.f32.mrb[0].mxu0
      %1073 = vmatprep.mubr.f32.mxu0 0.0
      %1074 = vmatmul.mubr.f32.gmra.mrb[0].mxu0 %v876
      %v1075 = vpop.f32.mrb[0].mxu0
      %v1076 = vadd.f32 0.0, %v1075
      %v1077 = vpop.f32.mrb[0].mxu0
      %1078 = vmatprep.mubr.f32.mxu0 0.0
      %1079 = vmatmul.mubr.f32.gmra.mrb[0].mxu0 %v878
      %v1080 = vpop.f32.mrb[0].mxu0
      %v1081 = vadd.f32 0.0, %v1080
      %v1082 = vpop.f32.mrb[0].mxu0
      %1083 = vmatprep.mubr.f32.mxu0 0.0
      %1084 = vmatmul.mubr.f32.gmra.mrb[0].mxu0 %v880
      %v1085 = vpop.f32.mrb[0].mxu0
      %v1086 = vadd.f32 0.0, %v1085
      %v1087 = vpop.f32.mrb[0].mxu0
      %1088 = vmatprep.mubr.f32.mxu0 0.0
      %1089 = vmatmul.mubr.f32.gmra.mrb[0].mxu0 %v882
      %v1090 = vpop.f32.mrb[0].mxu0
      %v1091 = vadd.f32 0.0, %v1090
      %v1092 = vpop.f32.mrb[0].mxu0
      %1093 = vmatprep.mubr.f32.mxu0 0.0
      %1094 = vmatmul.mubr.f32.gmra.mrb[0].mxu0 %v884
      %v1095 = vpop.f32.mrb[0].mxu0
      %v1096 = vadd.f32 0.0, %v1095
      %v1097 = vpop.f32.mrb[0].mxu0
      %1098 = vmatprep.mubr.f32.mxu0 0.0
      %1099 = vmatmul.mubr.f32.gmra.mrb[0].mxu0 %v886
      %v1100 = vpop.f32.mrb[0].mxu0
      %v1101 = vadd.f32 0.0, %v1100
      %v1102 = vpop.f32.mrb[0].mxu0
      %1103 = vmatprep.mubr.f32.mxu0 0.0
      %1104 = vmatmul.mubr.f32.gmra.mrb[0].mxu0 %v888
      %v1105 = vpop.f32.mrb[0].mxu0
      %v1106 = vadd.f32 0.0, %v1105
      %v1107 = vpop.f32.mrb[0].mxu0
      %1108 = vmatprep.mubr.f32.mxu0 0.0
      %1109 = vmatmul.mubr.f32.gmra.mrb[0].mxu0 %v890
      %v1110 = vpop.f32.mrb[0].mxu0
      %v1111 = vadd.f32 0.0, %v1110
      %v1112 = vpop.f32.mrb[0].mxu0
      %1113 = vmatprep.mubr.f32.mxu0 0.0
      %1114 = vmatmul.mubr.f32.gmra.mrb[0].mxu0 %v892
      %v1115 = vpop.f32.mrb[0].mxu0
      %v1116 = vadd.f32 0.0, %v1115
      %v1117 = vpop.f32.mrb[0].mxu0
      %1118 = vmatprep.mubr.f32.mxu0 0.0
      %1119 = vmatmul.mubr.f32.gmra.mrb[0].mxu0 %v894
      %v1120 = vpop.f32.mrb[0].mxu0
      %v1121 = vadd.f32 0.0, %v1120
      %v1122 = vpop.f32.mrb[0].mxu0
      %1123 = vdwg.mxu0
      %v1124 = vadd.f32 %v701, %v966
      %v1125 = vadd.f32 %v702, %v971
      %v1126 = vadd.f32 %v703, %v976
      %v1127 = vadd.f32 %v704, %v981
      %v1128 = vadd.f32 %v705, %v986
      %v1129 = vadd.f32 %v706, %v991
      %v1130 = vadd.f32 %v707, %v996
      %v1131 = vadd.f32 %v708, %v1001
      %v1132 = vadd.f32 %v709, %v1006
      %v1133 = vadd.f32 %v710, %v1011
      %v1134 = vadd.f32 %v711, %v1016
      %v1135 = vadd.f32 %v712, %v1021
      %v1136 = vadd.f32 %v713, %v1026
      %v1137 = vadd.f32 %v714, %v1031
      %v1138 = vadd.f32 %v715, %v1036
      %v1139 = vadd.f32 %v716, %v1041
      %v1140 = vadd.f32 %v717, %v1046
      %v1141 = vadd.f32 %v718, %v1051
      %v1142 = vadd.f32 %v719, %v1056
      %v1143 = vadd.f32 %v720, %v1061
      %v1144 = vadd.f32 %v721, %v1066
      %v1145 = vadd.f32 %v722, %v1071
      %v1146 = vadd.f32 %v723, %v1076
      %v1147 = vadd.f32 %v724, %v1081
      %v1148 = vadd.f32 %v725, %v1086
      %v1149 = vadd.f32 %v726, %v1091
      %v1150 = vadd.f32 %v727, %v1096
      %v1151 = vadd.f32 %v728, %v1101
      %v1152 = vadd.f32 %v729, %v1106
      %v1153 = vadd.f32 %v730, %v1111
      %v1154 = vadd.f32 %v731, %v1116
      %v1155 = vadd.f32 %v732, %v1121
      %vm1156 = vcmask 1045504
      %v1157 = vrot.slane %v288, 2
      %v1158 = vrot.slane %v289, 2
      %v1159 = vsel %vm1156, %v1157, %v1158
      %v1160 = vrot.slane %v290, 2
      %v1161 = vsel %vm1156, %v1158, %v1160
      %v1162 = vrot.slane %v291, 2
      %v1163 = vrot.slane %v292, 2
      %v1164 = vsel %vm1156, %v1162, %v1163
      %v1165 = vrot.slane %v293, 2
      %v1166 = vsel %vm1156, %v1163, %v1165
      %v1167 = vrot.slane %v294, 2
      %v1168 = vrot.slane %v295, 2
      %v1169 = vsel %vm1156, %v1167, %v1168
      %v1170 = vrot.slane %v296, 2
      %v1171 = vsel %vm1156, %v1168, %v1170
      %v1172 = vrot.slane %v297, 2
      %v1173 = vrot.slane %v298, 2
      %v1174 = vsel %vm1156, %v1172, %v1173
      %v1175 = vrot.slane %v299, 2
      %v1176 = vsel %vm1156, %v1173, %v1175
      %v1177 = vrot.slane %v300, 2
      %v1178 = vrot.slane %v301, 2
      %v1179 = vsel %vm1156, %v1177, %v1178
      %v1180 = vrot.slane %v302, 2
      %v1181 = vsel %vm1156, %v1178, %v1180
      %v1182 = vrot.slane %v303, 2
      %v1183 = vrot.slane %v304, 2
      %v1184 = vsel %vm1156, %v1182, %v1183
      %v1185 = vrot.slane %v305, 2
      %v1186 = vsel %vm1156, %v1183, %v1185
      %v1187 = vrot.slane %v306, 2
      %v1188 = vrot.slane %v307, 2
      %v1189 = vsel %vm1156, %v1187, %v1188
      %v1190 = vrot.slane %v308, 2
      %v1191 = vsel %vm1156, %v1188, %v1190
      %v1192 = vrot.slane %v309, 2
      %v1193 = vrot.slane %v310, 2
      %v1194 = vsel %vm1156, %v1192, %v1193
      %v1195 = vrot.slane %v311, 2
      %v1196 = vsel %vm1156, %v1193, %v1195
      %v1197 = vrot.slane %v312, 2
      %v1198 = vrot.slane %v313, 2
      %v1199 = vsel %vm1156, %v1197, %v1198
      %v1200 = vrot.slane %v314, 2
      %v1201 = vsel %vm1156, %v1198, %v1200
      %v1202 = vrot.slane %v315, 2
      %v1203 = vrot.slane %v316, 2
      %v1204 = vsel %vm1156, %v1202, %v1203
      %v1205 = vrot.slane %v317, 2
      %v1206 = vsel %vm1156, %v1203, %v1205
      %v1207 = vrot.slane %v318, 2
      %v1208 = vrot.slane %v319, 2
      %v1209 = vsel %vm1156, %v1207, %v1208
      %v1210 = vrot.slane %v320, 2
      %v1211 = vsel %vm1156, %v1208, %v1210
      %v1212 = vrot.slane %v321, 2
      %v1213 = vrot.slane %v322, 2
      %v1214 = vsel %vm1156, %v1212, %v1213
      %v1215 = vrot.slane %v323, 2
      %v1216 = vsel %vm1156, %v1213, %v1215
      %v1217 = vrot.slane %v324, 2
      %v1218 = vrot.slane %v325, 2
      %v1219 = vsel %vm1156, %v1217, %v1218
      %v1220 = vrot.slane %v326, 2
      %v1221 = vsel %vm1156, %v1218, %v1220
      %v1222 = vrot.slane %v327, 2
      %v1223 = vrot.slane %v328, 2
      %v1224 = vsel %vm1156, %v1222, %v1223
      %v1225 = vrot.slane %v329, 2
      %v1226 = vsel %vm1156, %v1223, %v1225
      %v1227 = vrot.slane %v330, 2
      %v1228 = vrot.slane %v331, 2
      %v1229 = vsel %vm1156, %v1227, %v1228
      %v1230 = vrot.slane %v332, 2
      %v1231 = vsel %vm1156, %v1228, %v1230
      %v1232 = vrot.slane %v333, 2
      %v1233 = vrot.slane %v334, 2
      %v1234 = vsel %vm1156, %v1232, %v1233
      %v1235 = vrot.slane %v335, 2
      %v1236 = vsel %vm1156, %v1233, %v1235
      %s1237 = scalar_lea.vmem %s239, 8
      %v1238 = vld [vmem:[%s1237] sm:$0xf]
      %v1239 = vsel %vm375, %v1159, 0
      %v1241 = vsel %vm375, %v1161, 0
      %v1243 = vsel %vm375, %v1164, 0
      %v1245 = vsel %vm375, %v1166, 0
      %v1247 = vsel %vm375, %v1169, 0
      %v1249 = vsel %vm375, %v1171, 0
      %v1251 = vsel %vm375, %v1174, 0
      %v1253 = vsel %vm375, %v1176, 0
      %v1255 = vsel %vm375, %v1179, 0
      %v1257 = vsel %vm375, %v1181, 0
      %v1259 = vsel %vm375, %v1184, 0
      %v1261 = vsel %vm375, %v1186, 0
      %v1263 = vsel %vm375, %v1189, 0
      %v1265 = vsel %vm375, %v1191, 0
      %v1267 = vsel %vm375, %v1194, 0
      %v1269 = vsel %vm375, %v1196, 0
      %v1271 = vsel %vm375, %v1199, 0
      %v1273 = vsel %vm375, %v1201, 0
      %v1275 = vsel %vm375, %v1204, 0
      %v1277 = vsel %vm375, %v1206, 0
      %v1279 = vsel %vm375, %v1209, 0
      %v1281 = vsel %vm375, %v1211, 0
      %v1283 = vsel %vm375, %v1214, 0
      %v1285 = vsel %vm375, %v1216, 0
      %v1287 = vsel %vm375, %v1219, 0
      %v1289 = vsel %vm375, %v1221, 0
      %v1291 = vsel %vm375, %v1224, 0
      %v1293 = vsel %vm375, %v1226, 0
      %v1295 = vsel %vm375, %v1229, 0
      %v1297 = vsel %vm375, %v1231, 0
      %v1299 = vsel %vm375, %v1234, 0
      %v1301 = vsel %vm375, %v1236, 0
      %v1304 = vsel %vm472, %v1238, 0
      %1306 = vmatprep.subr.mxu0 0.0
      %1307 = vmatpush1.msra.mxu0 %v1304
      %1308 = vmatprep.subr.mxu0 0.0
      %1309 = vmatpush1.msra.mxu0 0.0
      %1310 = vmatprep.subr.mxu0 0.0
      %1311 = vmatpush1.msra.mxu0 0.0
      %1312 = vmatprep.subr.mxu0 0.0
      %1313 = vmatpush1.msra.mxu0 0.0
      %1314 = vmatprep.subr.mxu0 0.0
      %1315 = vmatpush1.msra.mxu0 0.0
      %1316 = vmatprep.subr.mxu0 0.0
      %1317 = vmatpush1.msra.mxu0 0.0
      %1318 = vmatprep.subr.mxu0 0.0
      %1319 = vmatpush1.msra.mxu0 0.0
      %1320 = vmatprep.subr.mxu0 0.0
      %1321 = vmatpush1.msra.mxu0 0.0
      %1322 = vmatprep.subr.mxu0 0.0
      %1323 = vmatpush1.msra.mxu0 0.0
      %1324 = vmatprep.subr.mxu0 0.0
      %1325 = vmatpush1.msra.mxu0 0.0
      %1326 = vmatprep.subr.mxu0 0.0
      %1327 = vmatpush1.msra.mxu0 0.0
      %1328 = vmatprep.subr.mxu0 0.0
      %1329 = vmatpush1.msra.mxu0 0.0
      %1330 = vmatprep.subr.mxu0 0.0
      %1331 = vmatpush1.msra.mxu0 0.0
      %1332 = vmatprep.subr.mxu0 0.0
      %1333 = vmatpush1.msra.mxu0 0.0
      %1334 = vmatprep.subr.mxu0 0.0
      %1335 = vmatpush1.msra.mxu0 0.0
      %1336 = vmatprep.subr.mxu0 0.0
      %1337 = vmatpush1.msra.mxu0 0.0
      %1338 = vmatprep.subr.mxu0 0.0
      %1339 = vmatpush1.msra.mxu0 0.0
      %1340 = vmatprep.subr.mxu0 0.0
      %1341 = vmatpush1.msra.mxu0 0.0
      %1342 = vmatprep.subr.mxu0 0.0
      %1343 = vmatpush1.msra.mxu0 0.0
      %1344 = vmatprep.subr.mxu0 0.0
      %1345 = vmatpush1.msra.mxu0 0.0
      %1346 = vmatprep.subr.mxu0 0.0
      %1347 = vmatpush1.msra.mxu0 0.0
      %1348 = vmatprep.subr.mxu0 0.0
      %1349 = vmatpush1.msra.mxu0 0.0
      %1350 = vmatprep.subr.mxu0 0.0
      %1351 = vmatpush1.msra.mxu0 0.0
      %1352 = vmatprep.subr.mxu0 0.0
      %1353 = vmatpush1.msra.mxu0 0.0
      %1354 = vmatprep.subr.mxu0 0.0
      %1355 = vmatpush1.msra.mxu0 0.0
      %1356 = vmatprep.subr.mxu0 0.0
      %1357 = vmatpush1.msra.mxu0 0.0
      %1358 = vmatprep.subr.mxu0 0.0
      %1359 = vmatpush1.msra.mxu0 0.0
      %1360 = vmatprep.subr.mxu0 0.0
      %1361 = vmatpush1.msra.mxu0 0.0
      %1362 = vmatprep.subr.mxu0 0.0
      %1363 = vmatpush1.msra.mxu0 0.0
      %1364 = vmatprep.subr.mxu0 0.0
      %1365 = vmatpush1.msra.mxu0 0.0
      %1366 = vmatprep.subr.mxu0 0.0
      %1367 = vmatpush1.msra.mxu0 0.0
      %1368 = vmatprep.subr.mxu0 0.0
      %1369 = vmatpush1.msra.mxu0 0.0
      %1370 = vmatprep.mubr.f32.mxu0 0.0
      %1371 = vmatmul.mubr.f32.gmra.mrb[0].mxu0 %v1239
      %v1372 = vpop.f32.mrb[0].mxu0
      %v1373 = vadd.f32 0.0, %v1372
      %v1374 = vpop.f32.mrb[0].mxu0
      %1375 = vmatprep.mubr.f32.mxu0 0.0
      %1376 = vmatmul.mubr.f32.gmra.mrb[0].mxu0 %v1241
      %v1377 = vpop.f32.mrb[0].mxu0
      %v1378 = vadd.f32 0.0, %v1377
      %v1379 = vpop.f32.mrb[0].mxu0
      %1380 = vmatprep.mubr.f32.mxu0 0.0
      %1381 = vmatmul.mubr.f32.gmra.mrb[0].mxu0 %v1243
      %v1382 = vpop.f32.mrb[0].mxu0
      %v1383 = vadd.f32 0.0, %v1382
      %v1384 = vpop.f32.mrb[0].mxu0
      %1385 = vmatprep.mubr.f32.mxu0 0.0
      %1386 = vmatmul.mubr.f32.gmra.mrb[0].mxu0 %v1245
      %v1387 = vpop.f32.mrb[0].mxu0
      %v1388 = vadd.f32 0.0, %v1387
      %v1389 = vpop.f32.mrb[0].mxu0
      %1390 = vmatprep.mubr.f32.mxu0 0.0
      %1391 = vmatmul.mubr.f32.gmra.mrb[0].mxu0 %v1247
      %v1392 = vpop.f32.mrb[0].mxu0
      %v1393 = vadd.f32 0.0, %v1392
      %v1394 = vpop.f32.mrb[0].mxu0
      %1395 = vmatprep.mubr.f32.mxu0 0.0
      %1396 = vmatmul.mubr.f32.gmra.mrb[0].mxu0 %v1249
      %v1397 = vpop.f32.mrb[0].mxu0
      %v1398 = vadd.f32 0.0, %v1397
      %v1399 = vpop.f32.mrb[0].mxu0
      %1400 = vmatprep.mubr.f32.mxu0 0.0
      %1401 = vmatmul.mubr.f32.gmra.mrb[0].mxu0 %v1251
      %v1402 = vpop.f32.mrb[0].mxu0
      %v1403 = vadd.f32 0.0, %v1402
      %v1404 = vpop.f32.mrb[0].mxu0
      %1405 = vmatprep.mubr.f32.mxu0 0.0
      %1406 = vmatmul.mubr.f32.gmra.mrb[0].mxu0 %v1253
      %v1407 = vpop.f32.mrb[0].mxu0
      %v1408 = vadd.f32 0.0, %v1407
      %v1409 = vpop.f32.mrb[0].mxu0
      %1410 = vmatprep.mubr.f32.mxu0 0.0
      %1411 = vmatmul.mubr.f32.gmra.mrb[0].mxu0 %v1255
      %v1412 = vpop.f32.mrb[0].mxu0
      %v1413 = vadd.f32 0.0, %v1412
      %v1414 = vpop.f32.mrb[0].mxu0
      %1415 = vmatprep.mubr.f32.mxu0 0.0
      %1416 = vmatmul.mubr.f32.gmra.mrb[0].mxu0 %v1257
      %v1417 = vpop.f32.mrb[0].mxu0
      %v1418 = vadd.f32 0.0, %v1417
      %v1419 = vpop.f32.mrb[0].mxu0
      %1420 = vmatprep.mubr.f32.mxu0 0.0
      %1421 = vmatmul.mubr.f32.gmra.mrb[0].mxu0 %v1259
      %v1422 = vpop.f32.mrb[0].mxu0
      %v1423 = vadd.f32 0.0, %v1422
      %v1424 = vpop.f32.mrb[0].mxu0
      %1425 = vmatprep.mubr.f32.mxu0 0.0
      %1426 = vmatmul.mubr.f32.gmra.mrb[0].mxu0 %v1261
      %v1427 = vpop.f32.mrb[0].mxu0
      %v1428 = vadd.f32 0.0, %v1427
      %v1429 = vpop.f32.mrb[0].mxu0
      %1430 = vmatprep.mubr.f32.mxu0 0.0
      %1431 = vmatmul.mubr.f32.gmra.mrb[0].mxu0 %v1263
      %v1432 = vpop.f32.mrb[0].mxu0
      %v1433 = vadd.f32 0.0, %v1432
      %v1434 = vpop.f32.mrb[0].mxu0
      %1435 = vmatprep.mubr.f32.mxu0 0.0
      %1436 = vmatmul.mubr.f32.gmra.mrb[0].mxu0 %v1265
      %v1437 = vpop.f32.mrb[0].mxu0
      %v1438 = vadd.f32 0.0, %v1437
      %v1439 = vpop.f32.mrb[0].mxu0
      %1440 = vmatprep.mubr.f32.mxu0 0.0
      %1441 = vmatmul.mubr.f32.gmra.mrb[0].mxu0 %v1267
      %v1442 = vpop.f32.mrb[0].mxu0
      %v1443 = vadd.f32 0.0, %v1442
      %v1444 = vpop.f32.mrb[0].mxu0
      %1445 = vmatprep.mubr.f32.mxu0 0.0
      %1446 = vmatmul.mubr.f32.gmra.mrb[0].mxu0 %v1269
      %v1447 = vpop.f32.mrb[0].mxu0
      %v1448 = vadd.f32 0.0, %v1447
      %v1449 = vpop.f32.mrb[0].mxu0
      %1450 = vmatprep.mubr.f32.mxu0 0.0
      %1451 = vmatmul.mubr.f32.gmra.mrb[0].mxu0 %v1271
      %v1452 = vpop.f32.mrb[0].mxu0
      %v1453 = vadd.f32 0.0, %v1452
      %v1454 = vpop.f32.mrb[0].mxu0
      %1455 = vmatprep.mubr.f32.mxu0 0.0
      %1456 = vmatmul.mubr.f32.gmra.mrb[0].mxu0 %v1273
      %v1457 = vpop.f32.mrb[0].mxu0
      %v1458 = vadd.f32 0.0, %v1457
      %v1459 = vpop.f32.mrb[0].mxu0
      %1460 = vmatprep.mubr.f32.mxu0 0.0
      %1461 = vmatmul.mubr.f32.gmra.mrb[0].mxu0 %v1275
      %v1462 = vpop.f32.mrb[0].mxu0
      %v1463 = vadd.f32 0.0, %v1462
      %v1464 = vpop.f32.mrb[0].mxu0
      %1465 = vmatprep.mubr.f32.mxu0 0.0
      %1466 = vmatmul.mubr.f32.gmra.mrb[0].mxu0 %v1277
      %v1467 = vpop.f32.mrb[0].mxu0
      %v1468 = vadd.f32 0.0, %v1467
      %v1469 = vpop.f32.mrb[0].mxu0
      %1470 = vmatprep.mubr.f32.mxu0 0.0
      %1471 = vmatmul.mubr.f32.gmra.mrb[0].mxu0 %v1279
      %v1472 = vpop.f32.mrb[0].mxu0
      %v1473 = vadd.f32 0.0, %v1472
      %v1474 = vpop.f32.mrb[0].mxu0
      %1475 = vmatprep.mubr.f32.mxu0 0.0
      %1476 = vmatmul.mubr.f32.gmra.mrb[0].mxu0 %v1281
      %v1477 = vpop.f32.mrb[0].mxu0
      %v1478 = vadd.f32 0.0, %v1477
      %v1479 = vpop.f32.mrb[0].mxu0
      %1480 = vmatprep.mubr.f32.mxu0 0.0
      %1481 = vmatmul.mubr.f32.gmra.mrb[0].mxu0 %v1283
      %v1482 = vpop.f32.mrb[0].mxu0
      %v1483 = vadd.f32 0.0, %v1482
      %v1484 = vpop.f32.mrb[0].mxu0
      %1485 = vmatprep.mubr.f32.mxu0 0.0
      %1486 = vmatmul.mubr.f32.gmra.mrb[0].mxu0 %v1285
      %v1487 = vpop.f32.mrb[0].mxu0
      %v1488 = vadd.f32 0.0, %v1487
      %v1489 = vpop.f32.mrb[0].mxu0
      %1490 = vmatprep.mubr.f32.mxu0 0.0
      %1491 = vmatmul.mubr.f32.gmra.mrb[0].mxu0 %v1287
      %v1492 = vpop.f32.mrb[0].mxu0
      %v1493 = vadd.f32 0.0, %v1492
      %v1494 = vpop.f32.mrb[0].mxu0
      %1495 = vmatprep.mubr.f32.mxu0 0.0
      %1496 = vmatmul.mubr.f32.gmra.mrb[0].mxu0 %v1289
      %v1497 = vpop.f32.mrb[0].mxu0
      %v1498 = vadd.f32 0.0, %v1497
      %v1499 = vpop.f32.mrb[0].mxu0
      %1500 = vmatprep.mubr.f32.mxu0 0.0
      %1501 = vmatmul.mubr.f32.gmra.mrb[0].mxu0 %v1291
      %v1502 = vpop.f32.mrb[0].mxu0
      %v1503 = vadd.f32 0.0, %v1502
      %v1504 = vpop.f32.mrb[0].mxu0
      %1505 = vmatprep.mubr.f32.mxu0 0.0
      %1506 = vmatmul.mubr.f32.gmra.mrb[0].mxu0 %v1293
      %v1507 = vpop.f32.mrb[0].mxu0
      %v1508 = vadd.f32 0.0, %v1507
      %v1509 = vpop.f32.mrb[0].mxu0
      %1510 = vmatprep.mubr.f32.mxu0 0.0
      %1511 = vmatmul.mubr.f32.gmra.mrb[0].mxu0 %v1295
      %v1512 = vpop.f32.mrb[0].mxu0
      %v1513 = vadd.f32 0.0, %v1512
      %v1514 = vpop.f32.mrb[0].mxu0
      %1515 = vmatprep.mubr.f32.mxu0 0.0
      %1516 = vmatmul.mubr.f32.gmra.mrb[0].mxu0 %v1297
      %v1517 = vpop.f32.mrb[0].mxu0
      %v1518 = vadd.f32 0.0, %v1517
      %v1519 = vpop.f32.mrb[0].mxu0
      %1520 = vmatprep.mubr.f32.mxu0 0.0
      %1521 = vmatmul.mubr.f32.gmra.mrb[0].mxu0 %v1299
      %v1522 = vpop.f32.mrb[0].mxu0
      %v1523 = vadd.f32 0.0, %v1522
      %v1524 = vpop.f32.mrb[0].mxu0
      %1525 = vmatprep.mubr.f32.mxu0 0.0
      %1526 = vmatmul.mubr.f32.gmra.mrb[0].mxu0 %v1301
      %v1527 = vpop.f32.mrb[0].mxu0
      %v1528 = vadd.f32 0.0, %v1527
      %v1529 = vpop.f32.mrb[0].mxu0
      %1530 = vdwg.mxu0
      %v1531 = vadd.f32 %v1124, %v1373
      %v1532 = vadd.f32 %v1125, %v1378
      %v1533 = vadd.f32 %v1126, %v1383
      %v1534 = vadd.f32 %v1127, %v1388
      %v1535 = vadd.f32 %v1128, %v1393
      %v1536 = vadd.f32 %v1129, %v1398
      %v1537 = vadd.f32 %v1130, %v1403
      %v1538 = vadd.f32 %v1131, %v1408
      %v1539 = vadd.f32 %v1132, %v1413
      %v1540 = vadd.f32 %v1133, %v1418
      %v1541 = vadd.f32 %v1134, %v1423
      %v1542 = vadd.f32 %v1135, %v1428
      %v1543 = vadd.f32 %v1136, %v1433
      %v1544 = vadd.f32 %v1137, %v1438
      %v1545 = vadd.f32 %v1138, %v1443
      %v1546 = vadd.f32 %v1139, %v1448
      %v1547 = vadd.f32 %v1140, %v1453
      %v1548 = vadd.f32 %v1141, %v1458
      %v1549 = vadd.f32 %v1142, %v1463
      %v1550 = vadd.f32 %v1143, %v1468
      %v1551 = vadd.f32 %v1144, %v1473
      %v1552 = vadd.f32 %v1145, %v1478
      %v1553 = vadd.f32 %v1146, %v1483
      %v1554 = vadd.f32 %v1147, %v1488
      %v1555 = vadd.f32 %v1148, %v1493
      %v1556 = vadd.f32 %v1149, %v1498
      %v1557 = vadd.f32 %v1150, %v1503
      %v1558 = vadd.f32 %v1151, %v1508
      %v1559 = vadd.f32 %v1152, %v1513
      %v1560 = vadd.f32 %v1153, %v1518
      %v1561 = vadd.f32 %v1154, %v1523
      %v1562 = vadd.f32 %v1155, %v1528
      %s1563 = scalar_lea.vmem %s239, 12
      %v1564 = vld [vmem:[%s1563] sm:$0xf]
      %v1566 = vsel %vm375, %v336, 0
      %v1569 = vsel %vm375, %v337, 0
      %v1572 = vsel %vm472, %v1564, 0
      %1574 = vmatprep.subr.mxu0 0.0
      %1575 = vmatpush1.msra.mxu0 %v1572
      %1576 = vmatprep.subr.mxu0 0.0
      %1577 = vmatpush1.msra.mxu0 0.0
      %1578 = vmatprep.subr.mxu0 0.0
      %1579 = vmatpush1.msra.mxu0 0.0
      %1580 = vmatprep.subr.mxu0 0.0
      %1581 = vmatpush1.msra.mxu0 0.0
      %1582 = vmatprep.subr.mxu0 0.0
      %1583 = vmatpush1.msra.mxu0 0.0
      %1584 = vmatprep.subr.mxu0 0.0
      %1585 = vmatpush1.msra.mxu0 0.0
      %1586 = vmatprep.subr.mxu0 0.0
      %1587 = vmatpush1.msra.mxu0 0.0
      %1588 = vmatprep.subr.mxu0 0.0
      %1589 = vmatpush1.msra.mxu0 0.0
      %1590 = vmatprep.subr.mxu0 0.0
      %1591 = vmatpush1.msra.mxu0 0.0
      %1592 = vmatprep.subr.mxu0 0.0
      %1593 = vmatpush1.msra.mxu0 0.0
      %1594 = vmatprep.subr.mxu0 0.0
      %1595 = vmatpush1.msra.mxu0 0.0
      %1596 = vmatprep.subr.mxu0 0.0
      %1597 = vmatpush1.msra.mxu0 0.0
      %1598 = vmatprep.subr.mxu0 0.0
      %1599 = vmatpush1.msra.mxu0 0.0
      %1600 = vmatprep.subr.mxu0 0.0
      %1601 = vmatpush1.msra.mxu0 0.0
      %1602 = vmatprep.subr.mxu0 0.0
      %1603 = vmatpush1.msra.mxu0 0.0
      %1604 = vmatprep.subr.mxu0 0.0
      %1605 = vmatpush1.msra.mxu0 0.0
      %1606 = vmatprep.subr.mxu0 0.0
      %1607 = vmatpush1.msra.mxu0 0.0
      %1608 = vmatprep.subr.mxu0 0.0
      %1609 = vmatpush1.msra.mxu0 0.0
      %1610 = vmatprep.subr.mxu0 0.0
      %1611 = vmatpush1.msra.mxu0 0.0
      %1612 = vmatprep.subr.mxu0 0.0
      %1613 = vmatpush1.msra.mxu0 0.0
      %1614 = vmatprep.subr.mxu0 0.0
      %1615 = vmatpush1.msra.mxu0 0.0
      %1616 = vmatprep.subr.mxu0 0.0
      %1617 = vmatpush1.msra.mxu0 0.0
      %1618 = vmatprep.subr.mxu0 0.0
      %1619 = vmatpush1.msra.mxu0 0.0
      %1620 = vmatprep.subr.mxu0 0.0
      %1621 = vmatpush1.msra.mxu0 0.0
      %1622 = vmatprep.subr.mxu0 0.0
      %1623 = vmatpush1.msra.mxu0 0.0
      %1624 = vmatprep.subr.mxu0 0.0
      %1625 = vmatpush1.msra.mxu0 0.0
      %1626 = vmatprep.subr.mxu0 0.0
      %1627 = vmatpush1.msra.mxu0 0.0
      %1628 = vmatprep.subr.mxu0 0.0
      %1629 = vmatpush1.msra.mxu0 0.0
      %1630 = vmatprep.subr.mxu0 0.0
      %1631 = vmatpush1.msra.mxu0 0.0
      %1632 = vmatprep.subr.mxu0 0.0
      %1633 = vmatpush1.msra.mxu0 0.0
      %1634 = vmatprep.subr.mxu0 0.0
      %1635 = vmatpush1.msra.mxu0 0.0
      %1636 = vmatprep.subr.mxu0 0.0
      %1637 = vmatpush1.msra.mxu0 0.0
      %1638 = vmatprep.mubr.f32.mxu0 0.0
      %1639 = vmatmul.mubr.f32.gmra.mrb[0].mxu0 %v383
      %v1640 = vpop.f32.mrb[0].mxu0
      %v1641 = vadd.f32 0.0, %v1640
      %v1642 = vpop.f32.mrb[0].mxu0
      %1643 = vmatprep.mubr.f32.mxu0 0.0
      %1644 = vmatmul.mubr.f32.gmra.mrb[0].mxu0 %v386
      %v1645 = vpop.f32.mrb[0].mxu0
      %v1646 = vadd.f32 0.0, %v1645
      %v1647 = vpop.f32.mrb[0].mxu0
      %1648 = vmatprep.mubr.f32.mxu0 0.0
      %1649 = vmatmul.mubr.f32.gmra.mrb[0].mxu0 %v389
      %v1650 = vpop.f32.mrb[0].mxu0
      %v1651 = vadd.f32 0.0, %v1650
      %v1652 = vpop.f32.mrb[0].mxu0
      %1653 = vmatprep.mubr.f32.mxu0 0.0
      %1654 = vmatmul.mubr.f32.gmra.mrb[0].mxu0 %v392
      %v1655 = vpop.f32.mrb[0].mxu0
      %v1656 = vadd.f32 0.0, %v1655
      %v1657 = vpop.f32.mrb[0].mxu0
      %1658 = vmatprep.mubr.f32.mxu0 0.0
      %1659 = vmatmul.mubr.f32.gmra.mrb[0].mxu0 %v395
      %v1660 = vpop.f32.mrb[0].mxu0
      %v1661 = vadd.f32 0.0, %v1660
      %v1662 = vpop.f32.mrb[0].mxu0
      %1663 = vmatprep.mubr.f32.mxu0 0.0
      %1664 = vmatmul.mubr.f32.gmra.mrb[0].mxu0 %v398
      %v1665 = vpop.f32.mrb[0].mxu0
      %v1666 = vadd.f32 0.0, %v1665
      %v1667 = vpop.f32.mrb[0].mxu0
      %1668 = vmatprep.mubr.f32.mxu0 0.0
      %1669 = vmatmul.mubr.f32.gmra.mrb[0].mxu0 %v401
      %v1670 = vpop.f32.mrb[0].mxu0
      %v1671 = vadd.f32 0.0, %v1670
      %v1672 = vpop.f32.mrb[0].mxu0
      %1673 = vmatprep.mubr.f32.mxu0 0.0
      %1674 = vmatmul.mubr.f32.gmra.mrb[0].mxu0 %v404
      %v1675 = vpop.f32.mrb[0].mxu0
      %v1676 = vadd.f32 0.0, %v1675
      %v1677 = vpop.f32.mrb[0].mxu0
      %1678 = vmatprep.mubr.f32.mxu0 0.0
      %1679 = vmatmul.mubr.f32.gmra.mrb[0].mxu0 %v407
      %v1680 = vpop.f32.mrb[0].mxu0
      %v1681 = vadd.f32 0.0, %v1680
      %v1682 = vpop.f32.mrb[0].mxu0
      %1683 = vmatprep.mubr.f32.mxu0 0.0
      %1684 = vmatmul.mubr.f32.gmra.mrb[0].mxu0 %v410
      %v1685 = vpop.f32.mrb[0].mxu0
      %v1686 = vadd.f32 0.0, %v1685
      %v1687 = vpop.f32.mrb[0].mxu0
      %1688 = vmatprep.mubr.f32.mxu0 0.0
      %1689 = vmatmul.mubr.f32.gmra.mrb[0].mxu0 %v413
      %v1690 = vpop.f32.mrb[0].mxu0
      %v1691 = vadd.f32 0.0, %v1690
      %v1692 = vpop.f32.mrb[0].mxu0
      %1693 = vmatprep.mubr.f32.mxu0 0.0
      %1694 = vmatmul.mubr.f32.gmra.mrb[0].mxu0 %v416
      %v1695 = vpop.f32.mrb[0].mxu0
      %v1696 = vadd.f32 0.0, %v1695
      %v1697 = vpop.f32.mrb[0].mxu0
      %1698 = vmatprep.mubr.f32.mxu0 0.0
      %1699 = vmatmul.mubr.f32.gmra.mrb[0].mxu0 %v419
      %v1700 = vpop.f32.mrb[0].mxu0
      %v1701 = vadd.f32 0.0, %v1700
      %v1702 = vpop.f32.mrb[0].mxu0
      %1703 = vmatprep.mubr.f32.mxu0 0.0
      %1704 = vmatmul.mubr.f32.gmra.mrb[0].mxu0 %v422
      %v1705 = vpop.f32.mrb[0].mxu0
      %v1706 = vadd.f32 0.0, %v1705
      %v1707 = vpop.f32.mrb[0].mxu0
      %1708 = vmatprep.mubr.f32.mxu0 0.0
      %1709 = vmatmul.mubr.f32.gmra.mrb[0].mxu0 %v425
      %v1710 = vpop.f32.mrb[0].mxu0
      %v1711 = vadd.f32 0.0, %v1710
      %v1712 = vpop.f32.mrb[0].mxu0
      %1713 = vmatprep.mubr.f32.mxu0 0.0
      %1714 = vmatmul.mubr.f32.gmra.mrb[0].mxu0 %v428
      %v1715 = vpop.f32.mrb[0].mxu0
      %v1716 = vadd.f32 0.0, %v1715
      %v1717 = vpop.f32.mrb[0].mxu0
      %1718 = vmatprep.mubr.f32.mxu0 0.0
      %1719 = vmatmul.mubr.f32.gmra.mrb[0].mxu0 %v431
      %v1720 = vpop.f32.mrb[0].mxu0
      %v1721 = vadd.f32 0.0, %v1720
      %v1722 = vpop.f32.mrb[0].mxu0
      %1723 = vmatprep.mubr.f32.mxu0 0.0
      %1724 = vmatmul.mubr.f32.gmra.mrb[0].mxu0 %v434
      %v1725 = vpop.f32.mrb[0].mxu0
      %v1726 = vadd.f32 0.0, %v1725
      %v1727 = vpop.f32.mrb[0].mxu0
      %1728 = vmatprep.mubr.f32.mxu0 0.0
      %1729 = vmatmul.mubr.f32.gmra.mrb[0].mxu0 %v437
      %v1730 = vpop.f32.mrb[0].mxu0
      %v1731 = vadd.f32 0.0, %v1730
      %v1732 = vpop.f32.mrb[0].mxu0
      %1733 = vmatprep.mubr.f32.mxu0 0.0
      %1734 = vmatmul.mubr.f32.gmra.mrb[0].mxu0 %v440
      %v1735 = vpop.f32.mrb[0].mxu0
      %v1736 = vadd.f32 0.0, %v1735
      %v1737 = vpop.f32.mrb[0].mxu0
      %1738 = vmatprep.mubr.f32.mxu0 0.0
      %1739 = vmatmul.mubr.f32.gmra.mrb[0].mxu0 %v443
      %v1740 = vpop.f32.mrb[0].mxu0
      %v1741 = vadd.f32 0.0, %v1740
      %v1742 = vpop.f32.mrb[0].mxu0
      %1743 = vmatprep.mubr.f32.mxu0 0.0
      %1744 = vmatmul.mubr.f32.gmra.mrb[0].mxu0 %v446
      %v1745 = vpop.f32.mrb[0].mxu0
      %v1746 = vadd.f32 0.0, %v1745
      %v1747 = vpop.f32.mrb[0].mxu0
      %1748 = vmatprep.mubr.f32.mxu0 0.0
      %1749 = vmatmul.mubr.f32.gmra.mrb[0].mxu0 %v449
      %v1750 = vpop.f32.mrb[0].mxu0
      %v1751 = vadd.f32 0.0, %v1750
      %v1752 = vpop.f32.mrb[0].mxu0
      %1753 = vmatprep.mubr.f32.mxu0 0.0
      %1754 = vmatmul.mubr.f32.gmra.mrb[0].mxu0 %v452
      %v1755 = vpop.f32.mrb[0].mxu0
      %v1756 = vadd.f32 0.0, %v1755
      %v1757 = vpop.f32.mrb[0].mxu0
      %1758 = vmatprep.mubr.f32.mxu0 0.0
      %1759 = vmatmul.mubr.f32.gmra.mrb[0].mxu0 %v455
      %v1760 = vpop.f32.mrb[0].mxu0
      %v1761 = vadd.f32 0.0, %v1760
      %v1762 = vpop.f32.mrb[0].mxu0
      %1763 = vmatprep.mubr.f32.mxu0 0.0
      %1764 = vmatmul.mubr.f32.gmra.mrb[0].mxu0 %v458
      %v1765 = vpop.f32.mrb[0].mxu0
      %v1766 = vadd.f32 0.0, %v1765
      %v1767 = vpop.f32.mrb[0].mxu0
      %1768 = vmatprep.mubr.f32.mxu0 0.0
      %1769 = vmatmul.mubr.f32.gmra.mrb[0].mxu0 %v461
      %v1770 = vpop.f32.mrb[0].mxu0
      %v1771 = vadd.f32 0.0, %v1770
      %v1772 = vpop.f32.mrb[0].mxu0
      %1773 = vmatprep.mubr.f32.mxu0 0.0
      %1774 = vmatmul.mubr.f32.gmra.mrb[0].mxu0 %v464
      %v1775 = vpop.f32.mrb[0].mxu0
      %v1776 = vadd.f32 0.0, %v1775
      %v1777 = vpop.f32.mrb[0].mxu0
      %1778 = vmatprep.mubr.f32.mxu0 0.0
      %1779 = vmatmul.mubr.f32.gmra.mrb[0].mxu0 %v467
      %v1780 = vpop.f32.mrb[0].mxu0
      %v1781 = vadd.f32 0.0, %v1780
      %v1782 = vpop.f32.mrb[0].mxu0
      %1783 = vmatprep.mubr.f32.mxu0 0.0
      %1784 = vmatmul.mubr.f32.gmra.mrb[0].mxu0 %v470
      %v1785 = vpop.f32.mrb[0].mxu0
      %v1786 = vadd.f32 0.0, %v1785
      %v1787 = vpop.f32.mrb[0].mxu0
      %1788 = vmatprep.mubr.f32.mxu0 0.0
      %1789 = vmatmul.mubr.f32.gmra.mrb[0].mxu0 %v1566
      %v1790 = vpop.f32.mrb[0].mxu0
      %v1791 = vadd.f32 0.0, %v1790
      %v1792 = vpop.f32.mrb[0].mxu0
      %1793 = vmatprep.mubr.f32.mxu0 0.0
      %1794 = vmatmul.mubr.f32.gmra.mrb[0].mxu0 %v1569
      %v1795 = vpop.f32.mrb[0].mxu0
      %v1796 = vadd.f32 0.0, %v1795
      %v1797 = vpop.f32.mrb[0].mxu0
      %1798 = vdwg.mxu0
      %v1799 = vadd.f32 %v1531, %v1641
      %v1800 = vadd.f32 %v1532, %v1646
      %v1801 = vadd.f32 %v1533, %v1651
      %v1802 = vadd.f32 %v1534, %v1656
      %v1803 = vadd.f32 %v1535, %v1661
      %v1804 = vadd.f32 %v1536, %v1666
      %v1805 = vadd.f32 %v1537, %v1671
      %v1806 = vadd.f32 %v1538, %v1676
      %v1807 = vadd.f32 %v1539, %v1681
      %v1808 = vadd.f32 %v1540, %v1686
      %v1809 = vadd.f32 %v1541, %v1691
      %v1810 = vadd.f32 %v1542, %v1696
      %v1811 = vadd.f32 %v1543, %v1701
      %v1812 = vadd.f32 %v1544, %v1706
      %v1813 = vadd.f32 %v1545, %v1711
      %v1814 = vadd.f32 %v1546, %v1716
      %v1815 = vadd.f32 %v1547, %v1721
      %v1816 = vadd.f32 %v1548, %v1726
      %v1817 = vadd.f32 %v1549, %v1731
      %v1818 = vadd.f32 %v1550, %v1736
      %v1819 = vadd.f32 %v1551, %v1741
      %v1820 = vadd.f32 %v1552, %v1746
      %v1821 = vadd.f32 %v1553, %v1751
      %v1822 = vadd.f32 %v1554, %v1756
      %v1823 = vadd.f32 %v1555, %v1761
      %v1824 = vadd.f32 %v1556, %v1766
      %v1825 = vadd.f32 %v1557, %v1771
      %v1826 = vadd.f32 %v1558, %v1776
      %v1827 = vadd.f32 %v1559, %v1781
      %v1828 = vadd.f32 %v1560, %v1786
      %v1829 = vadd.f32 %v1561, %v1791
      %v1830 = vadd.f32 %v1562, %v1796
      %v1832 = vrot.slane %v336, 1
      %v1833 = vrot.slane %v337, 1
      %v1834 = vsel %vm749, %v1832, %v1833
      %v1835 = vrot.slane %v338, 1
      %v1836 = vsel %vm749, %v1833, %v1835
      %s1837 = scalar_lea.vmem %s239, 16
      %v1838 = vld [vmem:[%s1837] sm:$0xf]
      %v1839 = vsel %vm375, %v1834, 0
      %v1841 = vsel %vm375, %v1836, 0
      %v1844 = vsel %vm472, %v1838, 0
      %1846 = vmatprep.subr.mxu0 0.0
      %1847 = vmatpush1.msra.mxu0 %v1844
      %1848 = vmatprep.subr.mxu0 0.0
      %1849 = vmatpush1.msra.mxu0 0.0
      %1850 = vmatprep.subr.mxu0 0.0
      %1851 = vmatpush1.msra.mxu0 0.0
      %1852 = vmatprep.subr.mxu0 0.0
      %1853 = vmatpush1.msra.mxu0 0.0
      %1854 = vmatprep.subr.mxu0 0.0
      %1855 = vmatpush1.msra.mxu0 0.0
      %1856 = vmatprep.subr.mxu0 0.0
      %1857 = vmatpush1.msra.mxu0 0.0
      %1858 = vmatprep.subr.mxu0 0.0
      %1859 = vmatpush1.msra.mxu0 0.0
      %1860 = vmatprep.subr.mxu0 0.0
      %1861 = vmatpush1.msra.mxu0 0.0
      %1862 = vmatprep.subr.mxu0 0.0
      %1863 = vmatpush1.msra.mxu0 0.0
      %1864 = vmatprep.subr.mxu0 0.0
      %1865 = vmatpush1.msra.mxu0 0.0
      %1866 = vmatprep.subr.mxu0 0.0
      %1867 = vmatpush1.msra.mxu0 0.0
      %1868 = vmatprep.subr.mxu0 0.0
      %1869 = vmatpush1.msra.mxu0 0.0
      %1870 = vmatprep.subr.mxu0 0.0
      %1871 = vmatpush1.msra.mxu0 0.0
      %1872 = vmatprep.subr.mxu0 0.0
      %1873 = vmatpush1.msra.mxu0 0.0
      %1874 = vmatprep.subr.mxu0 0.0
      %1875 = vmatpush1.msra.mxu0 0.0
      %1876 = vmatprep.subr.mxu0 0.0
      %1877 = vmatpush1.msra.mxu0 0.0
      %1878 = vmatprep.subr.mxu0 0.0
      %1879 = vmatpush1.msra.mxu0 0.0
      %1880 = vmatprep.subr.mxu0 0.0
      %1881 = vmatpush1.msra.mxu0 0.0
      %1882 = vmatprep.subr.mxu0 0.0
      %1883 = vmatpush1.msra.mxu0 0.0
      %1884 = vmatprep.subr.mxu0 0.0
      %1885 = vmatpush1.msra.mxu0 0.0
      %1886 = vmatprep.subr.mxu0 0.0
      %1887 = vmatpush1.msra.mxu0 0.0
      %1888 = vmatprep.subr.mxu0 0.0
      %1889 = vmatpush1.msra.mxu0 0.0
      %1890 = vmatprep.subr.mxu0 0.0
      %1891 = vmatpush1.msra.mxu0 0.0
      %1892 = vmatprep.subr.mxu0 0.0
      %1893 = vmatpush1.msra.mxu0 0.0
      %1894 = vmatprep.subr.mxu0 0.0
      %1895 = vmatpush1.msra.mxu0 0.0
      %1896 = vmatprep.subr.mxu0 0.0
      %1897 = vmatpush1.msra.mxu0 0.0
      %1898 = vmatprep.subr.mxu0 0.0
      %1899 = vmatpush1.msra.mxu0 0.0
      %1900 = vmatprep.subr.mxu0 0.0
      %1901 = vmatpush1.msra.mxu0 0.0
      %1902 = vmatprep.subr.mxu0 0.0
      %1903 = vmatpush1.msra.mxu0 0.0
      %1904 = vmatprep.subr.mxu0 0.0
      %1905 = vmatpush1.msra.mxu0 0.0
      %1906 = vmatprep.subr.mxu0 0.0
      %1907 = vmatpush1.msra.mxu0 0.0
      %1908 = vmatprep.subr.mxu0 0.0
      %1909 = vmatpush1.msra.mxu0 0.0
      %1910 = vmatprep.mubr.f32.mxu0 0.0
      %1911 = vmatmul.mubr.f32.gmra.mrb[0].mxu0 %v836
      %v1912 = vpop.f32.mrb[0].mxu0
      %v1913 = vadd.f32 0.0, %v1912
      %v1914 = vpop.f32.mrb[0].mxu0
      %1915 = vmatprep.mubr.f32.mxu0 0.0
      %1916 = vmatmul.mubr.f32.gmra.mrb[0].mxu0 %v838
      %v1917 = vpop.f32.mrb[0].mxu0
      %v1918 = vadd.f32 0.0, %v1917
      %v1919 = vpop.f32.mrb[0].mxu0
      %1920 = vmatprep.mubr.f32.mxu0 0.0
      %1921 = vmatmul.mubr.f32.gmra.mrb[0].mxu0 %v840
      %v1922 = vpop.f32.mrb[0].mxu0
      %v1923 = vadd.f32 0.0, %v1922
      %v1924 = vpop.f32.mrb[0].mxu0
      %1925 = vmatprep.mubr.f32.mxu0 0.0
      %1926 = vmatmul.mubr.f32.gmra.mrb[0].mxu0 %v842
      %v1927 = vpop.f32.mrb[0].mxu0
      %v1928 = vadd.f32 0.0, %v1927
      %v1929 = vpop.f32.mrb[0].mxu0
      %1930 = vmatprep.mubr.f32.mxu0 0.0
      %1931 = vmatmul.mubr.f32.gmra.mrb[0].mxu0 %v844
      %v1932 = vpop.f32.mrb[0].mxu0
      %v1933 = vadd.f32 0.0, %v1932
      %v1934 = vpop.f32.mrb[0].mxu0
      %1935 = vmatprep.mubr.f32.mxu0 0.0
      %1936 = vmatmul.mubr.f32.gmra.mrb[0].mxu0 %v846
      %v1937 = vpop.f32.mrb[0].mxu0
      %v1938 = vadd.f32 0.0, %v1937
      %v1939 = vpop.f32.mrb[0].mxu0
      %1940 = vmatprep.mubr.f32.mxu0 0.0
      %1941 = vmatmul.mubr.f32.gmra.mrb[0].mxu0 %v848
      %v1942 = vpop.f32.mrb[0].mxu0
      %v1943 = vadd.f32 0.0, %v1942
      %v1944 = vpop.f32.mrb[0].mxu0
      %1945 = vmatprep.mubr.f32.mxu0 0.0
      %1946 = vmatmul.mubr.f32.gmra.mrb[0].mxu0 %v850
      %v1947 = vpop.f32.mrb[0].mxu0
      %v1948 = vadd.f32 0.0, %v1947
      %v1949 = vpop.f32.mrb[0].mxu0
      %1950 = vmatprep.mubr.f32.mxu0 0.0
      %1951 = vmatmul.mubr.f32.gmra.mrb[0].mxu0 %v852
      %v1952 = vpop.f32.mrb[0].mxu0
      %v1953 = vadd.f32 0.0, %v1952
      %v1954 = vpop.f32.mrb[0].mxu0
      %1955 = vmatprep.mubr.f32.mxu0 0.0
      %1956 = vmatmul.mubr.f32.gmra.mrb[0].mxu0 %v854
      %v1957 = vpop.f32.mrb[0].mxu0
      %v1958 = vadd.f32 0.0, %v1957
      %v1959 = vpop.f32.mrb[0].mxu0
      %1960 = vmatprep.mubr.f32.mxu0 0.0
      %1961 = vmatmul.mubr.f32.gmra.mrb[0].mxu0 %v856
      %v1962 = vpop.f32.mrb[0].mxu0
      %v1963 = vadd.f32 0.0, %v1962
      %v1964 = vpop.f32.mrb[0].mxu0
      %1965 = vmatprep.mubr.f32.mxu0 0.0
      %1966 = vmatmul.mubr.f32.gmra.mrb[0].mxu0 %v858
      %v1967 = vpop.f32.mrb[0].mxu0
      %v1968 = vadd.f32 0.0, %v1967
      %v1969 = vpop.f32.mrb[0].mxu0
      %1970 = vmatprep.mubr.f32.mxu0 0.0
      %1971 = vmatmul.mubr.f32.gmra.mrb[0].mxu0 %v860
      %v1972 = vpop.f32.mrb[0].mxu0
      %v1973 = vadd.f32 0.0, %v1972
      %v1974 = vpop.f32.mrb[0].mxu0
      %1975 = vmatprep.mubr.f32.mxu0 0.0
      %1976 = vmatmul.mubr.f32.gmra.mrb[0].mxu0 %v862
      %v1977 = vpop.f32.mrb[0].mxu0
      %v1978 = vadd.f32 0.0, %v1977
      %v1979 = vpop.f32.mrb[0].mxu0
      %1980 = vmatprep.mubr.f32.mxu0 0.0
      %1981 = vmatmul.mubr.f32.gmra.mrb[0].mxu0 %v864
      %v1982 = vpop.f32.mrb[0].mxu0
      %v1983 = vadd.f32 0.0, %v1982
      %v1984 = vpop.f32.mrb[0].mxu0
      %1985 = vmatprep.mubr.f32.mxu0 0.0
      %1986 = vmatmul.mubr.f32.gmra.mrb[0].mxu0 %v866
      %v1987 = vpop.f32.mrb[0].mxu0
      %v1988 = vadd.f32 0.0, %v1987
      %v1989 = vpop.f32.mrb[0].mxu0
      %1990 = vmatprep.mubr.f32.mxu0 0.0
      %1991 = vmatmul.mubr.f32.gmra.mrb[0].mxu0 %v868
      %v1992 = vpop.f32.mrb[0].mxu0
      %v1993 = vadd.f32 0.0, %v1992
      %v1994 = vpop.f32.mrb[0].mxu0
      %1995 = vmatprep.mubr.f32.mxu0 0.0
      %1996 = vmatmul.mubr.f32.gmra.mrb[0].mxu0 %v870
      %v1997 = vpop.f32.mrb[0].mxu0
      %v1998 = vadd.f32 0.0, %v1997
      %v1999 = vpop.f32.mrb[0].mxu0
      %2000 = vmatprep.mubr.f32.mxu0 0.0
      %2001 = vmatmul.mubr.f32.gmra.mrb[0].mxu0 %v872
      %v2002 = vpop.f32.mrb[0].mxu0
      %v2003 = vadd.f32 0.0, %v2002
      %v2004 = vpop.f32.mrb[0].mxu0
      %2005 = vmatprep.mubr.f32.mxu0 0.0
      %2006 = vmatmul.mubr.f32.gmra.mrb[0].mxu0 %v874
      %v2007 = vpop.f32.mrb[0].mxu0
      %v2008 = vadd.f32 0.0, %v2007
      %v2009 = vpop.f32.mrb[0].mxu0
      %2010 = vmatprep.mubr.f32.mxu0 0.0
      %2011 = vmatmul.mubr.f32.gmra.mrb[0].mxu0 %v876
      %v2012 = vpop.f32.mrb[0].mxu0
      %v2013 = vadd.f32 0.0, %v2012
      %v2014 = vpop.f32.mrb[0].mxu0
      %2015 = vmatprep.mubr.f32.mxu0 0.0
      %2016 = vmatmul.mubr.f32.gmra.mrb[0].mxu0 %v878
      %v2017 = vpop.f32.mrb[0].mxu0
      %v2018 = vadd.f32 0.0, %v2017
      %v2019 = vpop.f32.mrb[0].mxu0
      %2020 = vmatprep.mubr.f32.mxu0 0.0
      %2021 = vmatmul.mubr.f32.gmra.mrb[0].mxu0 %v880
      %v2022 = vpop.f32.mrb[0].mxu0
      %v2023 = vadd.f32 0.0, %v2022
      %v2024 = vpop.f32.mrb[0].mxu0
      %2025 = vmatprep.mubr.f32.mxu0 0.0
      %2026 = vmatmul.mubr.f32.gmra.mrb[0].mxu0 %v882
      %v2027 = vpop.f32.mrb[0].mxu0
      %v2028 = vadd.f32 0.0, %v2027
      %v2029 = vpop.f32.mrb[0].mxu0
      %2030 = vmatprep.mubr.f32.mxu0 0.0
      %2031 = vmatmul.mubr.f32.gmra.mrb[0].mxu0 %v884
      %v2032 = vpop.f32.mrb[0].mxu0
      %v2033 = vadd.f32 0.0, %v2032
      %v2034 = vpop.f32.mrb[0].mxu0
      %2035 = vmatprep.mubr.f32.mxu0 0.0
      %2036 = vmatmul.mubr.f32.gmra.mrb[0].mxu0 %v886
      %v2037 = vpop.f32.mrb[0].mxu0
      %v2038 = vadd.f32 0.0, %v2037
      %v2039 = vpop.f32.mrb[0].mxu0
      %2040 = vmatprep.mubr.f32.mxu0 0.0
      %2041 = vmatmul.mubr.f32.gmra.mrb[0].mxu0 %v888
      %v2042 = vpop.f32.mrb[0].mxu0
      %v2043 = vadd.f32 0.0, %v2042
      %v2044 = vpop.f32.mrb[0].mxu0
      %2045 = vmatprep.mubr.f32.mxu0 0.0
      %2046 = vmatmul.mubr.f32.gmra.mrb[0].mxu0 %v890
      %v2047 = vpop.f32.mrb[0].mxu0
      %v2048 = vadd.f32 0.0, %v2047
      %v2049 = vpop.f32.mrb[0].mxu0
      %2050 = vmatprep.mubr.f32.mxu0 0.0
      %2051 = vmatmul.mubr.f32.gmra.mrb[0].mxu0 %v892
      %v2052 = vpop.f32.mrb[0].mxu0
      %v2053 = vadd.f32 0.0, %v2052
      %v2054 = vpop.f32.mrb[0].mxu0
      %2055 = vmatprep.mubr.f32.mxu0 0.0
      %2056 = vmatmul.mubr.f32.gmra.mrb[0].mxu0 %v894
      %v2057 = vpop.f32.mrb[0].mxu0
      %v2058 = vadd.f32 0.0, %v2057
      %v2059 = vpop.f32.mrb[0].mxu0
      %2060 = vmatprep.mubr.f32.mxu0 0.0
      %2061 = vmatmul.mubr.f32.gmra.mrb[0].mxu0 %v1839
      %v2062 = vpop.f32.mrb[0].mxu0
      %v2063 = vadd.f32 0.0, %v2062
      %v2064 = vpop.f32.mrb[0].mxu0
      %2065 = vmatprep.mubr.f32.mxu0 0.0
      %2066 = vmatmul.mubr.f32.gmra.mrb[0].mxu0 %v1841
      %v2067 = vpop.f32.mrb[0].mxu0
      %v2068 = vadd.f32 0.0, %v2067
      %v2069 = vpop.f32.mrb[0].mxu0
      %2070 = vdwg.mxu0
      %v2071 = vadd.f32 %v1799, %v1913
      %v2072 = vadd.f32 %v1800, %v1918
      %v2073 = vadd.f32 %v1801, %v1923
      %v2074 = vadd.f32 %v1802, %v1928
      %v2075 = vadd.f32 %v1803, %v1933
      %v2076 = vadd.f32 %v1804, %v1938
      %v2077 = vadd.f32 %v1805, %v1943
      %v2078 = vadd.f32 %v1806, %v1948
      %v2079 = vadd.f32 %v1807, %v1953
      %v2080 = vadd.f32 %v1808, %v1958
      %v2081 = vadd.f32 %v1809, %v1963
      %v2082 = vadd.f32 %v1810, %v1968
      %v2083 = vadd.f32 %v1811, %v1973
      %v2084 = vadd.f32 %v1812, %v1978
      %v2085 = vadd.f32 %v1813, %v1983
      %v2086 = vadd.f32 %v1814, %v1988
      %v2087 = vadd.f32 %v1815, %v1993
      %v2088 = vadd.f32 %v1816, %v1998
      %v2089 = vadd.f32 %v1817, %v2003
      %v2090 = vadd.f32 %v1818, %v2008
      %v2091 = vadd.f32 %v1819, %v2013
      %v2092 = vadd.f32 %v1820, %v2018
      %v2093 = vadd.f32 %v1821, %v2023
      %v2094 = vadd.f32 %v1822, %v2028
      %v2095 = vadd.f32 %v1823, %v2033
      %v2096 = vadd.f32 %v1824, %v2038
      %v2097 = vadd.f32 %v1825, %v2043
      %v2098 = vadd.f32 %v1826, %v2048
      %v2099 = vadd.f32 %v1827, %v2053
      %v2100 = vadd.f32 %v1828, %v2058
      %v2101 = vadd.f32 %v1829, %v2063
      %v2102 = vadd.f32 %v1830, %v2068
      %v2103 = vrot.slane %v336, 2
      %v2104 = vrot.slane %v337, 2
      %v2105 = vsel %vm1156, %v2103, %v2104
      %v2106 = vrot.slane %v338, 2
      %v2107 = vsel %vm1156, %v2104, %v2106
      %s2108 = scalar_lea.vmem %s239, 20
      %v2109 = vld [vmem:[%s2108] sm:$0xf]
      %v2110 = vsel %vm375, %v2105, 0
      %v2112 = vsel %vm375, %v2107, 0
      %v2115 = vsel %vm472, %v2109, 0
      %2117 = vmatprep.subr.mxu0 0.0
      %2118 = vmatpush1.msra.mxu0 %v2115
      %2119 = vmatprep.subr.mxu0 0.0
      %2120 = vmatpush1.msra.mxu0 0.0
      %2121 = vmatprep.subr.mxu0 0.0
      %2122 = vmatpush1.msra.mxu0 0.0
      %2123 = vmatprep.subr.mxu0 0.0
      %2124 = vmatpush1.msra.mxu0 0.0
      %2125 = vmatprep.subr.mxu0 0.0
      %2126 = vmatpush1.msra.mxu0 0.0
      %2127 = vmatprep.subr.mxu0 0.0
      %2128 = vmatpush1.msra.mxu0 0.0
      %2129 = vmatprep.subr.mxu0 0.0
      %2130 = vmatpush1.msra.mxu0 0.0
      %2131 = vmatprep.subr.mxu0 0.0
      %2132 = vmatpush1.msra.mxu0 0.0
      %2133 = vmatprep.subr.mxu0 0.0
      %2134 = vmatpush1.msra.mxu0 0.0
      %2135 = vmatprep.subr.mxu0 0.0
      %2136 = vmatpush1.msra.mxu0 0.0
      %2137 = vmatprep.subr.mxu0 0.0
      %2138 = vmatpush1.msra.mxu0 0.0
      %2139 = vmatprep.subr.mxu0 0.0
      %2140 = vmatpush1.msra.mxu0 0.0
      %2141 = vmatprep.subr.mxu0 0.0
      %2142 = vmatpush1.msra.mxu0 0.0
      %2143 = vmatprep.subr.mxu0 0.0
      %2144 = vmatpush1.msra.mxu0 0.0
      %2145 = vmatprep.subr.mxu0 0.0
      %2146 = vmatpush1.msra.mxu0 0.0
      %2147 = vmatprep.subr.mxu0 0.0
      %2148 = vmatpush1.msra.mxu0 0.0
      %2149 = vmatprep.subr.mxu0 0.0
      %2150 = vmatpush1.msra.mxu0 0.0
      %2151 = vmatprep.subr.mxu0 0.0
      %2152 = vmatpush1.msra.mxu0 0.0
      %2153 = vmatprep.subr.mxu0 0.0
      %2154 = vmatpush1.msra.mxu0 0.0
      %2155 = vmatprep.subr.mxu0 0.0
      %2156 = vmatpush1.msra.mxu0 0.0
      %2157 = vmatprep.subr.mxu0 0.0
      %2158 = vmatpush1.msra.mxu0 0.0
      %2159 = vmatprep.subr.mxu0 0.0
      %2160 = vmatpush1.msra.mxu0 0.0
      %2161 = vmatprep.subr.mxu0 0.0
      %2162 = vmatpush1.msra.mxu0 0.0
      %2163 = vmatprep.subr.mxu0 0.0
      %2164 = vmatpush1.msra.mxu0 0.0
      %2165 = vmatprep.subr.mxu0 0.0
      %2166 = vmatpush1.msra.mxu0 0.0
      %2167 = vmatprep.subr.mxu0 0.0
      %2168 = vmatpush1.msra.mxu0 0.0
      %2169 = vmatprep.subr.mxu0 0.0
      %2170 = vmatpush1.msra.mxu0 0.0
      %2171 = vmatprep.subr.mxu0 0.0
      %2172 = vmatpush1.msra.mxu0 0.0
      %2173 = vmatprep.subr.mxu0 0.0
      %2174 = vmatpush1.msra.mxu0 0.0
      %2175 = vmatprep.subr.mxu0 0.0
      %2176 = vmatpush1.msra.mxu0 0.0
      %2177 = vmatprep.subr.mxu0 0.0
      %2178 = vmatpush1.msra.mxu0 0.0
      %2179 = vmatprep.subr.mxu0 0.0
      %2180 = vmatpush1.msra.mxu0 0.0
      %2181 = vmatprep.mubr.f32.mxu0 0.0
      %2182 = vmatmul.mubr.f32.gmra.mrb[0].mxu0 %v1243
      %v2183 = vpop.f32.mrb[0].mxu0
      %v2184 = vadd.f32 0.0, %v2183
      %v2185 = vpop.f32.mrb[0].mxu0
      %2186 = vmatprep.mubr.f32.mxu0 0.0
      %2187 = vmatmul.mubr.f32.gmra.mrb[0].mxu0 %v1245
      %v2188 = vpop.f32.mrb[0].mxu0
      %v2189 = vadd.f32 0.0, %v2188
      %v2190 = vpop.f32.mrb[0].mxu0
      %2191 = vmatprep.mubr.f32.mxu0 0.0
      %2192 = vmatmul.mubr.f32.gmra.mrb[0].mxu0 %v1247
      %v2193 = vpop.f32.mrb[0].mxu0
      %v2194 = vadd.f32 0.0, %v2193
      %v2195 = vpop.f32.mrb[0].mxu0
      %2196 = vmatprep.mubr.f32.mxu0 0.0
      %2197 = vmatmul.mubr.f32.gmra.mrb[0].mxu0 %v1249
      %v2198 = vpop.f32.mrb[0].mxu0
      %v2199 = vadd.f32 0.0, %v2198
      %v2200 = vpop.f32.mrb[0].mxu0
      %2201 = vmatprep.mubr.f32.mxu0 0.0
      %2202 = vmatmul.mubr.f32.gmra.mrb[0].mxu0 %v1251
      %v2203 = vpop.f32.mrb[0].mxu0
      %v2204 = vadd.f32 0.0, %v2203
      %v2205 = vpop.f32.mrb[0].mxu0
      %2206 = vmatprep.mubr.f32.mxu0 0.0
      %2207 = vmatmul.mubr.f32.gmra.mrb[0].mxu0 %v1253
      %v2208 = vpop.f32.mrb[0].mxu0
      %v2209 = vadd.f32 0.0, %v2208
      %v2210 = vpop.f32.mrb[0].mxu0
      %2211 = vmatprep.mubr.f32.mxu0 0.0
      %2212 = vmatmul.mubr.f32.gmra.mrb[0].mxu0 %v1255
      %v2213 = vpop.f32.mrb[0].mxu0
      %v2214 = vadd.f32 0.0, %v2213
      %v2215 = vpop.f32.mrb[0].mxu0
      %2216 = vmatprep.mubr.f32.mxu0 0.0
      %2217 = vmatmul.mubr.f32.gmra.mrb[0].mxu0 %v1257
      %v2218 = vpop.f32.mrb[0].mxu0
      %v2219 = vadd.f32 0.0, %v2218
      %v2220 = vpop.f32.mrb[0].mxu0
      %2221 = vmatprep.mubr.f32.mxu0 0.0
      %2222 = vmatmul.mubr.f32.gmra.mrb[0].mxu0 %v1259
      %v2223 = vpop.f32.mrb[0].mxu0
      %v2224 = vadd.f32 0.0, %v2223
      %v2225 = vpop.f32.mrb[0].mxu0
      %2226 = vmatprep.mubr.f32.mxu0 0.0
      %2227 = vmatmul.mubr.f32.gmra.mrb[0].mxu0 %v1261
      %v2228 = vpop.f32.mrb[0].mxu0
      %v2229 = vadd.f32 0.0, %v2228
      %v2230 = vpop.f32.mrb[0].mxu0
      %2231 = vmatprep.mubr.f32.mxu0 0.0
      %2232 = vmatmul.mubr.f32.gmra.mrb[0].mxu0 %v1263
      %v2233 = vpop.f32.mrb[0].mxu0
      %v2234 = vadd.f32 0.0, %v2233
      %v2235 = vpop.f32.mrb[0].mxu0
      %2236 = vmatprep.mubr.f32.mxu0 0.0
      %2237 = vmatmul.mubr.f32.gmra.mrb[0].mxu0 %v1265
      %v2238 = vpop.f32.mrb[0].mxu0
      %v2239 = vadd.f32 0.0, %v2238
      %v2240 = vpop.f32.mrb[0].mxu0
      %2241 = vmatprep.mubr.f32.mxu0 0.0
      %2242 = vmatmul.mubr.f32.gmra.mrb[0].mxu0 %v1267
      %v2243 = vpop.f32.mrb[0].mxu0
      %v2244 = vadd.f32 0.0, %v2243
      %v2245 = vpop.f32.mrb[0].mxu0
      %2246 = vmatprep.mubr.f32.mxu0 0.0
      %2247 = vmatmul.mubr.f32.gmra.mrb[0].mxu0 %v1269
      %v2248 = vpop.f32.mrb[0].mxu0
      %v2249 = vadd.f32 0.0, %v2248
      %v2250 = vpop.f32.mrb[0].mxu0
      %2251 = vmatprep.mubr.f32.mxu0 0.0
      %2252 = vmatmul.mubr.f32.gmra.mrb[0].mxu0 %v1271
      %v2253 = vpop.f32.mrb[0].mxu0
      %v2254 = vadd.f32 0.0, %v2253
      %v2255 = vpop.f32.mrb[0].mxu0
      %2256 = vmatprep.mubr.f32.mxu0 0.0
      %2257 = vmatmul.mubr.f32.gmra.mrb[0].mxu0 %v1273
      %v2258 = vpop.f32.mrb[0].mxu0
      %v2259 = vadd.f32 0.0, %v2258
      %v2260 = vpop.f32.mrb[0].mxu0
      %2261 = vmatprep.mubr.f32.mxu0 0.0
      %2262 = vmatmul.mubr.f32.gmra.mrb[0].mxu0 %v1275
      %v2263 = vpop.f32.mrb[0].mxu0
      %v2264 = vadd.f32 0.0, %v2263
      %v2265 = vpop.f32.mrb[0].mxu0
      %2266 = vmatprep.mubr.f32.mxu0 0.0
      %2267 = vmatmul.mubr.f32.gmra.mrb[0].mxu0 %v1277
      %v2268 = vpop.f32.mrb[0].mxu0
      %v2269 = vadd.f32 0.0, %v2268
      %v2270 = vpop.f32.mrb[0].mxu0
      %2271 = vmatprep.mubr.f32.mxu0 0.0
      %2272 = vmatmul.mubr.f32.gmra.mrb[0].mxu0 %v1279
      %v2273 = vpop.f32.mrb[0].mxu0
      %v2274 = vadd.f32 0.0, %v2273
      %v2275 = vpop.f32.mrb[0].mxu0
      %2276 = vmatprep.mubr.f32.mxu0 0.0
      %2277 = vmatmul.mubr.f32.gmra.mrb[0].mxu0 %v1281
      %v2278 = vpop.f32.mrb[0].mxu0
      %v2279 = vadd.f32 0.0, %v2278
      %v2280 = vpop.f32.mrb[0].mxu0
      %2281 = vmatprep.mubr.f32.mxu0 0.0
      %2282 = vmatmul.mubr.f32.gmra.mrb[0].mxu0 %v1283
      %v2283 = vpop.f32.mrb[0].mxu0
      %v2284 = vadd.f32 0.0, %v2283
      %v2285 = vpop.f32.mrb[0].mxu0
      %2286 = vmatprep.mubr.f32.mxu0 0.0
      %2287 = vmatmul.mubr.f32.gmra.mrb[0].mxu0 %v1285
      %v2288 = vpop.f32.mrb[0].mxu0
      %v2289 = vadd.f32 0.0, %v2288
      %v2290 = vpop.f32.mrb[0].mxu0
      %2291 = vmatprep.mubr.f32.mxu0 0.0
      %2292 = vmatmul.mubr.f32.gmra.mrb[0].mxu0 %v1287
      %v2293 = vpop.f32.mrb[0].mxu0
      %v2294 = vadd.f32 0.0, %v2293
      %v2295 = vpop.f32.mrb[0].mxu0
      %2296 = vmatprep.mubr.f32.mxu0 0.0
      %2297 = vmatmul.mubr.f32.gmra.mrb[0].mxu0 %v1289
      %v2298 = vpop.f32.mrb[0].mxu0
      %v2299 = vadd.f32 0.0, %v2298
      %v2300 = vpop.f32.mrb[0].mxu0
      %2301 = vmatprep.mubr.f32.mxu0 0.0
      %2302 = vmatmul.mubr.f32.gmra.mrb[0].mxu0 %v1291
      %v2303 = vpop.f32.mrb[0].mxu0
      %v2304 = vadd.f32 0.0, %v2303
      %v2305 = vpop.f32.mrb[0].mxu0
      %2306 = vmatprep.mubr.f32.mxu0 0.0
      %2307 = vmatmul.mubr.f32.gmra.mrb[0].mxu0 %v1293
      %v2308 = vpop.f32.mrb[0].mxu0
      %v2309 = vadd.f32 0.0, %v2308
      %v2310 = vpop.f32.mrb[0].mxu0
      %2311 = vmatprep.mubr.f32.mxu0 0.0
      %2312 = vmatmul.mubr.f32.gmra.mrb[0].mxu0 %v1295
      %v2313 = vpop.f32.mrb[0].mxu0
      %v2314 = vadd.f32 0.0, %v2313
      %v2315 = vpop.f32.mrb[0].mxu0
      %2316 = vmatprep.mubr.f32.mxu0 0.0
      %2317 = vmatmul.mubr.f32.gmra.mrb[0].mxu0 %v1297
      %v2318 = vpop.f32.mrb[0].mxu0
      %v2319 = vadd.f32 0.0, %v2318
      %v2320 = vpop.f32.mrb[0].mxu0
      %2321 = vmatprep.mubr.f32.mxu0 0.0
      %2322 = vmatmul.mubr.f32.gmra.mrb[0].mxu0 %v1299
      %v2323 = vpop.f32.mrb[0].mxu0
      %v2324 = vadd.f32 0.0, %v2323
      %v2325 = vpop.f32.mrb[0].mxu0
      %2326 = vmatprep.mubr.f32.mxu0 0.0
      %2327 = vmatmul.mubr.f32.gmra.mrb[0].mxu0 %v1301
      %v2328 = vpop.f32.mrb[0].mxu0
      %v2329 = vadd.f32 0.0, %v2328
      %v2330 = vpop.f32.mrb[0].mxu0
      %2331 = vmatprep.mubr.f32.mxu0 0.0
      %2332 = vmatmul.mubr.f32.gmra.mrb[0].mxu0 %v2110
      %v2333 = vpop.f32.mrb[0].mxu0
      %v2334 = vadd.f32 0.0, %v2333
      %v2335 = vpop.f32.mrb[0].mxu0
      %2336 = vmatprep.mubr.f32.mxu0 0.0
      %2337 = vmatmul.mubr.f32.gmra.mrb[0].mxu0 %v2112
      %v2338 = vpop.f32.mrb[0].mxu0
      %v2339 = vadd.f32 0.0, %v2338
      %v2340 = vpop.f32.mrb[0].mxu0
      %2341 = vdwg.mxu0
      %v2342 = vadd.f32 %v2071, %v2184
      %v2343 = vadd.f32 %v2072, %v2189
      %v2344 = vadd.f32 %v2073, %v2194
      %v2345 = vadd.f32 %v2074, %v2199
      %v2346 = vadd.f32 %v2075, %v2204
      %v2347 = vadd.f32 %v2076, %v2209
      %v2348 = vadd.f32 %v2077, %v2214
      %v2349 = vadd.f32 %v2078, %v2219
      %v2350 = vadd.f32 %v2079, %v2224
      %v2351 = vadd.f32 %v2080, %v2229
      %v2352 = vadd.f32 %v2081, %v2234
      %v2353 = vadd.f32 %v2082, %v2239
      %v2354 = vadd.f32 %v2083, %v2244
      %v2355 = vadd.f32 %v2084, %v2249
      %v2356 = vadd.f32 %v2085, %v2254
      %v2357 = vadd.f32 %v2086, %v2259
      %v2358 = vadd.f32 %v2087, %v2264
      %v2359 = vadd.f32 %v2088, %v2269
      %v2360 = vadd.f32 %v2089, %v2274
      %v2361 = vadd.f32 %v2090, %v2279
      %v2362 = vadd.f32 %v2091, %v2284
      %v2363 = vadd.f32 %v2092, %v2289
      %v2364 = vadd.f32 %v2093, %v2294
      %v2365 = vadd.f32 %v2094, %v2299
      %v2366 = vadd.f32 %v2095, %v2304
      %v2367 = vadd.f32 %v2096, %v2309
      %v2368 = vadd.f32 %v2097, %v2314
      %v2369 = vadd.f32 %v2098, %v2319
      %v2370 = vadd.f32 %v2099, %v2324
      %v2371 = vadd.f32 %v2100, %v2329
      %v2372 = vadd.f32 %v2101, %v2334
      %v2373 = vadd.f32 %v2102, %v2339
      %s2374 = scalar_lea.vmem %s239, 24
      %v2375 = vld [vmem:[%s2374] sm:$0xf]
      %v2377 = vsel %vm375, %v339, 0
      %v2380 = vsel %vm375, %v340, 0
      %v2383 = vsel %vm472, %v2375, 0
      %2385 = vmatprep.subr.mxu0 0.0
      %2386 = vmatpush1.msra.mxu0 %v2383
      %2387 = vmatprep.subr.mxu0 0.0
      %2388 = vmatpush1.msra.mxu0 0.0
      %2389 = vmatprep.subr.mxu0 0.0
      %2390 = vmatpush1.msra.mxu0 0.0
      %2391 = vmatprep.subr.mxu0 0.0
      %2392 = vmatpush1.msra.mxu0 0.0
      %2393 = vmatprep.subr.mxu0 0.0
      %2394 = vmatpush1.msra.mxu0 0.0
      %2395 = vmatprep.subr.mxu0 0.0
      %2396 = vmatpush1.msra.mxu0 0.0
      %2397 = vmatprep.subr.mxu0 0.0
      %2398 = vmatpush1.msra.mxu0 0.0
      %2399 = vmatprep.subr.mxu0 0.0
      %2400 = vmatpush1.msra.mxu0 0.0
      %2401 = vmatprep.subr.mxu0 0.0
      %2402 = vmatpush1.msra.mxu0 0.0
      %2403 = vmatprep.subr.mxu0 0.0
      %2404 = vmatpush1.msra.mxu0 0.0
      %2405 = vmatprep.subr.mxu0 0.0
      %2406 = vmatpush1.msra.mxu0 0.0
      %2407 = vmatprep.subr.mxu0 0.0
      %2408 = vmatpush1.msra.mxu0 0.0
      %2409 = vmatprep.subr.mxu0 0.0
      %2410 = vmatpush1.msra.mxu0 0.0
      %2411 = vmatprep.subr.mxu0 0.0
      %2412 = vmatpush1.msra.mxu0 0.0
      %2413 = vmatprep.subr.mxu0 0.0
      %2414 = vmatpush1.msra.mxu0 0.0
      %2415 = vmatprep.subr.mxu0 0.0
      %2416 = vmatpush1.msra.mxu0 0.0
      %2417 = vmatprep.subr.mxu0 0.0
      %2418 = vmatpush1.msra.mxu0 0.0
      %2419 = vmatprep.subr.mxu0 0.0
      %2420 = vmatpush1.msra.mxu0 0.0
      %2421 = vmatprep.subr.mxu0 0.0
      %2422 = vmatpush1.msra.mxu0 0.0
      %2423 = vmatprep.subr.mxu0 0.0
      %2424 = vmatpush1.msra.mxu0 0.0
      %2425 = vmatprep.subr.mxu0 0.0
      %2426 = vmatpush1.msra.mxu0 0.0
      %2427 = vmatprep.subr.mxu0 0.0
      %2428 = vmatpush1.msra.mxu0 0.0
      %2429 = vmatprep.subr.mxu0 0.0
      %2430 = vmatpush1.msra.mxu0 0.0
      %2431 = vmatprep.subr.mxu0 0.0
      %2432 = vmatpush1.msra.mxu0 0.0
      %2433 = vmatprep.subr.mxu0 0.0
      %2434 = vmatpush1.msra.mxu0 0.0
      %2435 = vmatprep.subr.mxu0 0.0
      %2436 = vmatpush1.msra.mxu0 0.0
      %2437 = vmatprep.subr.mxu0 0.0
      %2438 = vmatpush1.msra.mxu0 0.0
      %2439 = vmatprep.subr.mxu0 0.0
      %2440 = vmatpush1.msra.mxu0 0.0
      %2441 = vmatprep.subr.mxu0 0.0
      %2442 = vmatpush1.msra.mxu0 0.0
      %2443 = vmatprep.subr.mxu0 0.0
      %2444 = vmatpush1.msra.mxu0 0.0
      %2445 = vmatprep.subr.mxu0 0.0
      %2446 = vmatpush1.msra.mxu0 0.0
      %2447 = vmatprep.subr.mxu0 0.0
      %2448 = vmatpush1.msra.mxu0 0.0
      %2449 = vmatprep.mubr.f32.mxu0 0.0
      %2450 = vmatmul.mubr.f32.gmra.mrb[0].mxu0 %v389
      %v2451 = vpop.f32.mrb[0].mxu0
      %v2452 = vadd.f32 0.0, %v2451
      %v2453 = vpop.f32.mrb[0].mxu0
      %2454 = vmatprep.mubr.f32.mxu0 0.0
      %2455 = vmatmul.mubr.f32.gmra.mrb[0].mxu0 %v392
      %v2456 = vpop.f32.mrb[0].mxu0
      %v2457 = vadd.f32 0.0, %v2456
      %v2458 = vpop.f32.mrb[0].mxu0
      %2459 = vmatprep.mubr.f32.mxu0 0.0
      %2460 = vmatmul.mubr.f32.gmra.mrb[0].mxu0 %v395
      %v2461 = vpop.f32.mrb[0].mxu0
      %v2462 = vadd.f32 0.0, %v2461
      %v2463 = vpop.f32.mrb[0].mxu0
      %2464 = vmatprep.mubr.f32.mxu0 0.0
      %2465 = vmatmul.mubr.f32.gmra.mrb[0].mxu0 %v398
      %v2466 = vpop.f32.mrb[0].mxu0
      %v2467 = vadd.f32 0.0, %v2466
      %v2468 = vpop.f32.mrb[0].mxu0
      %2469 = vmatprep.mubr.f32.mxu0 0.0
      %2470 = vmatmul.mubr.f32.gmra.mrb[0].mxu0 %v401
      %v2471 = vpop.f32.mrb[0].mxu0
      %v2472 = vadd.f32 0.0, %v2471
      %v2473 = vpop.f32.mrb[0].mxu0
      %2474 = vmatprep.mubr.f32.mxu0 0.0
      %2475 = vmatmul.mubr.f32.gmra.mrb[0].mxu0 %v404
      %v2476 = vpop.f32.mrb[0].mxu0
      %v2477 = vadd.f32 0.0, %v2476
      %v2478 = vpop.f32.mrb[0].mxu0
      %2479 = vmatprep.mubr.f32.mxu0 0.0
      %2480 = vmatmul.mubr.f32.gmra.mrb[0].mxu0 %v407
      %v2481 = vpop.f32.mrb[0].mxu0
      %v2482 = vadd.f32 0.0, %v2481
      %v2483 = vpop.f32.mrb[0].mxu0
      %2484 = vmatprep.mubr.f32.mxu0 0.0
      %2485 = vmatmul.mubr.f32.gmra.mrb[0].mxu0 %v410
      %v2486 = vpop.f32.mrb[0].mxu0
      %v2487 = vadd.f32 0.0, %v2486
      %v2488 = vpop.f32.mrb[0].mxu0
      %2489 = vmatprep.mubr.f32.mxu0 0.0
      %2490 = vmatmul.mubr.f32.gmra.mrb[0].mxu0 %v413
      %v2491 = vpop.f32.mrb[0].mxu0
      %v2492 = vadd.f32 0.0, %v2491
      %v2493 = vpop.f32.mrb[0].mxu0
      %2494 = vmatprep.mubr.f32.mxu0 0.0
      %2495 = vmatmul.mubr.f32.gmra.mrb[0].mxu0 %v416
      %v2496 = vpop.f32.mrb[0].mxu0
      %v2497 = vadd.f32 0.0, %v2496
      %v2498 = vpop.f32.mrb[0].mxu0
      %2499 = vmatprep.mubr.f32.mxu0 0.0
      %2500 = vmatmul.mubr.f32.gmra.mrb[0].mxu0 %v419
      %v2501 = vpop.f32.mrb[0].mxu0
      %v2502 = vadd.f32 0.0, %v2501
      %v2503 = vpop.f32.mrb[0].mxu0
      %2504 = vmatprep.mubr.f32.mxu0 0.0
      %2505 = vmatmul.mubr.f32.gmra.mrb[0].mxu0 %v422
      %v2506 = vpop.f32.mrb[0].mxu0
      %v2507 = vadd.f32 0.0, %v2506
      %v2508 = vpop.f32.mrb[0].mxu0
      %2509 = vmatprep.mubr.f32.mxu0 0.0
      %2510 = vmatmul.mubr.f32.gmra.mrb[0].mxu0 %v425
      %v2511 = vpop.f32.mrb[0].mxu0
      %v2512 = vadd.f32 0.0, %v2511
      %v2513 = vpop.f32.mrb[0].mxu0
      %2514 = vmatprep.mubr.f32.mxu0 0.0
      %2515 = vmatmul.mubr.f32.gmra.mrb[0].mxu0 %v428
      %v2516 = vpop.f32.mrb[0].mxu0
      %v2517 = vadd.f32 0.0, %v2516
      %v2518 = vpop.f32.mrb[0].mxu0
      %2519 = vmatprep.mubr.f32.mxu0 0.0
      %2520 = vmatmul.mubr.f32.gmra.mrb[0].mxu0 %v431
      %v2521 = vpop.f32.mrb[0].mxu0
      %v2522 = vadd.f32 0.0, %v2521
      %v2523 = vpop.f32.mrb[0].mxu0
      %2524 = vmatprep.mubr.f32.mxu0 0.0
      %2525 = vmatmul.mubr.f32.gmra.mrb[0].mxu0 %v434
      %v2526 = vpop.f32.mrb[0].mxu0
      %v2527 = vadd.f32 0.0, %v2526
      %v2528 = vpop.f32.mrb[0].mxu0
      %2529 = vmatprep.mubr.f32.mxu0 0.0
      %2530 = vmatmul.mubr.f32.gmra.mrb[0].mxu0 %v437
      %v2531 = vpop.f32.mrb[0].mxu0
      %v2532 = vadd.f32 0.0, %v2531
      %v2533 = vpop.f32.mrb[0].mxu0
      %2534 = vmatprep.mubr.f32.mxu0 0.0
      %2535 = vmatmul.mubr.f32.gmra.mrb[0].mxu0 %v440
      %v2536 = vpop.f32.mrb[0].mxu0
      %v2537 = vadd.f32 0.0, %v2536
      %v2538 = vpop.f32.mrb[0].mxu0
      %2539 = vmatprep.mubr.f32.mxu0 0.0
      %2540 = vmatmul.mubr.f32.gmra.mrb[0].mxu0 %v443
      %v2541 = vpop.f32.mrb[0].mxu0
      %v2542 = vadd.f32 0.0, %v2541
      %v2543 = vpop.f32.mrb[0].mxu0
      %2544 = vmatprep.mubr.f32.mxu0 0.0
      %2545 = vmatmul.mubr.f32.gmra.mrb[0].mxu0 %v446
      %v2546 = vpop.f32.mrb[0].mxu0
      %v2547 = vadd.f32 0.0, %v2546
      %v2548 = vpop.f32.mrb[0].mxu0
      %2549 = vmatprep.mubr.f32.mxu0 0.0
      %2550 = vmatmul.mubr.f32.gmra.mrb[0].mxu0 %v449
      %v2551 = vpop.f32.mrb[0].mxu0
      %v2552 = vadd.f32 0.0, %v2551
      %v2553 = vpop.f32.mrb[0].mxu0
      %2554 = vmatprep.mubr.f32.mxu0 0.0
      %2555 = vmatmul.mubr.f32.gmra.mrb[0].mxu0 %v452
      %v2556 = vpop.f32.mrb[0].mxu0
      %v2557 = vadd.f32 0.0, %v2556
      %v2558 = vpop.f32.mrb[0].mxu0
      %2559 = vmatprep.mubr.f32.mxu0 0.0
      %2560 = vmatmul.mubr.f32.gmra.mrb[0].mxu0 %v455
      %v2561 = vpop.f32.mrb[0].mxu0
      %v2562 = vadd.f32 0.0, %v2561
      %v2563 = vpop.f32.mrb[0].mxu0
      %2564 = vmatprep.mubr.f32.mxu0 0.0
      %2565 = vmatmul.mubr.f32.gmra.mrb[0].mxu0 %v458
      %v2566 = vpop.f32.mrb[0].mxu0
      %v2567 = vadd.f32 0.0, %v2566
      %v2568 = vpop.f32.mrb[0].mxu0
      %2569 = vmatprep.mubr.f32.mxu0 0.0
      %2570 = vmatmul.mubr.f32.gmra.mrb[0].mxu0 %v461
      %v2571 = vpop.f32.mrb[0].mxu0
      %v2572 = vadd.f32 0.0, %v2571
      %v2573 = vpop.f32.mrb[0].mxu0
      %2574 = vmatprep.mubr.f32.mxu0 0.0
      %2575 = vmatmul.mubr.f32.gmra.mrb[0].mxu0 %v464
      %v2576 = vpop.f32.mrb[0].mxu0
      %v2577 = vadd.f32 0.0, %v2576
      %v2578 = vpop.f32.mrb[0].mxu0
      %2579 = vmatprep.mubr.f32.mxu0 0.0
      %2580 = vmatmul.mubr.f32.gmra.mrb[0].mxu0 %v467
      %v2581 = vpop.f32.mrb[0].mxu0
      %v2582 = vadd.f32 0.0, %v2581
      %v2583 = vpop.f32.mrb[0].mxu0
      %2584 = vmatprep.mubr.f32.mxu0 0.0
      %2585 = vmatmul.mubr.f32.gmra.mrb[0].mxu0 %v470
      %v2586 = vpop.f32.mrb[0].mxu0
      %v2587 = vadd.f32 0.0, %v2586
      %v2588 = vpop.f32.mrb[0].mxu0
      %2589 = vmatprep.mubr.f32.mxu0 0.0
      %2590 = vmatmul.mubr.f32.gmra.mrb[0].mxu0 %v1566
      %v2591 = vpop.f32.mrb[0].mxu0
      %v2592 = vadd.f32 0.0, %v2591
      %v2593 = vpop.f32.mrb[0].mxu0
      %2594 = vmatprep.mubr.f32.mxu0 0.0
      %2595 = vmatmul.mubr.f32.gmra.mrb[0].mxu0 %v1569
      %v2596 = vpop.f32.mrb[0].mxu0
      %v2597 = vadd.f32 0.0, %v2596
      %v2598 = vpop.f32.mrb[0].mxu0
      %2599 = vmatprep.mubr.f32.mxu0 0.0
      %2600 = vmatmul.mubr.f32.gmra.mrb[0].mxu0 %v2377
      %v2601 = vpop.f32.mrb[0].mxu0
      %v2602 = vadd.f32 0.0, %v2601
      %v2603 = vpop.f32.mrb[0].mxu0
      %2604 = vmatprep.mubr.f32.mxu0 0.0
      %2605 = vmatmul.mubr.f32.gmra.mrb[0].mxu0 %v2380
      %v2606 = vpop.f32.mrb[0].mxu0
      %v2607 = vadd.f32 0.0, %v2606
      %v2608 = vpop.f32.mrb[0].mxu0
      %2609 = vdwg.mxu0
      %v2610 = vadd.f32 %v2342, %v2452
      %v2611 = vadd.f32 %v2343, %v2457
      %v2612 = vadd.f32 %v2344, %v2462
      %v2613 = vadd.f32 %v2345, %v2467
      %v2614 = vadd.f32 %v2346, %v2472
      %v2615 = vadd.f32 %v2347, %v2477
      %v2616 = vadd.f32 %v2348, %v2482
      %v2617 = vadd.f32 %v2349, %v2487
      %v2618 = vadd.f32 %v2350, %v2492
      %v2619 = vadd.f32 %v2351, %v2497
      %v2620 = vadd.f32 %v2352, %v2502
      %v2621 = vadd.f32 %v2353, %v2507
      %v2622 = vadd.f32 %v2354, %v2512
      %v2623 = vadd.f32 %v2355, %v2517
      %v2624 = vadd.f32 %v2356, %v2522
      %v2625 = vadd.f32 %v2357, %v2527
      %v2626 = vadd.f32 %v2358, %v2532
      %v2627 = vadd.f32 %v2359, %v2537
      %v2628 = vadd.f32 %v2360, %v2542
      %v2629 = vadd.f32 %v2361, %v2547
      %v2630 = vadd.f32 %v2362, %v2552
      %v2631 = vadd.f32 %v2363, %v2557
      %v2632 = vadd.f32 %v2364, %v2562
      %v2633 = vadd.f32 %v2365, %v2567
      %v2634 = vadd.f32 %v2366, %v2572
      %v2635 = vadd.f32 %v2367, %v2577
      %v2636 = vadd.f32 %v2368, %v2582
      %v2637 = vadd.f32 %v2369, %v2587
      %v2638 = vadd.f32 %v2370, %v2592
      %v2639 = vadd.f32 %v2371, %v2597
      %v2640 = vadd.f32 %v2372, %v2602
      %v2641 = vadd.f32 %v2373, %v2607
      %v2643 = vrot.slane %v339, 1
      %v2644 = vrot.slane %v340, 1
      %v2645 = vsel %vm749, %v2643, %v2644
      %v2646 = vrot.slane %v341, 1
      %v2647 = vsel %vm749, %v2644, %v2646
      %s2648 = scalar_lea.vmem %s239, 28
      %v2649 = vld [vmem:[%s2648] sm:$0xf]
      %v2650 = vsel %vm375, %v2645, 0
      %v2652 = vsel %vm375, %v2647, 0
      %v2655 = vsel %vm472, %v2649, 0
      %2657 = vmatprep.subr.mxu0 0.0
      %2658 = vmatpush1.msra.mxu0 %v2655
      %2659 = vmatprep.subr.mxu0 0.0
      %2660 = vmatpush1.msra.mxu0 0.0
      %2661 = vmatprep.subr.mxu0 0.0
      %2662 = vmatpush1.msra.mxu0 0.0
      %2663 = vmatprep.subr.mxu0 0.0
      %2664 = vmatpush1.msra.mxu0 0.0
      %2665 = vmatprep.subr.mxu0 0.0
      %2666 = vmatpush1.msra.mxu0 0.0
      %2667 = vmatprep.subr.mxu0 0.0
      %2668 = vmatpush1.msra.mxu0 0.0
      %2669 = vmatprep.subr.mxu0 0.0
      %2670 = vmatpush1.msra.mxu0 0.0
      %2671 = vmatprep.subr.mxu0 0.0
      %2672 = vmatpush1.msra.mxu0 0.0
      %2673 = vmatprep.subr.mxu0 0.0
      %2674 = vmatpush1.msra.mxu0 0.0
      %2675 = vmatprep.subr.mxu0 0.0
      %2676 = vmatpush1.msra.mxu0 0.0
      %2677 = vmatprep.subr.mxu0 0.0
      %2678 = vmatpush1.msra.mxu0 0.0
      %2679 = vmatprep.subr.mxu0 0.0
      %2680 = vmatpush1.msra.mxu0 0.0
      %2681 = vmatprep.subr.mxu0 0.0
      %2682 = vmatpush1.msra.mxu0 0.0
      %2683 = vmatprep.subr.mxu0 0.0
      %2684 = vmatpush1.msra.mxu0 0.0
      %2685 = vmatprep.subr.mxu0 0.0
      %2686 = vmatpush1.msra.mxu0 0.0
      %2687 = vmatprep.subr.mxu0 0.0
      %2688 = vmatpush1.msra.mxu0 0.0
      %2689 = vmatprep.subr.mxu0 0.0
      %2690 = vmatpush1.msra.mxu0 0.0
      %2691 = vmatprep.subr.mxu0 0.0
      %2692 = vmatpush1.msra.mxu0 0.0
      %2693 = vmatprep.subr.mxu0 0.0
      %2694 = vmatpush1.msra.mxu0 0.0
      %2695 = vmatprep.subr.mxu0 0.0
      %2696 = vmatpush1.msra.mxu0 0.0
      %2697 = vmatprep.subr.mxu0 0.0
      %2698 = vmatpush1.msra.mxu0 0.0
      %2699 = vmatprep.subr.mxu0 0.0
      %2700 = vmatpush1.msra.mxu0 0.0
      %2701 = vmatprep.subr.mxu0 0.0
      %2702 = vmatpush1.msra.mxu0 0.0
      %2703 = vmatprep.subr.mxu0 0.0
      %2704 = vmatpush1.msra.mxu0 0.0
      %2705 = vmatprep.subr.mxu0 0.0
      %2706 = vmatpush1.msra.mxu0 0.0
      %2707 = vmatprep.subr.mxu0 0.0
      %2708 = vmatpush1.msra.mxu0 0.0
      %2709 = vmatprep.subr.mxu0 0.0
      %2710 = vmatpush1.msra.mxu0 0.0
      %2711 = vmatprep.subr.mxu0 0.0
      %2712 = vmatpush1.msra.mxu0 0.0
      %2713 = vmatprep.subr.mxu0 0.0
      %2714 = vmatpush1.msra.mxu0 0.0
      %2715 = vmatprep.subr.mxu0 0.0
      %2716 = vmatpush1.msra.mxu0 0.0
      %2717 = vmatprep.subr.mxu0 0.0
      %2718 = vmatpush1.msra.mxu0 0.0
      %2719 = vmatprep.subr.mxu0 0.0
      %2720 = vmatpush1.msra.mxu0 0.0
      %2721 = vmatprep.mubr.f32.mxu0 0.0
      %2722 = vmatmul.mubr.f32.gmra.mrb[0].mxu0 %v840
      %v2723 = vpop.f32.mrb[0].mxu0
      %v2724 = vadd.f32 0.0, %v2723
      %v2725 = vpop.f32.mrb[0].mxu0
      %2726 = vmatprep.mubr.f32.mxu0 0.0
      %2727 = vmatmul.mubr.f32.gmra.mrb[0].mxu0 %v842
      %v2728 = vpop.f32.mrb[0].mxu0
      %v2729 = vadd.f32 0.0, %v2728
      %v2730 = vpop.f32.mrb[0].mxu0
      %2731 = vmatprep.mubr.f32.mxu0 0.0
      %2732 = vmatmul.mubr.f32.gmra.mrb[0].mxu0 %v844
      %v2733 = vpop.f32.mrb[0].mxu0
      %v2734 = vadd.f32 0.0, %v2733
      %v2735 = vpop.f32.mrb[0].mxu0
      %2736 = vmatprep.mubr.f32.mxu0 0.0
      %2737 = vmatmul.mubr.f32.gmra.mrb[0].mxu0 %v846
      %v2738 = vpop.f32.mrb[0].mxu0
      %v2739 = vadd.f32 0.0, %v2738
      %v2740 = vpop.f32.mrb[0].mxu0
      %2741 = vmatprep.mubr.f32.mxu0 0.0
      %2742 = vmatmul.mubr.f32.gmra.mrb[0].mxu0 %v848
      %v2743 = vpop.f32.mrb[0].mxu0
      %v2744 = vadd.f32 0.0, %v2743
      %v2745 = vpop.f32.mrb[0].mxu0
      %2746 = vmatprep.mubr.f32.mxu0 0.0
      %2747 = vmatmul.mubr.f32.gmra.mrb[0].mxu0 %v850
      %v2748 = vpop.f32.mrb[0].mxu0
      %v2749 = vadd.f32 0.0, %v2748
      %v2750 = vpop.f32.mrb[0].mxu0
      %2751 = vmatprep.mubr.f32.mxu0 0.0
      %2752 = vmatmul.mubr.f32.gmra.mrb[0].mxu0 %v852
      %v2753 = vpop.f32.mrb[0].mxu0
      %v2754 = vadd.f32 0.0, %v2753
      %v2755 = vpop.f32.mrb[0].mxu0
      %2756 = vmatprep.mubr.f32.mxu0 0.0
      %2757 = vmatmul.mubr.f32.gmra.mrb[0].mxu0 %v854
      %v2758 = vpop.f32.mrb[0].mxu0
      %v2759 = vadd.f32 0.0, %v2758
      %v2760 = vpop.f32.mrb[0].mxu0
      %2761 = vmatprep.mubr.f32.mxu0 0.0
      %2762 = vmatmul.mubr.f32.gmra.mrb[0].mxu0 %v856
      %v2763 = vpop.f32.mrb[0].mxu0
      %v2764 = vadd.f32 0.0, %v2763
      %v2765 = vpop.f32.mrb[0].mxu0
      %2766 = vmatprep.mubr.f32.mxu0 0.0
      %2767 = vmatmul.mubr.f32.gmra.mrb[0].mxu0 %v858
      %v2768 = vpop.f32.mrb[0].mxu0
      %v2769 = vadd.f32 0.0, %v2768
      %v2770 = vpop.f32.mrb[0].mxu0
      %2771 = vmatprep.mubr.f32.mxu0 0.0
      %2772 = vmatmul.mubr.f32.gmra.mrb[0].mxu0 %v860
      %v2773 = vpop.f32.mrb[0].mxu0
      %v2774 = vadd.f32 0.0, %v2773
      %v2775 = vpop.f32.mrb[0].mxu0
      %2776 = vmatprep.mubr.f32.mxu0 0.0
      %2777 = vmatmul.mubr.f32.gmra.mrb[0].mxu0 %v862
      %v2778 = vpop.f32.mrb[0].mxu0
      %v2779 = vadd.f32 0.0, %v2778
      %v2780 = vpop.f32.mrb[0].mxu0
      %2781 = vmatprep.mubr.f32.mxu0 0.0
      %2782 = vmatmul.mubr.f32.gmra.mrb[0].mxu0 %v864
      %v2783 = vpop.f32.mrb[0].mxu0
      %v2784 = vadd.f32 0.0, %v2783
      %v2785 = vpop.f32.mrb[0].mxu0
      %2786 = vmatprep.mubr.f32.mxu0 0.0
      %2787 = vmatmul.mubr.f32.gmra.mrb[0].mxu0 %v866
      %v2788 = vpop.f32.mrb[0].mxu0
      %v2789 = vadd.f32 0.0, %v2788
      %v2790 = vpop.f32.mrb[0].mxu0
      %2791 = vmatprep.mubr.f32.mxu0 0.0
      %2792 = vmatmul.mubr.f32.gmra.mrb[0].mxu0 %v868
      %v2793 = vpop.f32.mrb[0].mxu0
      %v2794 = vadd.f32 0.0, %v2793
      %v2795 = vpop.f32.mrb[0].mxu0
      %2796 = vmatprep.mubr.f32.mxu0 0.0
      %2797 = vmatmul.mubr.f32.gmra.mrb[0].mxu0 %v870
      %v2798 = vpop.f32.mrb[0].mxu0
      %v2799 = vadd.f32 0.0, %v2798
      %v2800 = vpop.f32.mrb[0].mxu0
      %2801 = vmatprep.mubr.f32.mxu0 0.0
      %2802 = vmatmul.mubr.f32.gmra.mrb[0].mxu0 %v872
      %v2803 = vpop.f32.mrb[0].mxu0
      %v2804 = vadd.f32 0.0, %v2803
      %v2805 = vpop.f32.mrb[0].mxu0
      %2806 = vmatprep.mubr.f32.mxu0 0.0
      %2807 = vmatmul.mubr.f32.gmra.mrb[0].mxu0 %v874
      %v2808 = vpop.f32.mrb[0].mxu0
      %v2809 = vadd.f32 0.0, %v2808
      %v2810 = vpop.f32.mrb[0].mxu0
      %2811 = vmatprep.mubr.f32.mxu0 0.0
      %2812 = vmatmul.mubr.f32.gmra.mrb[0].mxu0 %v876
      %v2813 = vpop.f32.mrb[0].mxu0
      %v2814 = vadd.f32 0.0, %v2813
      %v2815 = vpop.f32.mrb[0].mxu0
      %2816 = vmatprep.mubr.f32.mxu0 0.0
      %2817 = vmatmul.mubr.f32.gmra.mrb[0].mxu0 %v878
      %v2818 = vpop.f32.mrb[0].mxu0
      %v2819 = vadd.f32 0.0, %v2818
      %v2820 = vpop.f32.mrb[0].mxu0
      %2821 = vmatprep.mubr.f32.mxu0 0.0
      %2822 = vmatmul.mubr.f32.gmra.mrb[0].mxu0 %v880
      %v2823 = vpop.f32.mrb[0].mxu0
      %v2824 = vadd.f32 0.0, %v2823
      %v2825 = vpop.f32.mrb[0].mxu0
      %2826 = vmatprep.mubr.f32.mxu0 0.0
      %2827 = vmatmul.mubr.f32.gmra.mrb[0].mxu0 %v882
      %v2828 = vpop.f32.mrb[0].mxu0
      %v2829 = vadd.f32 0.0, %v2828
      %v2830 = vpop.f32.mrb[0].mxu0
      %2831 = vmatprep.mubr.f32.mxu0 0.0
      %2832 = vmatmul.mubr.f32.gmra.mrb[0].mxu0 %v884
      %v2833 = vpop.f32.mrb[0].mxu0
      %v2834 = vadd.f32 0.0, %v2833
      %v2835 = vpop.f32.mrb[0].mxu0
      %2836 = vmatprep.mubr.f32.mxu0 0.0
      %2837 = vmatmul.mubr.f32.gmra.mrb[0].mxu0 %v886
      %v2838 = vpop.f32.mrb[0].mxu0
      %v2839 = vadd.f32 0.0, %v2838
      %v2840 = vpop.f32.mrb[0].mxu0
      %2841 = vmatprep.mubr.f32.mxu0 0.0
      %2842 = vmatmul.mubr.f32.gmra.mrb[0].mxu0 %v888
      %v2843 = vpop.f32.mrb[0].mxu0
      %v2844 = vadd.f32 0.0, %v2843
      %v2845 = vpop.f32.mrb[0].mxu0
      %2846 = vmatprep.mubr.f32.mxu0 0.0
      %2847 = vmatmul.mubr.f32.gmra.mrb[0].mxu0 %v890
      %v2848 = vpop.f32.mrb[0].mxu0
      %v2849 = vadd.f32 0.0, %v2848
      %v2850 = vpop.f32.mrb[0].mxu0
      %2851 = vmatprep.mubr.f32.mxu0 0.0
      %2852 = vmatmul.mubr.f32.gmra.mrb[0].mxu0 %v892
      %v2853 = vpop.f32.mrb[0].mxu0
      %v2854 = vadd.f32 0.0, %v2853
      %v2855 = vpop.f32.mrb[0].mxu0
      %2856 = vmatprep.mubr.f32.mxu0 0.0
      %2857 = vmatmul.mubr.f32.gmra.mrb[0].mxu0 %v894
      %v2858 = vpop.f32.mrb[0].mxu0
      %v2859 = vadd.f32 0.0, %v2858
      %v2860 = vpop.f32.mrb[0].mxu0
      %2861 = vmatprep.mubr.f32.mxu0 0.0
      %2862 = vmatmul.mubr.f32.gmra.mrb[0].mxu0 %v1839
      %v2863 = vpop.f32.mrb[0].mxu0
      %v2864 = vadd.f32 0.0, %v2863
      %v2865 = vpop.f32.mrb[0].mxu0
      %2866 = vmatprep.mubr.f32.mxu0 0.0
      %2867 = vmatmul.mubr.f32.gmra.mrb[0].mxu0 %v1841
      %v2868 = vpop.f32.mrb[0].mxu0
      %v2869 = vadd.f32 0.0, %v2868
      %v2870 = vpop.f32.mrb[0].mxu0
      %2871 = vmatprep.mubr.f32.mxu0 0.0
      %2872 = vmatmul.mubr.f32.gmra.mrb[0].mxu0 %v2650
      %v2873 = vpop.f32.mrb[0].mxu0
      %v2874 = vadd.f32 0.0, %v2873
      %v2875 = vpop.f32.mrb[0].mxu0
      %2876 = vmatprep.mubr.f32.mxu0 0.0
      %2877 = vmatmul.mubr.f32.gmra.mrb[0].mxu0 %v2652
      %v2878 = vpop.f32.mrb[0].mxu0
      %v2879 = vadd.f32 0.0, %v2878
      %v2880 = vpop.f32.mrb[0].mxu0
      %2881 = vdwg.mxu0
      %v2882 = vadd.f32 %v2610, %v2724
      %v2883 = vadd.f32 %v2611, %v2729
      %v2884 = vadd.f32 %v2612, %v2734
      %v2885 = vadd.f32 %v2613, %v2739
      %v2886 = vadd.f32 %v2614, %v2744
      %v2887 = vadd.f32 %v2615, %v2749
      %v2888 = vadd.f32 %v2616, %v2754
      %v2889 = vadd.f32 %v2617, %v2759
      %v2890 = vadd.f32 %v2618, %v2764
      %v2891 = vadd.f32 %v2619, %v2769
      %v2892 = vadd.f32 %v2620, %v2774
      %v2893 = vadd.f32 %v2621, %v2779
      %v2894 = vadd.f32 %v2622, %v2784
      %v2895 = vadd.f32 %v2623, %v2789
      %v2896 = vadd.f32 %v2624, %v2794
      %v2897 = vadd.f32 %v2625, %v2799
      %v2898 = vadd.f32 %v2626, %v2804
      %v2899 = vadd.f32 %v2627, %v2809
      %v2900 = vadd.f32 %v2628, %v2814
      %v2901 = vadd.f32 %v2629, %v2819
      %v2902 = vadd.f32 %v2630, %v2824
      %v2903 = vadd.f32 %v2631, %v2829
      %v2904 = vadd.f32 %v2632, %v2834
      %v2905 = vadd.f32 %v2633, %v2839
      %v2906 = vadd.f32 %v2634, %v2844
      %v2907 = vadd.f32 %v2635, %v2849
      %v2908 = vadd.f32 %v2636, %v2854
      %v2909 = vadd.f32 %v2637, %v2859
      %v2910 = vadd.f32 %v2638, %v2864
      %v2911 = vadd.f32 %v2639, %v2869
      %v2912 = vadd.f32 %v2640, %v2874
      %v2913 = vadd.f32 %v2641, %v2879
      %v2914 = vrot.slane %v339, 2
      %v2915 = vrot.slane %v340, 2
      %v2916 = vsel %vm1156, %v2914, %v2915
      %v2917 = vrot.slane %v341, 2
      %v2918 = vsel %vm1156, %v2915, %v2917
      %s2919 = scalar_lea.vmem %s239, 32
      %v2920 = vld [vmem:[%s2919] sm:$0xf]
      %v2921 = vsel %vm375, %v2916, 0
      %v2923 = vsel %vm375, %v2918, 0
      %v2926 = vsel %vm472, %v2920, 0
      %2928 = vmatprep.subr.mxu0 0.0
      %2929 = vmatpush1.msra.mxu0 %v2926
      %2930 = vmatprep.subr.mxu0 0.0
      %2931 = vmatpush1.msra.mxu0 0.0
      %2932 = vmatprep.subr.mxu0 0.0
      %2933 = vmatpush1.msra.mxu0 0.0
      %2934 = vmatprep.subr.mxu0 0.0
      %2935 = vmatpush1.msra.mxu0 0.0
      %2936 = vmatprep.subr.mxu0 0.0
      %2937 = vmatpush1.msra.mxu0 0.0
      %2938 = vmatprep.subr.mxu0 0.0
      %2939 = vmatpush1.msra.mxu0 0.0
      %2940 = vmatprep.subr.mxu0 0.0
      %2941 = vmatpush1.msra.mxu0 0.0
      %2942 = vmatprep.subr.mxu0 0.0
      %2943 = vmatpush1.msra.mxu0 0.0
      %2944 = vmatprep.subr.mxu0 0.0
      %2945 = vmatpush1.msra.mxu0 0.0
      %2946 = vmatprep.subr.mxu0 0.0
      %2947 = vmatpush1.msra.mxu0 0.0
      %2948 = vmatprep.subr.mxu0 0.0
      %2949 = vmatpush1.msra.mxu0 0.0
      %2950 = vmatprep.subr.mxu0 0.0
      %2951 = vmatpush1.msra.mxu0 0.0
      %2952 = vmatprep.subr.mxu0 0.0
      %2953 = vmatpush1.msra.mxu0 0.0
      %2954 = vmatprep.subr.mxu0 0.0
      %2955 = vmatpush1.msra.mxu0 0.0
      %2956 = vmatprep.subr.mxu0 0.0
      %2957 = vmatpush1.msra.mxu0 0.0
      %2958 = vmatprep.subr.mxu0 0.0
      %2959 = vmatpush1.msra.mxu0 0.0
      %2960 = vmatprep.subr.mxu0 0.0
      %2961 = vmatpush1.msra.mxu0 0.0
      %2962 = vmatprep.subr.mxu0 0.0
      %2963 = vmatpush1.msra.mxu0 0.0
      %2964 = vmatprep.subr.mxu0 0.0
      %2965 = vmatpush1.msra.mxu0 0.0
      %2966 = vmatprep.subr.mxu0 0.0
      %2967 = vmatpush1.msra.mxu0 0.0
      %2968 = vmatprep.subr.mxu0 0.0
      %2969 = vmatpush1.msra.mxu0 0.0
      %2970 = vmatprep.subr.mxu0 0.0
      %2971 = vmatpush1.msra.mxu0 0.0
      %2972 = vmatprep.subr.mxu0 0.0
      %2973 = vmatpush1.msra.mxu0 0.0
      %2974 = vmatprep.subr.mxu0 0.0
      %2975 = vmatpush1.msra.mxu0 0.0
      %2976 = vmatprep.subr.mxu0 0.0
      %2977 = vmatpush1.msra.mxu0 0.0
      %2978 = vmatprep.subr.mxu0 0.0
      %2979 = vmatpush1.msra.mxu0 0.0
      %2980 = vmatprep.subr.mxu0 0.0
      %2981 = vmatpush1.msra.mxu0 0.0
      %2982 = vmatprep.subr.mxu0 0.0
      %2983 = vmatpush1.msra.mxu0 0.0
      %2984 = vmatprep.subr.mxu0 0.0
      %2985 = vmatpush1.msra.mxu0 0.0
      %2986 = vmatprep.subr.mxu0 0.0
      %2987 = vmatpush1.msra.mxu0 0.0
      %2988 = vmatprep.subr.mxu0 0.0
      %2989 = vmatpush1.msra.mxu0 0.0
      %2990 = vmatprep.subr.mxu0 0.0
      %2991 = vmatpush1.msra.mxu0 0.0
      %2992 = vmatprep.mubr.f32.mxu0 0.0
      %2993 = vmatmul.mubr.f32.gmra.mrb[0].mxu0 %v1247
      %v2994 = vpop.f32.mrb[0].mxu0
      %v2995 = vadd.f32 0.0, %v2994
      %v2996 = vpop.f32.mrb[0].mxu0
      %2997 = vmatprep.mubr.f32.mxu0 0.0
      %2998 = vmatmul.mubr.f32.gmra.mrb[0].mxu0 %v1249
      %v2999 = vpop.f32.mrb[0].mxu0
      %v3000 = vadd.f32 0.0, %v2999
      %v3001 = vpop.f32.mrb[0].mxu0
      %3002 = vmatprep.mubr.f32.mxu0 0.0
      %3003 = vmatmul.mubr.f32.gmra.mrb[0].mxu0 %v1251
      %v3004 = vpop.f32.mrb[0].mxu0
      %v3005 = vadd.f32 0.0, %v3004
      %v3006 = vpop.f32.mrb[0].mxu0
      %3007 = vmatprep.mubr.f32.mxu0 0.0
      %3008 = vmatmul.mubr.f32.gmra.mrb[0].mxu0 %v1253
      %v3009 = vpop.f32.mrb[0].mxu0
      %v3010 = vadd.f32 0.0, %v3009
      %v3011 = vpop.f32.mrb[0].mxu0
      %3012 = vmatprep.mubr.f32.mxu0 0.0
      %3013 = vmatmul.mubr.f32.gmra.mrb[0].mxu0 %v1255
      %v3014 = vpop.f32.mrb[0].mxu0
      %v3015 = vadd.f32 0.0, %v3014
      %v3016 = vpop.f32.mrb[0].mxu0
      %3017 = vmatprep.mubr.f32.mxu0 0.0
      %3018 = vmatmul.mubr.f32.gmra.mrb[0].mxu0 %v1257
      %v3019 = vpop.f32.mrb[0].mxu0
      %v3020 = vadd.f32 0.0, %v3019
      %v3021 = vpop.f32.mrb[0].mxu0
      %3022 = vmatprep.mubr.f32.mxu0 0.0
      %3023 = vmatmul.mubr.f32.gmra.mrb[0].mxu0 %v1259
      %v3024 = vpop.f32.mrb[0].mxu0
      %v3025 = vadd.f32 0.0, %v3024
      %v3026 = vpop.f32.mrb[0].mxu0
      %3027 = vmatprep.mubr.f32.mxu0 0.0
      %3028 = vmatmul.mubr.f32.gmra.mrb[0].mxu0 %v1261
      %v3029 = vpop.f32.mrb[0].mxu0
      %v3030 = vadd.f32 0.0, %v3029
      %v3031 = vpop.f32.mrb[0].mxu0
      %3032 = vmatprep.mubr.f32.mxu0 0.0
      %3033 = vmatmul.mubr.f32.gmra.mrb[0].mxu0 %v1263
      %v3034 = vpop.f32.mrb[0].mxu0
      %v3035 = vadd.f32 0.0, %v3034
      %v3036 = vpop.f32.mrb[0].mxu0
      %3037 = vmatprep.mubr.f32.mxu0 0.0
      %3038 = vmatmul.mubr.f32.gmra.mrb[0].mxu0 %v1265
      %v3039 = vpop.f32.mrb[0].mxu0
      %v3040 = vadd.f32 0.0, %v3039
      %v3041 = vpop.f32.mrb[0].mxu0
      %3042 = vmatprep.mubr.f32.mxu0 0.0
      %3043 = vmatmul.mubr.f32.gmra.mrb[0].mxu0 %v1267
      %v3044 = vpop.f32.mrb[0].mxu0
      %v3045 = vadd.f32 0.0, %v3044
      %v3046 = vpop.f32.mrb[0].mxu0
      %3047 = vmatprep.mubr.f32.mxu0 0.0
      %3048 = vmatmul.mubr.f32.gmra.mrb[0].mxu0 %v1269
      %v3049 = vpop.f32.mrb[0].mxu0
      %v3050 = vadd.f32 0.0, %v3049
      %v3051 = vpop.f32.mrb[0].mxu0
      %3052 = vmatprep.mubr.f32.mxu0 0.0
      %3053 = vmatmul.mubr.f32.gmra.mrb[0].mxu0 %v1271
      %v3054 = vpop.f32.mrb[0].mxu0
      %v3055 = vadd.f32 0.0, %v3054
      %v3056 = vpop.f32.mrb[0].mxu0
      %3057 = vmatprep.mubr.f32.mxu0 0.0
      %3058 = vmatmul.mubr.f32.gmra.mrb[0].mxu0 %v1273
      %v3059 = vpop.f32.mrb[0].mxu0
      %v3060 = vadd.f32 0.0, %v3059
      %v3061 = vpop.f32.mrb[0].mxu0
      %3062 = vmatprep.mubr.f32.mxu0 0.0
      %3063 = vmatmul.mubr.f32.gmra.mrb[0].mxu0 %v1275
      %v3064 = vpop.f32.mrb[0].mxu0
      %v3065 = vadd.f32 0.0, %v3064
      %v3066 = vpop.f32.mrb[0].mxu0
      %3067 = vmatprep.mubr.f32.mxu0 0.0
      %3068 = vmatmul.mubr.f32.gmra.mrb[0].mxu0 %v1277
      %v3069 = vpop.f32.mrb[0].mxu0
      %v3070 = vadd.f32 0.0, %v3069
      %v3071 = vpop.f32.mrb[0].mxu0
      %3072 = vmatprep.mubr.f32.mxu0 0.0
      %3073 = vmatmul.mubr.f32.gmra.mrb[0].mxu0 %v1279
      %v3074 = vpop.f32.mrb[0].mxu0
      %v3075 = vadd.f32 0.0, %v3074
      %v3076 = vpop.f32.mrb[0].mxu0
      %3077 = vmatprep.mubr.f32.mxu0 0.0
      %3078 = vmatmul.mubr.f32.gmra.mrb[0].mxu0 %v1281
      %v3079 = vpop.f32.mrb[0].mxu0
      %v3080 = vadd.f32 0.0, %v3079
      %v3081 = vpop.f32.mrb[0].mxu0
      %3082 = vmatprep.mubr.f32.mxu0 0.0
      %3083 = vmatmul.mubr.f32.gmra.mrb[0].mxu0 %v1283
      %v3084 = vpop.f32.mrb[0].mxu0
      %v3085 = vadd.f32 0.0, %v3084
      %v3086 = vpop.f32.mrb[0].mxu0
      %3087 = vmatprep.mubr.f32.mxu0 0.0
      %3088 = vmatmul.mubr.f32.gmra.mrb[0].mxu0 %v1285
      %v3089 = vpop.f32.mrb[0].mxu0
      %v3090 = vadd.f32 0.0, %v3089
      %v3091 = vpop.f32.mrb[0].mxu0
      %3092 = vmatprep.mubr.f32.mxu0 0.0
      %3093 = vmatmul.mubr.f32.gmra.mrb[0].mxu0 %v1287
      %v3094 = vpop.f32.mrb[0].mxu0
      %v3095 = vadd.f32 0.0, %v3094
      %v3096 = vpop.f32.mrb[0].mxu0
      %3097 = vmatprep.mubr.f32.mxu0 0.0
      %3098 = vmatmul.mubr.f32.gmra.mrb[0].mxu0 %v1289
      %v3099 = vpop.f32.mrb[0].mxu0
      %v3100 = vadd.f32 0.0, %v3099
      %v3101 = vpop.f32.mrb[0].mxu0
      %3102 = vmatprep.mubr.f32.mxu0 0.0
      %3103 = vmatmul.mubr.f32.gmra.mrb[0].mxu0 %v1291
      %v3104 = vpop.f32.mrb[0].mxu0
      %v3105 = vadd.f32 0.0, %v3104
      %v3106 = vpop.f32.mrb[0].mxu0
      %3107 = vmatprep.mubr.f32.mxu0 0.0
      %3108 = vmatmul.mubr.f32.gmra.mrb[0].mxu0 %v1293
      %v3109 = vpop.f32.mrb[0].mxu0
      %v3110 = vadd.f32 0.0, %v3109
      %v3111 = vpop.f32.mrb[0].mxu0
      %3112 = vmatprep.mubr.f32.mxu0 0.0
      %3113 = vmatmul.mubr.f32.gmra.mrb[0].mxu0 %v1295
      %v3114 = vpop.f32.mrb[0].mxu0
      %v3115 = vadd.f32 0.0, %v3114
      %v3116 = vpop.f32.mrb[0].mxu0
      %3117 = vmatprep.mubr.f32.mxu0 0.0
      %3118 = vmatmul.mubr.f32.gmra.mrb[0].mxu0 %v1297
      %v3119 = vpop.f32.mrb[0].mxu0
      %v3120 = vadd.f32 0.0, %v3119
      %v3121 = vpop.f32.mrb[0].mxu0
      %3122 = vmatprep.mubr.f32.mxu0 0.0
      %3123 = vmatmul.mubr.f32.gmra.mrb[0].mxu0 %v1299
      %v3124 = vpop.f32.mrb[0].mxu0
      %v3125 = vadd.f32 0.0, %v3124
      %v3126 = vpop.f32.mrb[0].mxu0
      %3127 = vmatprep.mubr.f32.mxu0 0.0
      %3128 = vmatmul.mubr.f32.gmra.mrb[0].mxu0 %v1301
      %v3129 = vpop.f32.mrb[0].mxu0
      %v3130 = vadd.f32 0.0, %v3129
      %v3131 = vpop.f32.mrb[0].mxu0
      %3132 = vmatprep.mubr.f32.mxu0 0.0
      %3133 = vmatmul.mubr.f32.gmra.mrb[0].mxu0 %v2110
      %v3134 = vpop.f32.mrb[0].mxu0
      %v3135 = vadd.f32 0.0, %v3134
      %v3136 = vpop.f32.mrb[0].mxu0
      %3137 = vmatprep.mubr.f32.mxu0 0.0
      %3138 = vmatmul.mubr.f32.gmra.mrb[0].mxu0 %v2112
      %v3139 = vpop.f32.mrb[0].mxu0
      %v3140 = vadd.f32 0.0, %v3139
      %v3141 = vpop.f32.mrb[0].mxu0
      %3142 = vmatprep.mubr.f32.mxu0 0.0
      %3143 = vmatmul.mubr.f32.gmra.mrb[0].mxu0 %v2921
      %v3144 = vpop.f32.mrb[0].mxu0
      %v3145 = vadd.f32 0.0, %v3144
      %v3146 = vpop.f32.mrb[0].mxu0
      %3147 = vmatprep.mubr.f32.mxu0 0.0
      %3148 = vmatmul.mubr.f32.gmra.mrb[0].mxu0 %v2923
      %v3149 = vpop.f32.mrb[0].mxu0
      %v3150 = vadd.f32 0.0, %v3149
      %v3151 = vpop.f32.mrb[0].mxu0
      %3152 = vdwg.mxu0
      %v3153 = vadd.f32 %v2882, %v2995
      %v3154 = vadd.f32 %v2883, %v3000
      %v3155 = vadd.f32 %v2884, %v3005
      %v3156 = vadd.f32 %v2885, %v3010
      %v3157 = vadd.f32 %v2886, %v3015
      %v3158 = vadd.f32 %v2887, %v3020
      %v3159 = vadd.f32 %v2888, %v3025
      %v3160 = vadd.f32 %v2889, %v3030
      %v3161 = vadd.f32 %v2890, %v3035
      %v3162 = vadd.f32 %v2891, %v3040
      %v3163 = vadd.f32 %v2892, %v3045
      %v3164 = vadd.f32 %v2893, %v3050
      %v3165 = vadd.f32 %v2894, %v3055
      %v3166 = vadd.f32 %v2895, %v3060
      %v3167 = vadd.f32 %v2896, %v3065
      %v3168 = vadd.f32 %v2897, %v3070
      %v3169 = vadd.f32 %v2898, %v3075
      %v3170 = vadd.f32 %v2899, %v3080
      %v3171 = vadd.f32 %v2900, %v3085
      %v3172 = vadd.f32 %v2901, %v3090
      %v3173 = vadd.f32 %v2902, %v3095
      %v3174 = vadd.f32 %v2903, %v3100
      %v3175 = vadd.f32 %v2904, %v3105
      %v3176 = vadd.f32 %v2905, %v3110
      %v3177 = vadd.f32 %v2906, %v3115
      %v3178 = vadd.f32 %v2907, %v3120
      %v3179 = vadd.f32 %v2908, %v3125
      %v3180 = vadd.f32 %v2909, %v3130
      %v3181 = vadd.f32 %v2910, %v3135
      %v3182 = vadd.f32 %v2911, %v3140
      %v3183 = vadd.f32 %v2912, %v3145
      %v3184 = vadd.f32 %v2913, %v3150
      %vm3185 = vcmask 64512
      %3186 = vst.msk [vmem:[#allocation2] sm:$0xff] %vm3185, %v3153
      %3187 = vst.msk [vmem:[#allocation2 + $0x8] sm:$0xff] %vm3185, %v3154
      %3188 = vst.msk [vmem:[#allocation2 + $0x10] sm:$0xff] %vm3185, %v3155
      %3189 = vst.msk [vmem:[#allocation2 + $0x18] sm:$0xff] %vm3185, %v3156
      %3190 = vst.msk [vmem:[#allocation2 + $0x20] sm:$0xff] %vm3185, %v3157
      %3191 = vst.msk [vmem:[#allocation2 + $0x28] sm:$0xff] %vm3185, %v3158
      %3192 = vst.msk [vmem:[#allocation2 + $0x30] sm:$0xff] %vm3185, %v3159
      %3193 = vst.msk [vmem:[#allocation2 + $0x38] sm:$0xff] %vm3185, %v3160
      %3194 = vst.msk [vmem:[#allocation2 + $0x40] sm:$0xff] %vm3185, %v3161
      %3195 = vst.msk [vmem:[#allocation2 + $0x48] sm:$0xff] %vm3185, %v3162
      %3196 = vst.msk [vmem:[#allocation2 + $0x50] sm:$0xff] %vm3185, %v3163
      %3197 = vst.msk [vmem:[#allocation2 + $0x58] sm:$0xff] %vm3185, %v3164
      %3198 = vst.msk [vmem:[#allocation2 + $0x60] sm:$0xff] %vm3185, %v3165
      %3199 = vst.msk [vmem:[#allocation2 + $0x68] sm:$0xff] %vm3185, %v3166
      %3200 = vst.msk [vmem:[#allocation2 + $0x70] sm:$0xff] %vm3185, %v3167
      %3201 = vst.msk [vmem:[#allocation2 + $0x78] sm:$0xff] %vm3185, %v3168
      %3202 = vst.msk [vmem:[#allocation2 + $0x80] sm:$0xff] %vm3185, %v3169
      %3203 = vst.msk [vmem:[#allocation2 + $0x88] sm:$0xff] %vm3185, %v3170
      %3204 = vst.msk [vmem:[#allocation2 + $0x90] sm:$0xff] %vm3185, %v3171
      %3205 = vst.msk [vmem:[#allocation2 + $0x98] sm:$0xff] %vm3185, %v3172
      %3206 = vst.msk [vmem:[#allocation2 + $0xa0] sm:$0xff] %vm3185, %v3173
      %3207 = vst.msk [vmem:[#allocation2 + $0xa8] sm:$0xff] %vm3185, %v3174
      %3208 = vst.msk [vmem:[#allocation2 + $0xb0] sm:$0xff] %vm3185, %v3175
      %3209 = vst.msk [vmem:[#allocation2 + $0xb8] sm:$0xff] %vm3185, %v3176
      %3210 = vst.msk [vmem:[#allocation2 + $0xc0] sm:$0xff] %vm3185, %v3177
      %3211 = vst.msk [vmem:[#allocation2 + $0xc8] sm:$0xff] %vm3185, %v3178
      %3212 = vst.msk [vmem:[#allocation2 + $0xd0] sm:$0xff] %vm3185, %v3179
      %3213 = vst.msk [vmem:[#allocation2 + $0xd8] sm:$0xff] %vm3185, %v3180
      %3214 = vst.msk [vmem:[#allocation2 + $0xe0] sm:$0xff] %vm3185, %v3181
      %3215 = vst.msk [vmem:[#allocation2 + $0xe8] sm:$0xff] %vm3185, %v3182
      %3216 = vst.msk [vmem:[#allocation2 + $0xf0] sm:$0xff] %vm3185, %v3183
      %3217 = vst.msk [vmem:[#allocation2 + $0xf8] sm:$0xff] %vm3185, %v3184
      // Predicated region
      $region37: #{tpu_custom_call.1} parent=31 // pred_check
        %p3218 = pneg %p251
      $region38: #{tpu_custom_call.1} parent=31 // pred_check_branch
        %3220 = sbr.rel (%p3218) target = $region40
      $region39: #{tpu_custom_call.1} parent=31 // pred_region
        %v3221 = vld [vmem:[#allocation2] sm:$0xff]
        %v3222 = vld [vmem:[#allocation2 + $0x8] sm:$0xff]
        %v3223 = vld [vmem:[#allocation2 + $0x10] sm:$0xff]
        %v3224 = vld [vmem:[#allocation2 + $0x18] sm:$0xff]
        %v3225 = vld [vmem:[#allocation2 + $0x20] sm:$0xff]
        %v3226 = vld [vmem:[#allocation2 + $0x28] sm:$0xff]
        %v3227 = vld [vmem:[#allocation2 + $0x30] sm:$0xff]
        %v3228 = vld [vmem:[#allocation2 + $0x38] sm:$0xff]
        %v3229 = vld [vmem:[#allocation2 + $0x40] sm:$0xff]
        %v3230 = vld [vmem:[#allocation2 + $0x48] sm:$0xff]
        %v3231 = vld [vmem:[#allocation2 + $0x50] sm:$0xff]
        %v3232 = vld [vmem:[#allocation2 + $0x58] sm:$0xff]
        %v3233 = vld [vmem:[#allocation2 + $0x60] sm:$0xff]
        %v3234 = vld [vmem:[#allocation2 + $0x68] sm:$0xff]
        %v3235 = vld [vmem:[#allocation2 + $0x70] sm:$0xff]
        %v3236 = vld [vmem:[#allocation2 + $0x78] sm:$0xff]
        %v3237 = vld [vmem:[#allocation2 + $0x80] sm:$0xff]
        %v3238 = vld [vmem:[#allocation2 + $0x88] sm:$0xff]
        %v3239 = vld [vmem:[#allocation2 + $0x90] sm:$0xff]
        %v3240 = vld [vmem:[#allocation2 + $0x98] sm:$0xff]
        %v3241 = vld [vmem:[#allocation2 + $0xa0] sm:$0xff]
        %v3242 = vld [vmem:[#allocation2 + $0xa8] sm:$0xff]
        %v3243 = vld [vmem:[#allocation2 + $0xb0] sm:$0xff]
        %v3244 = vld [vmem:[#allocation2 + $0xb8] sm:$0xff]
        %v3245 = vld [vmem:[#allocation2 + $0xc0] sm:$0xff]
        %v3246 = vld [vmem:[#allocation2 + $0xc8] sm:$0xff]
        %v3247 = vld [vmem:[#allocation2 + $0xd0] sm:$0xff]
        %v3248 = vld [vmem:[#allocation2 + $0xd8] sm:$0xff]
        %v3249 = vld [vmem:[#allocation2 + $0xe0] sm:$0xff]
        %v3250 = vld [vmem:[#allocation2 + $0xe8] sm:$0xff]
        %v3251 = vld [vmem:[#allocation2 + $0xf0] sm:$0xff]
        %v3252 = vld [vmem:[#allocation2 + $0xf8] sm:$0xff]
        %v3253 = vld [vmem:[%s242] sm:$0x1]
        %v3255 = vlaneseq
        %v3256 = vshrl.u32 %v3255, 7
        %v3257 = vsub.s32 0, %v3256
        %v3258 = vrot.slane %v3253, %v3257
        %v3260 = vadd.f32 %v3221, %v3258
        %v3261 = vadd.f32 %v3222, %v3258
        %v3262 = vadd.f32 %v3223, %v3258
        %v3263 = vadd.f32 %v3224, %v3258
        %v3264 = vadd.f32 %v3225, %v3258
        %v3265 = vadd.f32 %v3226, %v3258
        %v3266 = vadd.f32 %v3227, %v3258
        %v3267 = vadd.f32 %v3228, %v3258
        %v3268 = vadd.f32 %v3229, %v3258
        %v3269 = vadd.f32 %v3230, %v3258
        %v3270 = vadd.f32 %v3231, %v3258
        %v3271 = vadd.f32 %v3232, %v3258
        %v3272 = vadd.f32 %v3233, %v3258
        %v3273 = vadd.f32 %v3234, %v3258
        %v3274 = vadd.f32 %v3235, %v3258
        %v3275 = vadd.f32 %v3236, %v3258
        %v3276 = vadd.f32 %v3237, %v3258
        %v3277 = vadd.f32 %v3238, %v3258
        %v3278 = vadd.f32 %v3239, %v3258
        %v3279 = vadd.f32 %v3240, %v3258
        %v3280 = vadd.f32 %v3241, %v3258
        %v3281 = vadd.f32 %v3242, %v3258
        %v3282 = vadd.f32 %v3243, %v3258
        %v3283 = vadd.f32 %v3244, %v3258
        %v3284 = vadd.f32 %v3245, %v3258
        %v3285 = vadd.f32 %v3246, %v3258
        %v3286 = vadd.f32 %v3247, %v3258
        %v3287 = vadd.f32 %v3248, %v3258
        %v3288 = vadd.f32 %v3249, %v3258
        %v3289 = vadd.f32 %v3250, %v3258
        %v3290 = vadd.f32 %v3251, %v3258
        %v3291 = vadd.f32 %v3252, %v3258
        %v3292 = vmax.f32 %v3260, 0.0
        %v3293 = vmax.f32 %v3261, 0.0
        %v3294 = vmax.f32 %v3262, 0.0
        %v3295 = vmax.f32 %v3263, 0.0
        %v3296 = vmax.f32 %v3264, 0.0
        %v3297 = vmax.f32 %v3265, 0.0
        %v3298 = vmax.f32 %v3266, 0.0
        %v3299 = vmax.f32 %v3267, 0.0
        %v3300 = vmax.f32 %v3268, 0.0
        %v3301 = vmax.f32 %v3269, 0.0
        %v3302 = vmax.f32 %v3270, 0.0
        %v3303 = vmax.f32 %v3271, 0.0
        %v3304 = vmax.f32 %v3272, 0.0
        %v3305 = vmax.f32 %v3273, 0.0
        %v3306 = vmax.f32 %v3274, 0.0
        %v3307 = vmax.f32 %v3275, 0.0
        %v3308 = vmax.f32 %v3276, 0.0
        %v3309 = vmax.f32 %v3277, 0.0
        %v3310 = vmax.f32 %v3278, 0.0
        %v3311 = vmax.f32 %v3279, 0.0
        %v3312 = vmax.f32 %v3280, 0.0
        %v3313 = vmax.f32 %v3281, 0.0
        %v3314 = vmax.f32 %v3282, 0.0
        %v3315 = vmax.f32 %v3283, 0.0
        %v3316 = vmax.f32 %v3284, 0.0
        %v3317 = vmax.f32 %v3285, 0.0
        %v3318 = vmax.f32 %v3286, 0.0
        %v3319 = vmax.f32 %v3287, 0.0
        %v3320 = vmax.f32 %v3288, 0.0
        %v3321 = vmax.f32 %v3289, 0.0
        %v3322 = vmax.f32 %v3290, 0.0
        %v3323 = vmax.f32 %v3291, 0.0
        %3324 = vst.msk [vmem:[%s250] sm:$0xff] %vm3185, %v3292
        %3325 = vst.msk [vmem:[%s250 + $0x8] sm:$0xff] %vm3185, %v3293
        %3326 = vst.msk [vmem:[%s250 + $0x10] sm:$0xff] %vm3185, %v3294
        %3327 = vst.msk [vmem:[%s250 + $0x18] sm:$0xff] %vm3185, %v3295
        %3328 = vst.msk [vmem:[%s250 + $0x20] sm:$0xff] %vm3185, %v3296
        %3329 = vst.msk [vmem:[%s250 + $0x28] sm:$0xff] %vm3185, %v3297
        %3330 = vst.msk [vmem:[%s250 + $0x30] sm:$0xff] %vm3185, %v3298
        %3331 = vst.msk [vmem:[%s250 + $0x38] sm:$0xff] %vm3185, %v3299
        %3332 = vst.msk [vmem:[%s250 + $0x40] sm:$0xff] %vm3185, %v3300
        %3333 = vst.msk [vmem:[%s250 + $0x48] sm:$0xff] %vm3185, %v3301
        %3334 = vst.msk [vmem:[%s250 + $0x50] sm:$0xff] %vm3185, %v3302
        %3335 = vst.msk [vmem:[%s250 + $0x58] sm:$0xff] %vm3185, %v3303
        %3336 = vst.msk [vmem:[%s250 + $0x60] sm:$0xff] %vm3185, %v3304
        %3337 = vst.msk [vmem:[%s250 + $0x68] sm:$0xff] %vm3185, %v3305
        %3338 = vst.msk [vmem:[%s250 + $0x70] sm:$0xff] %vm3185, %v3306
        %3339 = vst.msk [vmem:[%s250 + $0x78] sm:$0xff] %vm3185, %v3307
        %3340 = vst.msk [vmem:[%s250 + $0x80] sm:$0xff] %vm3185, %v3308
        %3341 = vst.msk [vmem:[%s250 + $0x88] sm:$0xff] %vm3185, %v3309
        %3342 = vst.msk [vmem:[%s250 + $0x90] sm:$0xff] %vm3185, %v3310
        %3343 = vst.msk [vmem:[%s250 + $0x98] sm:$0xff] %vm3185, %v3311
        %3344 = vst.msk [vmem:[%s250 + $0xa0] sm:$0xff] %vm3185, %v3312
        %3345 = vst.msk [vmem:[%s250 + $0xa8] sm:$0xff] %vm3185, %v3313
        %3346 = vst.msk [vmem:[%s250 + $0xb0] sm:$0xff] %vm3185, %v3314
        %3347 = vst.msk [vmem:[%s250 + $0xb8] sm:$0xff] %vm3185, %v3315
        %3348 = vst.msk [vmem:[%s250 + $0xc0] sm:$0xff] %vm3185, %v3316
        %3349 = vst.msk [vmem:[%s250 + $0xc8] sm:$0xff] %vm3185, %v3317
        %3350 = vst.msk [vmem:[%s250 + $0xd0] sm:$0xff] %vm3185, %v3318
        %3351 = vst.msk [vmem:[%s250 + $0xd8] sm:$0xff] %vm3185, %v3319
        %3352 = vst.msk [vmem:[%s250 + $0xe0] sm:$0xff] %vm3185, %v3320
        %3353 = vst.msk [vmem:[%s250 + $0xe8] sm:$0xff] %vm3185, %v3321
        %3354 = vst.msk [vmem:[%s250 + $0xf0] sm:$0xff] %vm3185, %v3322
        %3355 = vst.msk [vmem:[%s250 + $0xf8] sm:$0xff] %vm3185, %v3323
      $region40: #{tpu_custom_call.1} parent=31 // pred_fallthru
        _
      %p3356 = scmp.lt.s32.totalorder %s19, 1
      %s3357 = scalar_select %p3356, %s19, 1
      %p3358 = scmp.lt.s32.totalorder %s20, 0
      %s3359 = scalar_select %p3358, %s20, 0
      %s3360 = smul.addr %s3357, 32
      %s3361 = sadd.s32 %s3359, %s3360
      %s3362 = smul.addr %s3361, 8
      %s3363 = scalar_lea.vmem %s3, %s3362
      // Predicated region
      $region41: #{tpu_custom_call.1} parent=31 // pred_check
        %p3364 = pneg %p135
      $region42: #{tpu_custom_call.1} parent=31 // pred_check_branch
        %3366 = sbr.rel (%p3364) target = $region44
      $region43: #{tpu_custom_call.1} parent=31 // pred_region
        _
      $region44: #{tpu_custom_call.1} parent=31 // pred_fallthru
        _
    $region32: #{tpu_custom_call.1} parent=5 // pred_fallthru
      _
    %p3367 = scmp.le.s32.totalorder 2, %s9
    // Predicated region
    $region45: #{tpu_custom_call.1} parent=5 // pred_check
      %p3368 = pneg %p3367
    $region46: #{tpu_custom_call.1} parent=5 // pred_check_branch
      %3370 = sbr.rel (%p3368) target = $region48
    $region47: #{tpu_custom_call.1} parent=5 // pred_region
      %s3371 = ssub.s32 %s9, 2
      // Predicated region
      $region49: #{tpu_custom_call.1} parent=47 // pred_check
        %p3372 = pneg %p141
      $region50: #{tpu_custom_call.1} parent=47 // pred_check_branch
        %3374 = sbr.rel (%p3372) target = $region52
      $region51: #{tpu_custom_call.1} parent=47 // pred_region
        %p3375 = scmp.lt.s32.totalorder %s22, 1
        %s3376 = scalar_select %p3375, %s22, 1
        %p3377 = scmp.lt.s32.totalorder %s23, 0
        %s3378 = scalar_select %p3377, %s23, 0
        %s3379 = smul.addr %s3376, 32
        %s3380 = sadd.s32 %s3378, %s3379
        %s3381 = smul.addr %s3380, 8
        %s3382 = scalar_lea.vmem %s3, %s3381
      $region52: #{tpu_custom_call.1} parent=47 // pred_fallthru
        _
    $region48: #{tpu_custom_call.1} parent=5 // pred_fallthru
      _
  $region6: #{tpu_custom_call.1} parent=0 // loop_footer
    %s13 = sadd.s32 1, %s9
  $region7: #{tpu_custom_call.1} parent=0 // loop_footer_branch
    %8 = sbr.rel target = $region3
  $region8: #{tpu_custom_call.1} parent=0 // loop_exit
    _

</llo_original>
